<compile_context>
chip_gen: v7x
topology: tpu7x:2x2x1
jax: 0.10.0
libtpu: 0.0.40
codegen_flags: <defaults>
</compile_context>

<pallas_src>
import math

import jax
import jax.numpy as jnp
from jax.experimental import pallas as pl
from jax.experimental.pallas import tpu as pltpu

# ----------------------------- model hyper-params -----------------------------
D_INPUT = 3
D_MODEL = 64            # small-shape stand-in for 256 (n_head=8 structure kept)
N_HEAD = 8
HEAD_DIM = D_MODEL // N_HEAD
N_LAYER = 6
N_TASKS = 20
N_PAD = 128             # lane-dense padded output width (>= N_TASKS)
N_POSITIONS = 64
LN_EPS = 1e-5
ATTN_SCALE = 1.0 / math.sqrt(HEAD_DIM)
MASK_VALUE = -1e30


# --------------------------------- helpers ------------------------------------
def _gelu_new(x):
    # GPT2 "gelu_new" (tanh approximation)
    return 0.5 * x * (1.0 + jnp.tanh(
        math.sqrt(2.0 / math.pi) * (x + 0.044715 * x * x * x)))


def _layer_norm(x, g, b):
    mu = jnp.mean(x, axis=-1, keepdims=True)
    var = jnp.mean(jnp.square(x - mu), axis=-1, keepdims=True)
    return (x - mu) * jax.lax.rsqrt(var + LN_EPS) * g + b


# ----------------------------- fused forward kernel ----------------------------
def _fused_forward_kernel(
        x_ref, w_in_ref, b_in_ref, wpe_ref,
        ln1_g_ref, ln1_b_ref, w_qkv_ref, b_qkv_ref, w_proj_ref, b_proj_ref,
        ln2_g_ref, ln2_b_ref, w_fc_ref, b_fc_ref, w_mp_ref, b_mp_ref,
        lnf_g_ref, lnf_b_ref, w_out_ref, b_out_ref,
        o_ref):
    """One grid step = one batch element; full 6-layer stack stays on chip."""
    S = x_ref.shape[0]

    # --- input projection (K=3 -> 3 VPU FMAs) + bias + positional embedding ---
    x = x_ref[...]                     # (S, 3)
    w_in = w_in_ref[...]               # (3, D)
    h = b_in_ref[...] + wpe_ref[...]   # (1, D) + (S, D) -> (S, D)
    for i in range(D_INPUT):
        h = h + x[:, i:i + 1] * w_in[i:i + 1, :]

    # causal mask, built once and reused across layers/heads
    row = jax.lax.broadcasted_iota(jnp.int32, (S, S), 0)
    col = jax.lax.broadcasted_iota(jnp.int32, (S, S), 1)
    causal = row >= col

    def block(l, h):
        # ---------------- attention (pre-LN) ----------------
        hn = _layer_norm(h, ln1_g_ref[l], ln1_b_ref[l])
        qkv = jnp.dot(hn, w_qkv_ref[l],
                      preferred_element_type=jnp.float32) + b_qkv_ref[l]
        w_proj = w_proj_ref[l]
        attn = jnp.zeros_like(h)
        for hd in range(N_HEAD):
            lo = hd * HEAD_DIM
            hi = lo + HEAD_DIM
            q = qkv[:, lo:hi]                                   # (S, Dh)
            k = qkv[:, D_MODEL + lo:D_MODEL + hi]
            v = qkv[:, 2 * D_MODEL + lo:2 * D_MODEL + hi]
            # q @ k^T without materializing the transpose
            s = jax.lax.dot_general(
                q, k, (((1,), (1,)), ((), ())),
                preferred_element_type=jnp.float32) * ATTN_SCALE
            s = jnp.where(causal, s, MASK_VALUE)
            s = s - jnp.max(s, axis=-1, keepdims=True)
            p = jnp.exp(s)
            p = p / jnp.sum(p, axis=-1, keepdims=True)
            a = jnp.dot(p, v, preferred_element_type=jnp.float32)   # (S, Dh)
            # merge_heads + c_proj fused: accumulate per-head slice of w_proj
            attn = attn + jnp.dot(a, w_proj[lo:hi, :],
                                  preferred_element_type=jnp.float32)
        h = h + attn + b_proj_ref[l]          # residual + proj bias fused

        # ---------------- MLP (pre-LN) ----------------
        hn = _layer_norm(h, ln2_g_ref[l], ln2_b_ref[l])
        m = jnp.dot(hn, w_fc_ref[l],
                    preferred_element_type=jnp.float32) + b_fc_ref[l]
        m = _gelu_new(m)
        m = jnp.dot(m, w_mp_ref[l],
                    preferred_element_type=jnp.float32) + b_mp_ref[l]
        return h + m                          # residual fused

    h = jax.lax.fori_loop(0, N_LAYER, block, h)

    # final LN + output projection (lane-dense, padded to 128) + sigmoid
    h = _layer_norm(h, lnf_g_ref[...], lnf_b_ref[...])
    logits = jnp.dot(h, w_out_ref[...],
                     preferred_element_type=jnp.float32) + b_out_ref[...]
    o_ref[...] = jax.nn.sigmoid(logits)


# --------------------------------- wrapper -------------------------------------
@jax.jit
def forward(params, x):
    """x: (B, S, D_INPUT) -> probs: (B, S, N_TASKS)"""
    B, S, _ = x.shape
    M = B * S
    L = N_LAYER

    def batched(shape):
        return pl.BlockSpec(shape, lambda b: (b,) + (0,) * (len(shape) - 1))

    def shared(shape):
        return pl.BlockSpec(shape, lambda b: (0,) * len(shape))

    out = pl.pallas_call(
        _fused_forward_kernel,
        out_shape=jax.ShapeDtypeStruct((M, N_PAD), jnp.float32),
        grid=(B,),
        in_specs=[
            batched((S, D_INPUT)),                       # x (per-batch rows)
            shared((D_INPUT, D_MODEL)),                  # w_in
            shared((1, D_MODEL)),                        # b_in
            shared((S, D_MODEL)),                        # wpe[:S]
            shared((L, 1, D_MODEL)),                     # ln1_g
            shared((L, 1, D_MODEL)),                     # ln1_b
            shared((L, D_MODEL, 3 * D_MODEL)),           # w_qkv (stacked layers)
            shared((L, 1, 3 * D_MODEL)),                 # b_qkv
            shared((L, D_MODEL, D_MODEL)),               # w_proj
            shared((L, 1, D_MODEL)),                     # b_proj
            shared((L, 1, D_MODEL)),                     # ln2_g
            shared((L, 1, D_MODEL)),                     # ln2_b
            shared((L, D_MODEL, 4 * D_MODEL)),           # w_fc
            shared((L, 1, 4 * D_MODEL)),                 # b_fc
            shared((L, 4 * D_MODEL, D_MODEL)),           # w_mlp_proj
            shared((L, 1, D_MODEL)),                     # b_mlp_proj
            shared((1, D_MODEL)),                        # lnf_g
            shared((1, D_MODEL)),                        # lnf_b
            shared((D_MODEL, N_PAD)),                    # w_out (zero-padded)
            shared((1, N_PAD)),                          # b_out (zero-padded)
        ],
        out_specs=pl.BlockSpec((S, N_PAD), lambda b: (b, 0)),
        compiler_params=pltpu.CompilerParams(
            dimension_semantics=("parallel",)),          # v7x: 2 TCs over batch
    )(
        x.reshape(M, D_INPUT),
        params["w_in"], params["b_in"], params["wpe"][:S],
        params["ln1_g"], params["ln1_b"],
        params["w_qkv"], params["b_qkv"],
        params["w_proj"], params["b_proj"],
        params["ln2_g"], params["ln2_b"],
        params["w_fc"], params["b_fc"],
        params["w_mp"], params["b_mp"],
        params["lnf_g"], params["lnf_b"],
        params["w_out"], params["b_out"],
    )
    return out[:, :N_TASKS].reshape(B, S, N_TASKS)


# ------------------------------ parameter init ---------------------------------
def init_params(key):
    def nrm(k, shape, std=0.02):
        return (std * jax.random.normal(k, shape)).astype(jnp.float32)

    ks = jax.random.split(key, 7)
    L, D = N_LAYER, D_MODEL
    # output projection zero-padded to a lane-dense (D, 128) slab
    w_out = jnp.zeros((D, N_PAD), jnp.float32)
    w_out = w_out.at[:, :N_TASKS].set(nrm(ks[6], (D, N_TASKS)))
    return {
        "w_in": nrm(ks[0], (D_INPUT, D)),
        "b_in": jnp.zeros((1, D), jnp.float32),
        "wpe": nrm(ks[1], (N_POSITIONS, D)),
        "ln1_g": jnp.ones((L, 1, D), jnp.float32),
        "ln1_b": jnp.zeros((L, 1, D), jnp.float32),
        "w_qkv": nrm(ks[2], (L, D, 3 * D)),
        "b_qkv": jnp.zeros((L, 1, 3 * D), jnp.float32),
        "w_proj": nrm(ks[3], (L, D, D)),
        "b_proj": jnp.zeros((L, 1, D), jnp.float32),
        "ln2_g": jnp.ones((L, 1, D), jnp.float32),
        "ln2_b": jnp.zeros((L, 1, D), jnp.float32),
        "w_fc": nrm(ks[4], (L, D, 4 * D)),
        "b_fc": jnp.zeros((L, 1, 4 * D), jnp.float32),
        "w_mp": nrm(ks[5], (L, 4 * D, D)),
        "b_mp": jnp.zeros((L, 1, D), jnp.float32),
        "lnf_g": jnp.ones((1, D), jnp.float32),
        "lnf_b": jnp.zeros((1, D), jnp.float32),
        "w_out": w_out,
        "b_out": jnp.zeros((1, N_PAD), jnp.float32),
    }


# ----------------------------------- main ---------------------------------------
if __name__ == "__main__":
    B, S = 2, 8
    key = jax.random.PRNGKey(0)
    k_params, k_x = jax.random.split(key)
    params = init_params(k_params)
    x = jax.random.normal(k_x, (B, S, D_INPUT), dtype=jnp.float32)

    probs = forward(params, x)
    probs = jax.block_until_ready(probs)

    assert probs.shape == (B, S, N_TASKS)
    assert bool(jnp.all((probs >= 0.0) & (probs <= 1.0)))
    assert bool(jnp.all(jnp.isfinite(probs)))
    print("KERNEL_OK")
</pallas_src>

<mosaic_0001>
module attributes {stable_mosaic.version = 11 : i64} {
  func.func @_fused_forward_kernel(%arg0: i32, %arg1: memref<8x3xf32, #tpu.memory_space<vmem>>, %arg2: memref<3x64xf32, #tpu.memory_space<vmem>>, %arg3: memref<1x64xf32, #tpu.memory_space<vmem>>, %arg4: memref<8x64xf32, #tpu.memory_space<vmem>>, %arg5: memref<6x1x64xf32, #tpu.memory_space<vmem>>, %arg6: memref<6x1x64xf32, #tpu.memory_space<vmem>>, %arg7: memref<6x64x192xf32, #tpu.memory_space<vmem>>, %arg8: memref<6x1x192xf32, #tpu.memory_space<vmem>>, %arg9: memref<6x64x64xf32, #tpu.memory_space<vmem>>, %arg10: memref<6x1x64xf32, #tpu.memory_space<vmem>>, %arg11: memref<6x1x64xf32, #tpu.memory_space<vmem>>, %arg12: memref<6x1x64xf32, #tpu.memory_space<vmem>>, %arg13: memref<6x64x256xf32, #tpu.memory_space<vmem>>, %arg14: memref<6x1x256xf32, #tpu.memory_space<vmem>>, %arg15: memref<6x256x64xf32, #tpu.memory_space<vmem>>, %arg16: memref<6x1x64xf32, #tpu.memory_space<vmem>>, %arg17: memref<1x64xf32, #tpu.memory_space<vmem>>, %arg18: memref<1x64xf32, #tpu.memory_space<vmem>>, %arg19: memref<64x128xf32, #tpu.memory_space<vmem>>, %arg20: memref<1x128xf32, #tpu.memory_space<vmem>>, %arg21: memref<8x128xf32, #tpu.memory_space<vmem>>) attributes {dimension_semantics = [#tpu.dimension_semantics<parallel>], iteration_bounds = array<i64: 2>, scalar_prefetch = 0 : i64, scratch_operands = 0 : i64, tpu.core_type = #tpu.core_type<tc>, window_params = [{transform_indices = @transform_0, window_bounds = array<i64: 8, 3>}, {pipeline_mode = #tpu.pipeline_mode<synchronous>, transform_indices = @transform_1, window_bounds = array<i64: 3, 64>}, {pipeline_mode = #tpu.pipeline_mode<synchronous>, transform_indices = @transform_2, window_bounds = array<i64: 1, 64>}, {pipeline_mode = #tpu.pipeline_mode<synchronous>, transform_indices = @transform_3, window_bounds = array<i64: 8, 64>}, {pipeline_mode = #tpu.pipeline_mode<synchronous>, transform_indices = @transform_4, window_bounds = array<i64: 6, 1, 64>}, {pipeline_mode = #tpu.pipeline_mode<synchronous>, transform_indices = @transform_5, window_bounds = array<i64: 6, 1, 64>}, {pipeline_mode = #tpu.pipeline_mode<synchronous>, transform_indices = @transform_6, window_bounds = array<i64: 6, 64, 192>}, {pipeline_mode = #tpu.pipeline_mode<synchronous>, transform_indices = @transform_7, window_bounds = array<i64: 6, 1, 192>}, {pipeline_mode = #tpu.pipeline_mode<synchronous>, transform_indices = @transform_8, window_bounds = array<i64: 6, 64, 64>}, {pipeline_mode = #tpu.pipeline_mode<synchronous>, transform_indices = @transform_9, window_bounds = array<i64: 6, 1, 64>}, {pipeline_mode = #tpu.pipeline_mode<synchronous>, transform_indices = @transform_10, window_bounds = array<i64: 6, 1, 64>}, {pipeline_mode = #tpu.pipeline_mode<synchronous>, transform_indices = @transform_11, window_bounds = array<i64: 6, 1, 64>}, {pipeline_mode = #tpu.pipeline_mode<synchronous>, transform_indices = @transform_12, window_bounds = array<i64: 6, 64, 256>}, {pipeline_mode = #tpu.pipeline_mode<synchronous>, transform_indices = @transform_13, window_bounds = array<i64: 6, 1, 256>}, {pipeline_mode = #tpu.pipeline_mode<synchronous>, transform_indices = @transform_14, window_bounds = array<i64: 6, 256, 64>}, {pipeline_mode = #tpu.pipeline_mode<synchronous>, transform_indices = @transform_15, window_bounds = array<i64: 6, 1, 64>}, {pipeline_mode = #tpu.pipeline_mode<synchronous>, transform_indices = @transform_16, window_bounds = array<i64: 1, 64>}, {pipeline_mode = #tpu.pipeline_mode<synchronous>, transform_indices = @transform_17, window_bounds = array<i64: 1, 64>}, {pipeline_mode = #tpu.pipeline_mode<synchronous>, transform_indices = @transform_18, window_bounds = array<i64: 64, 128>}, {pipeline_mode = #tpu.pipeline_mode<synchronous>, transform_indices = @transform_19, window_bounds = array<i64: 1, 128>}, {transform_indices = @transform_20, window_bounds = array<i64: 8, 128>}]} {
    %c0 = arith.constant 0 : index
    %c0_0 = arith.constant 0 : index
    %0 = vector.load %arg1[%c0, %c0_0] : memref<8x3xf32, #tpu.memory_space<vmem>>, vector<8x3xf32>
    %c0_1 = arith.constant 0 : index
    %c0_2 = arith.constant 0 : index
    %1 = vector.load %arg2[%c0_1, %c0_2] : memref<3x64xf32, #tpu.memory_space<vmem>>, vector<3x64xf32>
    %c0_3 = arith.constant 0 : index
    %c0_4 = arith.constant 0 : index
    %2 = vector.load %arg3[%c0_3, %c0_4] : memref<1x64xf32, #tpu.memory_space<vmem>>, vector<1x64xf32>
    %c0_5 = arith.constant 0 : index
    %c0_6 = arith.constant 0 : index
    %3 = vector.load %arg4[%c0_5, %c0_6] : memref<8x64xf32, #tpu.memory_space<vmem>>, vector<8x64xf32>
    %4 = vector.broadcast %2 : vector<1x64xf32> to vector<8x64xf32>
    %5 = arith.addf %4, %3 : vector<8x64xf32>
    %6 = vector.extract_strided_slice %0 {offsets = [0, 0], sizes = [8, 1], strides = [1, 1]} : vector<8x3xf32> to vector<8x1xf32>
    %7 = vector.extract_strided_slice %1 {offsets = [0, 0], sizes = [1, 64], strides = [1, 1]} : vector<3x64xf32> to vector<1x64xf32>
    %8 = vector.broadcast %6 : vector<8x1xf32> to vector<8x64xf32>
    %9 = vector.broadcast %7 : vector<1x64xf32> to vector<8x64xf32>
    %10 = arith.mulf %8, %9 : vector<8x64xf32>
    %11 = arith.addf %5, %10 : vector<8x64xf32>
    %12 = vector.extract_strided_slice %0 {offsets = [0, 1], sizes = [8, 1], strides = [1, 1]} : vector<8x3xf32> to vector<8x1xf32>
    %13 = vector.extract_strided_slice %1 {offsets = [1, 0], sizes = [1, 64], strides = [1, 1]} : vector<3x64xf32> to vector<1x64xf32>
    %14 = vector.broadcast %12 : vector<8x1xf32> to vector<8x64xf32>
    %15 = vector.broadcast %13 : vector<1x64xf32> to vector<8x64xf32>
    %16 = arith.mulf %14, %15 : vector<8x64xf32>
    %17 = arith.addf %11, %16 : vector<8x64xf32>
    %18 = vector.extract_strided_slice %0 {offsets = [0, 2], sizes = [8, 1], strides = [1, 1]} : vector<8x3xf32> to vector<8x1xf32>
    %19 = vector.extract_strided_slice %1 {offsets = [2, 0], sizes = [1, 64], strides = [1, 1]} : vector<3x64xf32> to vector<1x64xf32>
    %20 = vector.broadcast %18 : vector<8x1xf32> to vector<8x64xf32>
    %21 = vector.broadcast %19 : vector<1x64xf32> to vector<8x64xf32>
    %22 = arith.mulf %20, %21 : vector<8x64xf32>
    %23 = arith.addf %17, %22 : vector<8x64xf32>
    %24 = tpu.iota {dimensions = array<i32: 0>} : vector<8x8xi32>
    %25 = tpu.iota {dimensions = array<i32: 1>} : vector<8x8xi32>
    %26 = arith.cmpi sge, %24, %25 : vector<8x8xi32>
    %c0_i32 = arith.constant 0 : i32
    %c6_i32 = arith.constant 6 : i32
    %27 = arith.addi %c0_i32, %c6_i32 : i32
    %c1_i32 = arith.constant 1 : i32
    %28 = scf.for %arg22 = %c0_i32 to %27 step %c1_i32 iter_args(%arg23 = %23) -> (vector<8x64xf32>)  : i32 {
      %64 = arith.index_cast %arg22 : i32 to index
      %c0_24 = arith.constant 0 : index
      %c0_25 = arith.constant 0 : index
      %65 = vector.load %arg5[%64, %c0_24, %c0_25] : memref<6x1x64xf32, #tpu.memory_space<vmem>>, vector<1x1x64xf32>
      %66 = vector.shape_cast %65 : vector<1x1x64xf32> to vector<1x64xf32>
      %67 = arith.index_cast %arg22 : i32 to index
      %c0_26 = arith.constant 0 : index
      %c0_27 = arith.constant 0 : index
      %68 = vector.load %arg6[%67, %c0_26, %c0_27] : memref<6x1x64xf32, #tpu.memory_space<vmem>>, vector<1x1x64xf32>
      %69 = vector.shape_cast %68 : vector<1x1x64xf32> to vector<1x64xf32>
      %cst_28 = arith.constant dense<0.000000e+00> : vector<8xf32>
      %70 = vector.multi_reduction <add>, %arg23, %cst_28 [1] : vector<8x64xf32> to vector<8xf32>
      %71 = vector.shape_cast %70 : vector<8xf32> to vector<8x1xf32>
      %cst_29 = arith.constant 6.400000e+01 : f32
      %72 = vector.broadcast %cst_29 : f32 to vector<8x1xf32>
      %73 = arith.divf %71, %72 : vector<8x1xf32>
      %74 = vector.broadcast %73 : vector<8x1xf32> to vector<8x64xf32>
      %75 = arith.subf %arg23, %74 : vector<8x64xf32>
      %76 = arith.mulf %75, %75 : vector<8x64xf32>
      %cst_30 = arith.constant dense<0.000000e+00> : vector<8xf32>
      %77 = vector.multi_reduction <add>, %76, %cst_30 [1] : vector<8x64xf32> to vector<8xf32>
      %78 = vector.shape_cast %77 : vector<8xf32> to vector<8x1xf32>
      %cst_31 = arith.constant 6.400000e+01 : f32
      %79 = vector.broadcast %cst_31 : f32 to vector<8x1xf32>
      %80 = arith.divf %78, %79 : vector<8x1xf32>
      %81 = vector.broadcast %73 : vector<8x1xf32> to vector<8x64xf32>
      %82 = arith.subf %arg23, %81 : vector<8x64xf32>
      %cst_32 = arith.constant 9.99999974E-6 : f32
      %83 = vector.broadcast %cst_32 : f32 to vector<8x1xf32>
      %84 = arith.addf %80, %83 : vector<8x1xf32>
      %85 = math.rsqrt %84 : vector<8x1xf32>
      %86 = vector.broadcast %85 : vector<8x1xf32> to vector<8x64xf32>
      %87 = arith.mulf %82, %86 : vector<8x64xf32>
      %88 = vector.broadcast %66 : vector<1x64xf32> to vector<8x64xf32>
      %89 = arith.mulf %87, %88 : vector<8x64xf32>
      %90 = vector.broadcast %69 : vector<1x64xf32> to vector<8x64xf32>
      %91 = arith.addf %89, %90 : vector<8x64xf32>
      %92 = arith.index_cast %arg22 : i32 to index
      %c0_33 = arith.constant 0 : index
      %c0_34 = arith.constant 0 : index
      %93 = vector.load %arg7[%92, %c0_33, %c0_34] : memref<6x64x192xf32, #tpu.memory_space<vmem>>, vector<1x64x192xf32>
      %94 = vector.shape_cast %93 : vector<1x64x192xf32> to vector<64x192xf32>
      %cst_35 = arith.constant dense<0.000000e+00> : vector<8x192xf32>
      %95 = tpu.matmul %91, %94, %cst_35 {dimension_numbers = #tpu.dot_dimension_numbers<[1], [0], [0], [1], [0, 0, 1, 1], [], []>} : vector<8x64xf32>, vector<64x192xf32>, vector<8x192xf32> -> vector<8x192xf32>
      %96 = arith.index_cast %arg22 : i32 to index
      %c0_36 = arith.constant 0 : index
      %c0_37 = arith.constant 0 : index
      %97 = vector.load %arg8[%96, %c0_36, %c0_37] : memref<6x1x192xf32, #tpu.memory_space<vmem>>, vector<1x1x192xf32>
      %98 = vector.shape_cast %97 : vector<1x1x192xf32> to vector<1x192xf32>
      %99 = vector.broadcast %98 : vector<1x192xf32> to vector<8x192xf32>
      %100 = arith.addf %95, %99 : vector<8x192xf32>
      %101 = arith.index_cast %arg22 : i32 to index
      %c0_38 = arith.constant 0 : index
      %c0_39 = arith.constant 0 : index
      %102 = vector.load %arg9[%101, %c0_38, %c0_39] : memref<6x64x64xf32, #tpu.memory_space<vmem>>, vector<1x64x64xf32>
      %103 = vector.shape_cast %102 : vector<1x64x64xf32> to vector<64x64xf32>
      %cst_40 = arith.constant 0.000000e+00 : f32
      %104 = vector.broadcast %cst_40 : f32 to vector<8x64xf32>
      %105 = vector.extract_strided_slice %100 {offsets = [0, 0], sizes = [8, 8], strides = [1, 1]} : vector<8x192xf32> to vector<8x8xf32>
      %106 = vector.extract_strided_slice %100 {offsets = [0, 64], sizes = [8, 8], strides = [1, 1]} : vector<8x192xf32> to vector<8x8xf32>
      %107 = vector.extract_strided_slice %100 {offsets = [0, 128], sizes = [8, 8], strides = [1, 1]} : vector<8x192xf32> to vector<8x8xf32>
      %cst_41 = arith.constant dense<0.000000e+00> : vector<8x8xf32>
      %108 = tpu.matmul %105, %106, %cst_41 {dimension_numbers = #tpu.dot_dimension_numbers<[1], [1], [0], [0], [0, 0, 1, 0], [], []>} : vector<8x8xf32>, vector<8x8xf32>, vector<8x8xf32> -> vector<8x8xf32>
      %cst_42 = arith.constant 0.353553385 : f32
      %109 = vector.broadcast %cst_42 : f32 to vector<8x8xf32>
      %110 = arith.mulf %108, %109 : vector<8x8xf32>
      %cst_43 = arith.constant -1.000000e+30 : f32
      %111 = vector.broadcast %cst_43 : f32 to vector<8x8xf32>
      %112 = arith.select %26, %110, %111 : vector<8x8xi1>, vector<8x8xf32>
      %cst_44 = arith.constant dense<0xFF800000> : vector<8xf32>
      %113 = vector.multi_reduction <maximumf>, %112, %cst_44 [1] : vector<8x8xf32> to vector<8xf32>
      %114 = vector.shape_cast %113 : vector<8xf32> to vector<8x1xf32>
      %115 = vector.broadcast %114 : vector<8x1xf32> to vector<8x8xf32>
      %116 = arith.subf %112, %115 : vector<8x8xf32>
      %117 = math.exp %116 : vector<8x8xf32>
      %cst_45 = arith.constant dense<0.000000e+00> : vector<8xf32>
      %118 = vector.multi_reduction <add>, %117, %cst_45 [1] : vector<8x8xf32> to vector<8xf32>
      %119 = vector.shape_cast %118 : vector<8xf32> to vector<8x1xf32>
      %120 = vector.broadcast %119 : vector<8x1xf32> to vector<8x8xf32>
      %121 = arith.divf %117, %120 : vector<8x8xf32>
      %cst_46 = arith.constant dense<0.000000e+00> : vector<8x8xf32>
      %122 = tpu.matmul %121, %107, %cst_46 {dimension_numbers = #tpu.dot_dimension_numbers<[1], [0], [0], [1], [0, 0, 1, 1], [], []>} : vector<8x8xf32>, vector<8x8xf32>, vector<8x8xf32> -> vector<8x8xf32>
      %123 = vector.extract_strided_slice %103 {offsets = [0, 0], sizes = [8, 64], strides = [1, 1]} : vector<64x64xf32> to vector<8x64xf32>
      %cst_47 = arith.constant dense<0.000000e+00> : vector<8x64xf32>
      %124 = tpu.matmul %122, %123, %cst_47 {dimension_numbers = #tpu.dot_dimension_numbers<[1], [0], [0], [1], [0, 0, 1, 1], [], []>} : vector<8x8xf32>, vector<8x64xf32>, vector<8x64xf32> -> vector<8x64xf32>
      %125 = arith.addf %104, %124 : vector<8x64xf32>
      %126 = vector.extract_strided_slice %100 {offsets = [0, 8], sizes = [8, 8], strides = [1, 1]} : vector<8x192xf32> to vector<8x8xf32>
      %127 = vector.extract_strided_slice %100 {offsets = [0, 72], sizes = [8, 8], strides = [1, 1]} : vector<8x192xf32> to vector<8x8xf32>
      %128 = vector.extract_strided_slice %100 {offsets = [0, 136], sizes = [8, 8], strides = [1, 1]} : vector<8x192xf32> to vector<8x8xf32>
      %cst_48 = arith.constant dense<0.000000e+00> : vector<8x8xf32>
      %129 = tpu.matmul %126, %127, %cst_48 {dimension_numbers = #tpu.dot_dimension_numbers<[1], [1], [0], [0], [0, 0, 1, 0], [], []>} : vector<8x8xf32>, vector<8x8xf32>, vector<8x8xf32> -> vector<8x8xf32>
      %cst_49 = arith.constant 0.353553385 : f32
      %130 = vector.broadcast %cst_49 : f32 to vector<8x8xf32>
      %131 = arith.mulf %129, %130 : vector<8x8xf32>
      %cst_50 = arith.constant -1.000000e+30 : f32
      %132 = vector.broadcast %cst_50 : f32 to vector<8x8xf32>
      %133 = arith.select %26, %131, %132 : vector<8x8xi1>, vector<8x8xf32>
      %cst_51 = arith.constant dense<0xFF800000> : vector<8xf32>
      %134 = vector.multi_reduction <maximumf>, %133, %cst_51 [1] : vector<8x8xf32> to vector<8xf32>
      %135 = vector.shape_cast %134 : vector<8xf32> to vector<8x1xf32>
      %136 = vector.broadcast %135 : vector<8x1xf32> to vector<8x8xf32>
      %137 = arith.subf %133, %136 : vector<8x8xf32>
      %138 = math.exp %137 : vector<8x8xf32>
      %cst_52 = arith.constant dense<0.000000e+00> : vector<8xf32>
      %139 = vector.multi_reduction <add>, %138, %cst_52 [1] : vector<8x8xf32> to vector<8xf32>
      %140 = vector.shape_cast %139 : vector<8xf32> to vector<8x1xf32>
      %141 = vector.broadcast %140 : vector<8x1xf32> to vector<8x8xf32>
      %142 = arith.divf %138, %141 : vector<8x8xf32>
      %cst_53 = arith.constant dense<0.000000e+00> : vector<8x8xf32>
      %143 = tpu.matmul %142, %128, %cst_53 {dimension_numbers = #tpu.dot_dimension_numbers<[1], [0], [0], [1], [0, 0, 1, 1], [], []>} : vector<8x8xf32>, vector<8x8xf32>, vector<8x8xf32> -> vector<8x8xf32>
      %144 = vector.extract_strided_slice %103 {offsets = [8, 0], sizes = [8, 64], strides = [1, 1]} : vector<64x64xf32> to vector<8x64xf32>
      %cst_54 = arith.constant dense<0.000000e+00> : vector<8x64xf32>
      %145 = tpu.matmul %143, %144, %cst_54 {dimension_numbers = #tpu.dot_dimension_numbers<[1], [0], [0], [1], [0, 0, 1, 1], [], []>} : vector<8x8xf32>, vector<8x64xf32>, vector<8x64xf32> -> vector<8x64xf32>
      %146 = arith.addf %125, %145 : vector<8x64xf32>
      %147 = vector.extract_strided_slice %100 {offsets = [0, 16], sizes = [8, 8], strides = [1, 1]} : vector<8x192xf32> to vector<8x8xf32>
      %148 = vector.extract_strided_slice %100 {offsets = [0, 80], sizes = [8, 8], strides = [1, 1]} : vector<8x192xf32> to vector<8x8xf32>
      %149 = vector.extract_strided_slice %100 {offsets = [0, 144], sizes = [8, 8], strides = [1, 1]} : vector<8x192xf32> to vector<8x8xf32>
      %cst_55 = arith.constant dense<0.000000e+00> : vector<8x8xf32>
      %150 = tpu.matmul %147, %148, %cst_55 {dimension_numbers = #tpu.dot_dimension_numbers<[1], [1], [0], [0], [0, 0, 1, 0], [], []>} : vector<8x8xf32>, vector<8x8xf32>, vector<8x8xf32> -> vector<8x8xf32>
      %cst_56 = arith.constant 0.353553385 : f32
      %151 = vector.broadcast %cst_56 : f32 to vector<8x8xf32>
      %152 = arith.mulf %150, %151 : vector<8x8xf32>
      %cst_57 = arith.constant -1.000000e+30 : f32
      %153 = vector.broadcast %cst_57 : f32 to vector<8x8xf32>
      %154 = arith.select %26, %152, %153 : vector<8x8xi1>, vector<8x8xf32>
      %cst_58 = arith.constant dense<0xFF800000> : vector<8xf32>
      %155 = vector.multi_reduction <maximumf>, %154, %cst_58 [1] : vector<8x8xf32> to vector<8xf32>
      %156 = vector.shape_cast %155 : vector<8xf32> to vector<8x1xf32>
      %157 = vector.broadcast %156 : vector<8x1xf32> to vector<8x8xf32>
      %158 = arith.subf %154, %157 : vector<8x8xf32>
      %159 = math.exp %158 : vector<8x8xf32>
      %cst_59 = arith.constant dense<0.000000e+00> : vector<8xf32>
      %160 = vector.multi_reduction <add>, %159, %cst_59 [1] : vector<8x8xf32> to vector<8xf32>
      %161 = vector.shape_cast %160 : vector<8xf32> to vector<8x1xf32>
      %162 = vector.broadcast %161 : vector<8x1xf32> to vector<8x8xf32>
      %163 = arith.divf %159, %162 : vector<8x8xf32>
      %cst_60 = arith.constant dense<0.000000e+00> : vector<8x8xf32>
      %164 = tpu.matmul %163, %149, %cst_60 {dimension_numbers = #tpu.dot_dimension_numbers<[1], [0], [0], [1], [0, 0, 1, 1], [], []>} : vector<8x8xf32>, vector<8x8xf32>, vector<8x8xf32> -> vector<8x8xf32>
      %165 = vector.extract_strided_slice %103 {offsets = [16, 0], sizes = [8, 64], strides = [1, 1]} : vector<64x64xf32> to vector<8x64xf32>
      %cst_61 = arith.constant dense<0.000000e+00> : vector<8x64xf32>
      %166 = tpu.matmul %164, %165, %cst_61 {dimension_numbers = #tpu.dot_dimension_numbers<[1], [0], [0], [1], [0, 0, 1, 1], [], []>} : vector<8x8xf32>, vector<8x64xf32>, vector<8x64xf32> -> vector<8x64xf32>
      %167 = arith.addf %146, %166 : vector<8x64xf32>
      %168 = vector.extract_strided_slice %100 {offsets = [0, 24], sizes = [8, 8], strides = [1, 1]} : vector<8x192xf32> to vector<8x8xf32>
      %169 = vector.extract_strided_slice %100 {offsets = [0, 88], sizes = [8, 8], strides = [1, 1]} : vector<8x192xf32> to vector<8x8xf32>
      %170 = vector.extract_strided_slice %100 {offsets = [0, 152], sizes = [8, 8], strides = [1, 1]} : vector<8x192xf32> to vector<8x8xf32>
      %cst_62 = arith.constant dense<0.000000e+00> : vector<8x8xf32>
      %171 = tpu.matmul %168, %169, %cst_62 {dimension_numbers = #tpu.dot_dimension_numbers<[1], [1], [0], [0], [0, 0, 1, 0], [], []>} : vector<8x8xf32>, vector<8x8xf32>, vector<8x8xf32> -> vector<8x8xf32>
      %cst_63 = arith.constant 0.353553385 : f32
      %172 = vector.broadcast %cst_63 : f32 to vector<8x8xf32>
      %173 = arith.mulf %171, %172 : vector<8x8xf32>
      %cst_64 = arith.constant -1.000000e+30 : f32
      %174 = vector.broadcast %cst_64 : f32 to vector<8x8xf32>
      %175 = arith.select %26, %173, %174 : vector<8x8xi1>, vector<8x8xf32>
      %cst_65 = arith.constant dense<0xFF800000> : vector<8xf32>
      %176 = vector.multi_reduction <maximumf>, %175, %cst_65 [1] : vector<8x8xf32> to vector<8xf32>
      %177 = vector.shape_cast %176 : vector<8xf32> to vector<8x1xf32>
      %178 = vector.broadcast %177 : vector<8x1xf32> to vector<8x8xf32>
      %179 = arith.subf %175, %178 : vector<8x8xf32>
      %180 = math.exp %179 : vector<8x8xf32>
      %cst_66 = arith.constant dense<0.000000e+00> : vector<8xf32>
      %181 = vector.multi_reduction <add>, %180, %cst_66 [1] : vector<8x8xf32> to vector<8xf32>
      %182 = vector.shape_cast %181 : vector<8xf32> to vector<8x1xf32>
      %183 = vector.broadcast %182 : vector<8x1xf32> to vector<8x8xf32>
      %184 = arith.divf %180, %183 : vector<8x8xf32>
      %cst_67 = arith.constant dense<0.000000e+00> : vector<8x8xf32>
      %185 = tpu.matmul %184, %170, %cst_67 {dimension_numbers = #tpu.dot_dimension_numbers<[1], [0], [0], [1], [0, 0, 1, 1], [], []>} : vector<8x8xf32>, vector<8x8xf32>, vector<8x8xf32> -> vector<8x8xf32>
      %186 = vector.extract_strided_slice %103 {offsets = [24, 0], sizes = [8, 64], strides = [1, 1]} : vector<64x64xf32> to vector<8x64xf32>
      %cst_68 = arith.constant dense<0.000000e+00> : vector<8x64xf32>
      %187 = tpu.matmul %185, %186, %cst_68 {dimension_numbers = #tpu.dot_dimension_numbers<[1], [0], [0], [1], [0, 0, 1, 1], [], []>} : vector<8x8xf32>, vector<8x64xf32>, vector<8x64xf32> -> vector<8x64xf32>
      %188 = arith.addf %167, %187 : vector<8x64xf32>
      %189 = vector.extract_strided_slice %100 {offsets = [0, 32], sizes = [8, 8], strides = [1, 1]} : vector<8x192xf32> to vector<8x8xf32>
      %190 = vector.extract_strided_slice %100 {offsets = [0, 96], sizes = [8, 8], strides = [1, 1]} : vector<8x192xf32> to vector<8x8xf32>
      %191 = vector.extract_strided_slice %100 {offsets = [0, 160], sizes = [8, 8], strides = [1, 1]} : vector<8x192xf32> to vector<8x8xf32>
      %cst_69 = arith.constant dense<0.000000e+00> : vector<8x8xf32>
      %192 = tpu.matmul %189, %190, %cst_69 {dimension_numbers = #tpu.dot_dimension_numbers<[1], [1], [0], [0], [0, 0, 1, 0], [], []>} : vector<8x8xf32>, vector<8x8xf32>, vector<8x8xf32> -> vector<8x8xf32>
      %cst_70 = arith.constant 0.353553385 : f32
      %193 = vector.broadcast %cst_70 : f32 to vector<8x8xf32>
      %194 = arith.mulf %192, %193 : vector<8x8xf32>
      %cst_71 = arith.constant -1.000000e+30 : f32
      %195 = vector.broadcast %cst_71 : f32 to vector<8x8xf32>
      %196 = arith.select %26, %194, %195 : vector<8x8xi1>, vector<8x8xf32>
      %cst_72 = arith.constant dense<0xFF800000> : vector<8xf32>
      %197 = vector.multi_reduction <maximumf>, %196, %cst_72 [1] : vector<8x8xf32> to vector<8xf32>
      %198 = vector.shape_cast %197 : vector<8xf32> to vector<8x1xf32>
      %199 = vector.broadcast %198 : vector<8x1xf32> to vector<8x8xf32>
      %200 = arith.subf %196, %199 : vector<8x8xf32>
      %201 = math.exp %200 : vector<8x8xf32>
      %cst_73 = arith.constant dense<0.000000e+00> : vector<8xf32>
      %202 = vector.multi_reduction <add>, %201, %cst_73 [1] : vector<8x8xf32> to vector<8xf32>
      %203 = vector.shape_cast %202 : vector<8xf32> to vector<8x1xf32>
      %204 = vector.broadcast %203 : vector<8x1xf32> to vector<8x8xf32>
      %205 = arith.divf %201, %204 : vector<8x8xf32>
      %cst_74 = arith.constant dense<0.000000e+00> : vector<8x8xf32>
      %206 = tpu.matmul %205, %191, %cst_74 {dimension_numbers = #tpu.dot_dimension_numbers<[1], [0], [0], [1], [0, 0, 1, 1], [], []>} : vector<8x8xf32>, vector<8x8xf32>, vector<8x8xf32> -> vector<8x8xf32>
      %207 = vector.extract_strided_slice %103 {offsets = [32, 0], sizes = [8, 64], strides = [1, 1]} : vector<64x64xf32> to vector<8x64xf32>
      %cst_75 = arith.constant dense<0.000000e+00> : vector<8x64xf32>
      %208 = tpu.matmul %206, %207, %cst_75 {dimension_numbers = #tpu.dot_dimension_numbers<[1], [0], [0], [1], [0, 0, 1, 1], [], []>} : vector<8x8xf32>, vector<8x64xf32>, vector<8x64xf32> -> vector<8x64xf32>
      %209 = arith.addf %188, %208 : vector<8x64xf32>
      %210 = vector.extract_strided_slice %100 {offsets = [0, 40], sizes = [8, 8], strides = [1, 1]} : vector<8x192xf32> to vector<8x8xf32>
      %211 = vector.extract_strided_slice %100 {offsets = [0, 104], sizes = [8, 8], strides = [1, 1]} : vector<8x192xf32> to vector<8x8xf32>
      %212 = vector.extract_strided_slice %100 {offsets = [0, 168], sizes = [8, 8], strides = [1, 1]} : vector<8x192xf32> to vector<8x8xf32>
      %cst_76 = arith.constant dense<0.000000e+00> : vector<8x8xf32>
      %213 = tpu.matmul %210, %211, %cst_76 {dimension_numbers = #tpu.dot_dimension_numbers<[1], [1], [0], [0], [0, 0, 1, 0], [], []>} : vector<8x8xf32>, vector<8x8xf32>, vector<8x8xf32> -> vector<8x8xf32>
      %cst_77 = arith.constant 0.353553385 : f32
      %214 = vector.broadcast %cst_77 : f32 to vector<8x8xf32>
      %215 = arith.mulf %213, %214 : vector<8x8xf32>
      %cst_78 = arith.constant -1.000000e+30 : f32
      %216 = vector.broadcast %cst_78 : f32 to vector<8x8xf32>
      %217 = arith.select %26, %215, %216 : vector<8x8xi1>, vector<8x8xf32>
      %cst_79 = arith.constant dense<0xFF800000> : vector<8xf32>
      %218 = vector.multi_reduction <maximumf>, %217, %cst_79 [1] : vector<8x8xf32> to vector<8xf32>
      %219 = vector.shape_cast %218 : vector<8xf32> to vector<8x1xf32>
      %220 = vector.broadcast %219 : vector<8x1xf32> to vector<8x8xf32>
      %221 = arith.subf %217, %220 : vector<8x8xf32>
      %222 = math.exp %221 : vector<8x8xf32>
      %cst_80 = arith.constant dense<0.000000e+00> : vector<8xf32>
      %223 = vector.multi_reduction <add>, %222, %cst_80 [1] : vector<8x8xf32> to vector<8xf32>
      %224 = vector.shape_cast %223 : vector<8xf32> to vector<8x1xf32>
      %225 = vector.broadcast %224 : vector<8x1xf32> to vector<8x8xf32>
      %226 = arith.divf %222, %225 : vector<8x8xf32>
      %cst_81 = arith.constant dense<0.000000e+00> : vector<8x8xf32>
      %227 = tpu.matmul %226, %212, %cst_81 {dimension_numbers = #tpu.dot_dimension_numbers<[1], [0], [0], [1], [0, 0, 1, 1], [], []>} : vector<8x8xf32>, vector<8x8xf32>, vector<8x8xf32> -> vector<8x8xf32>
      %228 = vector.extract_strided_slice %103 {offsets = [40, 0], sizes = [8, 64], strides = [1, 1]} : vector<64x64xf32> to vector<8x64xf32>
      %cst_82 = arith.constant dense<0.000000e+00> : vector<8x64xf32>
      %229 = tpu.matmul %227, %228, %cst_82 {dimension_numbers = #tpu.dot_dimension_numbers<[1], [0], [0], [1], [0, 0, 1, 1], [], []>} : vector<8x8xf32>, vector<8x64xf32>, vector<8x64xf32> -> vector<8x64xf32>
      %230 = arith.addf %209, %229 : vector<8x64xf32>
      %231 = vector.extract_strided_slice %100 {offsets = [0, 48], sizes = [8, 8], strides = [1, 1]} : vector<8x192xf32> to vector<8x8xf32>
      %232 = vector.extract_strided_slice %100 {offsets = [0, 112], sizes = [8, 8], strides = [1, 1]} : vector<8x192xf32> to vector<8x8xf32>
      %233 = vector.extract_strided_slice %100 {offsets = [0, 176], sizes = [8, 8], strides = [1, 1]} : vector<8x192xf32> to vector<8x8xf32>
      %cst_83 = arith.constant dense<0.000000e+00> : vector<8x8xf32>
      %234 = tpu.matmul %231, %232, %cst_83 {dimension_numbers = #tpu.dot_dimension_numbers<[1], [1], [0], [0], [0, 0, 1, 0], [], []>} : vector<8x8xf32>, vector<8x8xf32>, vector<8x8xf32> -> vector<8x8xf32>
      %cst_84 = arith.constant 0.353553385 : f32
      %235 = vector.broadcast %cst_84 : f32 to vector<8x8xf32>
      %236 = arith.mulf %234, %235 : vector<8x8xf32>
      %cst_85 = arith.constant -1.000000e+30 : f32
      %237 = vector.broadcast %cst_85 : f32 to vector<8x8xf32>
      %238 = arith.select %26, %236, %237 : vector<8x8xi1>, vector<8x8xf32>
      %cst_86 = arith.constant dense<0xFF800000> : vector<8xf32>
      %239 = vector.multi_reduction <maximumf>, %238, %cst_86 [1] : vector<8x8xf32> to vector<8xf32>
      %240 = vector.shape_cast %239 : vector<8xf32> to vector<8x1xf32>
      %241 = vector.broadcast %240 : vector<8x1xf32> to vector<8x8xf32>
      %242 = arith.subf %238, %241 : vector<8x8xf32>
      %243 = math.exp %242 : vector<8x8xf32>
      %cst_87 = arith.constant dense<0.000000e+00> : vector<8xf32>
      %244 = vector.multi_reduction <add>, %243, %cst_87 [1] : vector<8x8xf32> to vector<8xf32>
      %245 = vector.shape_cast %244 : vector<8xf32> to vector<8x1xf32>
      %246 = vector.broadcast %245 : vector<8x1xf32> to vector<8x8xf32>
      %247 = arith.divf %243, %246 : vector<8x8xf32>
      %cst_88 = arith.constant dense<0.000000e+00> : vector<8x8xf32>
      %248 = tpu.matmul %247, %233, %cst_88 {dimension_numbers = #tpu.dot_dimension_numbers<[1], [0], [0], [1], [0, 0, 1, 1], [], []>} : vector<8x8xf32>, vector<8x8xf32>, vector<8x8xf32> -> vector<8x8xf32>
      %249 = vector.extract_strided_slice %103 {offsets = [48, 0], sizes = [8, 64], strides = [1, 1]} : vector<64x64xf32> to vector<8x64xf32>
      %cst_89 = arith.constant dense<0.000000e+00> : vector<8x64xf32>
      %250 = tpu.matmul %248, %249, %cst_89 {dimension_numbers = #tpu.dot_dimension_numbers<[1], [0], [0], [1], [0, 0, 1, 1], [], []>} : vector<8x8xf32>, vector<8x64xf32>, vector<8x64xf32> -> vector<8x64xf32>
      %251 = arith.addf %230, %250 : vector<8x64xf32>
      %252 = vector.extract_strided_slice %100 {offsets = [0, 56], sizes = [8, 8], strides = [1, 1]} : vector<8x192xf32> to vector<8x8xf32>
      %253 = vector.extract_strided_slice %100 {offsets = [0, 120], sizes = [8, 8], strides = [1, 1]} : vector<8x192xf32> to vector<8x8xf32>
      %254 = vector.extract_strided_slice %100 {offsets = [0, 184], sizes = [8, 8], strides = [1, 1]} : vector<8x192xf32> to vector<8x8xf32>
      %cst_90 = arith.constant dense<0.000000e+00> : vector<8x8xf32>
      %255 = tpu.matmul %252, %253, %cst_90 {dimension_numbers = #tpu.dot_dimension_numbers<[1], [1], [0], [0], [0, 0, 1, 0], [], []>} : vector<8x8xf32>, vector<8x8xf32>, vector<8x8xf32> -> vector<8x8xf32>
      %cst_91 = arith.constant 0.353553385 : f32
      %256 = vector.broadcast %cst_91 : f32 to vector<8x8xf32>
      %257 = arith.mulf %255, %256 : vector<8x8xf32>
      %cst_92 = arith.constant -1.000000e+30 : f32
      %258 = vector.broadcast %cst_92 : f32 to vector<8x8xf32>
      %259 = arith.select %26, %257, %258 : vector<8x8xi1>, vector<8x8xf32>
      %cst_93 = arith.constant dense<0xFF800000> : vector<8xf32>
      %260 = vector.multi_reduction <maximumf>, %259, %cst_93 [1] : vector<8x8xf32> to vector<8xf32>
      %261 = vector.shape_cast %260 : vector<8xf32> to vector<8x1xf32>
      %262 = vector.broadcast %261 : vector<8x1xf32> to vector<8x8xf32>
      %263 = arith.subf %259, %262 : vector<8x8xf32>
      %264 = math.exp %263 : vector<8x8xf32>
      %cst_94 = arith.constant dense<0.000000e+00> : vector<8xf32>
      %265 = vector.multi_reduction <add>, %264, %cst_94 [1] : vector<8x8xf32> to vector<8xf32>
      %266 = vector.shape_cast %265 : vector<8xf32> to vector<8x1xf32>
      %267 = vector.broadcast %266 : vector<8x1xf32> to vector<8x8xf32>
      %268 = arith.divf %264, %267 : vector<8x8xf32>
      %cst_95 = arith.constant dense<0.000000e+00> : vector<8x8xf32>
      %269 = tpu.matmul %268, %254, %cst_95 {dimension_numbers = #tpu.dot_dimension_numbers<[1], [0], [0], [1], [0, 0, 1, 1], [], []>} : vector<8x8xf32>, vector<8x8xf32>, vector<8x8xf32> -> vector<8x8xf32>
      %270 = vector.extract_strided_slice %103 {offsets = [56, 0], sizes = [8, 64], strides = [1, 1]} : vector<64x64xf32> to vector<8x64xf32>
      %cst_96 = arith.constant dense<0.000000e+00> : vector<8x64xf32>
      %271 = tpu.matmul %269, %270, %cst_96 {dimension_numbers = #tpu.dot_dimension_numbers<[1], [0], [0], [1], [0, 0, 1, 1], [], []>} : vector<8x8xf32>, vector<8x64xf32>, vector<8x64xf32> -> vector<8x64xf32>
      %272 = arith.addf %251, %271 : vector<8x64xf32>
      %273 = arith.addf %arg23, %272 : vector<8x64xf32>
      %274 = arith.index_cast %arg22 : i32 to index
      %c0_97 = arith.constant 0 : index
      %c0_98 = arith.constant 0 : index
      %275 = vector.load %arg10[%274, %c0_97, %c0_98] : memref<6x1x64xf32, #tpu.memory_space<vmem>>, vector<1x1x64xf32>
      %276 = vector.shape_cast %275 : vector<1x1x64xf32> to vector<1x64xf32>
      %277 = vector.broadcast %276 : vector<1x64xf32> to vector<8x64xf32>
      %278 = arith.addf %273, %277 : vector<8x64xf32>
      %279 = arith.index_cast %arg22 : i32 to index
      %c0_99 = arith.constant 0 : index
      %c0_100 = arith.constant 0 : index
      %280 = vector.load %arg11[%279, %c0_99, %c0_100] : memref<6x1x64xf32, #tpu.memory_space<vmem>>, vector<1x1x64xf32>
      %281 = vector.shape_cast %280 : vector<1x1x64xf32> to vector<1x64xf32>
      %282 = arith.index_cast %arg22 : i32 to index
      %c0_101 = arith.constant 0 : index
      %c0_102 = arith.constant 0 : index
      %283 = vector.load %arg12[%282, %c0_101, %c0_102] : memref<6x1x64xf32, #tpu.memory_space<vmem>>, vector<1x1x64xf32>
      %284 = vector.shape_cast %283 : vector<1x1x64xf32> to vector<1x64xf32>
      %cst_103 = arith.constant dense<0.000000e+00> : vector<8xf32>
      %285 = vector.multi_reduction <add>, %278, %cst_103 [1] : vector<8x64xf32> to vector<8xf32>
      %286 = vector.shape_cast %285 : vector<8xf32> to vector<8x1xf32>
      %cst_104 = arith.constant 6.400000e+01 : f32
      %287 = vector.broadcast %cst_104 : f32 to vector<8x1xf32>
      %288 = arith.divf %286, %287 : vector<8x1xf32>
      %289 = vector.broadcast %288 : vector<8x1xf32> to vector<8x64xf32>
      %290 = arith.subf %278, %289 : vector<8x64xf32>
      %291 = arith.mulf %290, %290 : vector<8x64xf32>
      %cst_105 = arith.constant dense<0.000000e+00> : vector<8xf32>
      %292 = vector.multi_reduction <add>, %291, %cst_105 [1] : vector<8x64xf32> to vector<8xf32>
      %293 = vector.shape_cast %292 : vector<8xf32> to vector<8x1xf32>
      %cst_106 = arith.constant 6.400000e+01 : f32
      %294 = vector.broadcast %cst_106 : f32 to vector<8x1xf32>
      %295 = arith.divf %293, %294 : vector<8x1xf32>
      %296 = vector.broadcast %288 : vector<8x1xf32> to vector<8x64xf32>
      %297 = arith.subf %278, %296 : vector<8x64xf32>
      %cst_107 = arith.constant 9.99999974E-6 : f32
      %298 = vector.broadcast %cst_107 : f32 to vector<8x1xf32>
      %299 = arith.addf %295, %298 : vector<8x1xf32>
      %300 = math.rsqrt %299 : vector<8x1xf32>
      %301 = vector.broadcast %300 : vector<8x1xf32> to vector<8x64xf32>
      %302 = arith.mulf %297, %301 : vector<8x64xf32>
      %303 = vector.broadcast %281 : vector<1x64xf32> to vector<8x64xf32>
      %304 = arith.mulf %302, %303 : vector<8x64xf32>
      %305 = vector.broadcast %284 : vector<1x64xf32> to vector<8x64xf32>
      %306 = arith.addf %304, %305 : vector<8x64xf32>
      %307 = arith.index_cast %arg22 : i32 to index
      %c0_108 = arith.constant 0 : index
      %c0_109 = arith.constant 0 : index
      %308 = vector.load %arg13[%307, %c0_108, %c0_109] : memref<6x64x256xf32, #tpu.memory_space<vmem>>, vector<1x64x256xf32>
      %309 = vector.shape_cast %308 : vector<1x64x256xf32> to vector<64x256xf32>
      %cst_110 = arith.constant dense<0.000000e+00> : vector<8x256xf32>
      %310 = tpu.matmul %306, %309, %cst_110 {dimension_numbers = #tpu.dot_dimension_numbers<[1], [0], [0], [1], [0, 0, 1, 1], [], []>} : vector<8x64xf32>, vector<64x256xf32>, vector<8x256xf32> -> vector<8x256xf32>
      %311 = arith.index_cast %arg22 : i32 to index
      %c0_111 = arith.constant 0 : index
      %c0_112 = arith.constant 0 : index
      %312 = vector.load %arg14[%311, %c0_111, %c0_112] : memref<6x1x256xf32, #tpu.memory_space<vmem>>, vector<1x1x256xf32>
      %313 = vector.shape_cast %312 : vector<1x1x256xf32> to vector<1x256xf32>
      %314 = vector.broadcast %313 : vector<1x256xf32> to vector<8x256xf32>
      %315 = arith.addf %310, %314 : vector<8x256xf32>
      %cst_113 = arith.constant 5.000000e-01 : f32
      %316 = vector.broadcast %cst_113 : f32 to vector<8x256xf32>
      %317 = arith.mulf %316, %315 : vector<8x256xf32>
      %cst_114 = arith.constant 4.471500e-02 : f32
      %318 = vector.broadcast %cst_114 : f32 to vector<8x256xf32>
      %319 = arith.mulf %318, %315 : vector<8x256xf32>
      %320 = arith.mulf %319, %315 : vector<8x256xf32>
      %321 = arith.mulf %320, %315 : vector<8x256xf32>
      %322 = arith.addf %315, %321 : vector<8x256xf32>
      %cst_115 = arith.constant 0.797884583 : f32
      %323 = vector.broadcast %cst_115 : f32 to vector<8x256xf32>
      %324 = arith.mulf %323, %322 : vector<8x256xf32>
      %325 = math.tanh %324 : vector<8x256xf32>
      %cst_116 = arith.constant 1.000000e+00 : f32
      %326 = vector.broadcast %cst_116 : f32 to vector<8x256xf32>
      %327 = arith.addf %326, %325 : vector<8x256xf32>
      %328 = arith.mulf %317, %327 : vector<8x256xf32>
      %329 = arith.index_cast %arg22 : i32 to index
      %c0_117 = arith.constant 0 : index
      %c0_118 = arith.constant 0 : index
      %330 = vector.load %arg15[%329, %c0_117, %c0_118] : memref<6x256x64xf32, #tpu.memory_space<vmem>>, vector<1x256x64xf32>
      %331 = vector.shape_cast %330 : vector<1x256x64xf32> to vector<256x64xf32>
      %cst_119 = arith.constant dense<0.000000e+00> : vector<8x64xf32>
      %332 = tpu.matmul %328, %331, %cst_119 {dimension_numbers = #tpu.dot_dimension_numbers<[1], [0], [0], [1], [0, 0, 1, 1], [], []>} : vector<8x256xf32>, vector<256x64xf32>, vector<8x64xf32> -> vector<8x64xf32>
      %333 = arith.index_cast %arg22 : i32 to index
      %c0_120 = arith.constant 0 : index
      %c0_121 = arith.constant 0 : index
      %334 = vector.load %arg16[%333, %c0_120, %c0_121] : memref<6x1x64xf32, #tpu.memory_space<vmem>>, vector<1x1x64xf32>
      %335 = vector.shape_cast %334 : vector<1x1x64xf32> to vector<1x64xf32>
      %336 = vector.broadcast %335 : vector<1x64xf32> to vector<8x64xf32>
      %337 = arith.addf %332, %336 : vector<8x64xf32>
      %338 = arith.addf %278, %337 : vector<8x64xf32>
      scf.yield %338 : vector<8x64xf32>
    }
    %c6_i32_7 = arith.constant 6 : i32
    %c0_8 = arith.constant 0 : index
    %c0_9 = arith.constant 0 : index
    %29 = vector.load %arg17[%c0_8, %c0_9] : memref<1x64xf32, #tpu.memory_space<vmem>>, vector<1x64xf32>
    %c0_10 = arith.constant 0 : index
    %c0_11 = arith.constant 0 : index
    %30 = vector.load %arg18[%c0_10, %c0_11] : memref<1x64xf32, #tpu.memory_space<vmem>>, vector<1x64xf32>
    %cst = arith.constant dense<0.000000e+00> : vector<8xf32>
    %31 = vector.multi_reduction <add>, %28, %cst [1] : vector<8x64xf32> to vector<8xf32>
    %32 = vector.shape_cast %31 : vector<8xf32> to vector<8x1xf32>
    %cst_12 = arith.constant 6.400000e+01 : f32
    %33 = vector.broadcast %cst_12 : f32 to vector<8x1xf32>
    %34 = arith.divf %32, %33 : vector<8x1xf32>
    %35 = vector.broadcast %34 : vector<8x1xf32> to vector<8x64xf32>
    %36 = arith.subf %28, %35 : vector<8x64xf32>
    %37 = arith.mulf %36, %36 : vector<8x64xf32>
    %cst_13 = arith.constant dense<0.000000e+00> : vector<8xf32>
    %38 = vector.multi_reduction <add>, %37, %cst_13 [1] : vector<8x64xf32> to vector<8xf32>
    %39 = vector.shape_cast %38 : vector<8xf32> to vector<8x1xf32>
    %cst_14 = arith.constant 6.400000e+01 : f32
    %40 = vector.broadcast %cst_14 : f32 to vector<8x1xf32>
    %41 = arith.divf %39, %40 : vector<8x1xf32>
    %42 = vector.broadcast %34 : vector<8x1xf32> to vector<8x64xf32>
    %43 = arith.subf %28, %42 : vector<8x64xf32>
    %cst_15 = arith.constant 9.99999974E-6 : f32
    %44 = vector.broadcast %cst_15 : f32 to vector<8x1xf32>
    %45 = arith.addf %41, %44 : vector<8x1xf32>
    %46 = math.rsqrt %45 : vector<8x1xf32>
    %47 = vector.broadcast %46 : vector<8x1xf32> to vector<8x64xf32>
    %48 = arith.mulf %43, %47 : vector<8x64xf32>
    %49 = vector.broadcast %29 : vector<1x64xf32> to vector<8x64xf32>
    %50 = arith.mulf %48, %49 : vector<8x64xf32>
    %51 = vector.broadcast %30 : vector<1x64xf32> to vector<8x64xf32>
    %52 = arith.addf %50, %51 : vector<8x64xf32>
    %c0_16 = arith.constant 0 : index
    %c0_17 = arith.constant 0 : index
    %53 = vector.load %arg19[%c0_16, %c0_17] : memref<64x128xf32, #tpu.memory_space<vmem>>, vector<64x128xf32>
    %cst_18 = arith.constant dense<0.000000e+00> : vector<8x128xf32>
    %54 = tpu.matmul %52, %53, %cst_18 {dimension_numbers = #tpu.dot_dimension_numbers<[1], [0], [0], [1], [0, 0, 1, 1], [], []>} : vector<8x64xf32>, vector<64x128xf32>, vector<8x128xf32> -> vector<8x128xf32>
    %c0_19 = arith.constant 0 : index
    %c0_20 = arith.constant 0 : index
    %55 = vector.load %arg20[%c0_19, %c0_20] : memref<1x128xf32, #tpu.memory_space<vmem>>, vector<1x128xf32>
    %56 = vector.broadcast %55 : vector<1x128xf32> to vector<8x128xf32>
    %57 = arith.addf %54, %56 : vector<8x128xf32>
    %58 = arith.negf %57 : vector<8x128xf32>
    %59 = math.exp %58 : vector<8x128xf32>
    %cst_21 = arith.constant 1.000000e+00 : f32
    %60 = vector.broadcast %cst_21 : f32 to vector<8x128xf32>
    %61 = arith.addf %60, %59 : vector<8x128xf32>
    %62 = arith.divf %60, %61 : vector<8x128xf32>
    %c0_22 = arith.constant 0 : index
    %c0_23 = arith.constant 0 : index
    %63 = vector.load %arg21[%c0_22, %c0_23] : memref<8x128xf32, #tpu.memory_space<vmem>>, vector<8x128xf32>
    tpu.vector_store %arg21[%c0_22, %c0_23], %62 {strides = array<i32>} : memref<8x128xf32, #tpu.memory_space<vmem>>, vector<8x128xf32>,
    return
  }
  func.func @transform_0(%arg0: i32) -> (i32, i32) {
    %c0_i32 = arith.constant 0 : i32
    %c0_i32_0 = arith.constant 0 : i32
    return %arg0, %c0_i32 : i32, i32
  }
  func.func @transform_1(%arg0: i32) -> (i32, i32) {
    %c0_i32 = arith.constant 0 : i32
    %c0_i32_0 = arith.constant 0 : i32
    %c0_i32_1 = arith.constant 0 : i32
    return %c0_i32, %c0_i32_0 : i32, i32
  }
  func.func @transform_2(%arg0: i32) -> (i32, i32) {
    %c0_i32 = arith.constant 0 : i32
    %c0_i32_0 = arith.constant 0 : i32
    %c0_i32_1 = arith.constant 0 : i32
    return %c0_i32, %c0_i32_0 : i32, i32
  }
  func.func @transform_3(%arg0: i32) -> (i32, i32) {
    %c0_i32 = arith.constant 0 : i32
    %c0_i32_0 = arith.constant 0 : i32
    %c0_i32_1 = arith.constant 0 : i32
    return %c0_i32, %c0_i32_0 : i32, i32
  }
  func.func @transform_4(%arg0: i32) -> (i32, i32, i32) {
    %c0_i32 = arith.constant 0 : i32
    %c0_i32_0 = arith.constant 0 : i32
    %c0_i32_1 = arith.constant 0 : i32
    %c0_i32_2 = arith.constant 0 : i32
    return %c0_i32, %c0_i32_0, %c0_i32_1 : i32, i32, i32
  }
  func.func @transform_5(%arg0: i32) -> (i32, i32, i32) {
    %c0_i32 = arith.constant 0 : i32
    %c0_i32_0 = arith.constant 0 : i32
    %c0_i32_1 = arith.constant 0 : i32
    %c0_i32_2 = arith.constant 0 : i32
    return %c0_i32, %c0_i32_0, %c0_i32_1 : i32, i32, i32
  }
  func.func @transform_6(%arg0: i32) -> (i32, i32, i32) {
    %c0_i32 = arith.constant 0 : i32
    %c0_i32_0 = arith.constant 0 : i32
    %c0_i32_1 = arith.constant 0 : i32
    %c0_i32_2 = arith.constant 0 : i32
    return %c0_i32, %c0_i32_0, %c0_i32_1 : i32, i32, i32
  }
  func.func @transform_7(%arg0: i32) -> (i32, i32, i32) {
    %c0_i32 = arith.constant 0 : i32
    %c0_i32_0 = arith.constant 0 : i32
    %c0_i32_1 = arith.constant 0 : i32
    %c0_i32_2 = arith.constant 0 : i32
    return %c0_i32, %c0_i32_0, %c0_i32_1 : i32, i32, i32
  }
  func.func @transform_8(%arg0: i32) -> (i32, i32, i32) {
    %c0_i32 = arith.constant 0 : i32
    %c0_i32_0 = arith.constant 0 : i32
    %c0_i32_1 = arith.constant 0 : i32
    %c0_i32_2 = arith.constant 0 : i32
    return %c0_i32, %c0_i32_0, %c0_i32_1 : i32, i32, i32
  }
  func.func @transform_9(%arg0: i32) -> (i32, i32, i32) {
    %c0_i32 = arith.constant 0 : i32
    %c0_i32_0 = arith.constant 0 : i32
    %c0_i32_1 = arith.constant 0 : i32
    %c0_i32_2 = arith.constant 0 : i32
    return %c0_i32, %c0_i32_0, %c0_i32_1 : i32, i32, i32
  }
  func.func @transform_10(%arg0: i32) -> (i32, i32, i32) {
    %c0_i32 = arith.constant 0 : i32
    %c0_i32_0 = arith.constant 0 : i32
    %c0_i32_1 = arith.constant 0 : i32
    %c0_i32_2 = arith.constant 0 : i32
    return %c0_i32, %c0_i32_0, %c0_i32_1 : i32, i32, i32
  }
  func.func @transform_11(%arg0: i32) -> (i32, i32, i32) {
    %c0_i32 = arith.constant 0 : i32
    %c0_i32_0 = arith.constant 0 : i32
    %c0_i32_1 = arith.constant 0 : i32
    %c0_i32_2 = arith.constant 0 : i32
    return %c0_i32, %c0_i32_0, %c0_i32_1 : i32, i32, i32
  }
  func.func @transform_12(%arg0: i32) -> (i32, i32, i32) {
    %c0_i32 = arith.constant 0 : i32
    %c0_i32_0 = arith.constant 0 : i32
    %c0_i32_1 = arith.constant 0 : i32
    %c0_i32_2 = arith.constant 0 : i32
    return %c0_i32, %c0_i32_0, %c0_i32_1 : i32, i32, i32
  }
  func.func @transform_13(%arg0: i32) -> (i32, i32, i32) {
    %c0_i32 = arith.constant 0 : i32
    %c0_i32_0 = arith.constant 0 : i32
    %c0_i32_1 = arith.constant 0 : i32
    %c0_i32_2 = arith.constant 0 : i32
    return %c0_i32, %c0_i32_0, %c0_i32_1 : i32, i32, i32
  }
  func.func @transform_14(%arg0: i32) -> (i32, i32, i32) {
    %c0_i32 = arith.constant 0 : i32
    %c0_i32_0 = arith.constant 0 : i32
    %c0_i32_1 = arith.constant 0 : i32
    %c0_i32_2 = arith.constant 0 : i32
    return %c0_i32, %c0_i32_0, %c0_i32_1 : i32, i32, i32
  }
  func.func @transform_15(%arg0: i32) -> (i32, i32, i32) {
    %c0_i32 = arith.constant 0 : i32
    %c0_i32_0 = arith.constant 0 : i32
    %c0_i32_1 = arith.constant 0 : i32
    %c0_i32_2 = arith.constant 0 : i32
    return %c0_i32, %c0_i32_0, %c0_i32_1 : i32, i32, i32
  }
  func.func @transform_16(%arg0: i32) -> (i32, i32) {
    %c0_i32 = arith.constant 0 : i32
    %c0_i32_0 = arith.constant 0 : i32
    %c0_i32_1 = arith.constant 0 : i32
    return %c0_i32, %c0_i32_0 : i32, i32
  }
  func.func @transform_17(%arg0: i32) -> (i32, i32) {
    %c0_i32 = arith.constant 0 : i32
    %c0_i32_0 = arith.constant 0 : i32
    %c0_i32_1 = arith.constant 0 : i32
    return %c0_i32, %c0_i32_0 : i32, i32
  }
  func.func @transform_18(%arg0: i32) -> (i32, i32) {
    %c0_i32 = arith.constant 0 : i32
    %c0_i32_0 = arith.constant 0 : i32
    %c0_i32_1 = arith.constant 0 : i32
    return %c0_i32, %c0_i32_0 : i32, i32
  }
  func.func @transform_19(%arg0: i32) -> (i32, i32) {
    %c0_i32 = arith.constant 0 : i32
    %c0_i32_0 = arith.constant 0 : i32
    %c0_i32_1 = arith.constant 0 : i32
    return %c0_i32, %c0_i32_0 : i32, i32
  }
  func.func @transform_20(%arg0: i32) -> (i32, i32) {
    %c0_i32 = arith.constant 0 : i32
    %c0_i32_0 = arith.constant 0 : i32
    return %arg0, %c0_i32 : i32, i32
  }
}

</mosaic_0001>

<llo_original>
// kernel: forward.1
$region0: #{forward.1}
  #allocation0 [shape = 'u32[]', space=smem, size = 0x4, offset = 0x4, fixed_abs, tag = 'smem constant byte address 0x4 - core index']
  #allocation1 [shape = 'u32[144,128]{1,0:T(1,128)}', space=vmem, size = 0x12000, scoped, tag = 'internal scratch']
  %s0 = inlined_call_operand.vmem [shape: f32[16,3], index: 0, kind: input, shape index: {}]
  %s1 = inlined_call_operand.vmem [shape: f32[3,64], index: 1, kind: input, shape index: {}]
  %s2 = inlined_call_operand.vmem [shape: f32[1,64], index: 2, kind: input, shape index: {}]
  %s3 = inlined_call_operand.vmem [shape: f32[8,64], index: 3, kind: input, shape index: {}]
  %s4 = inlined_call_operand.vmem [shape: f32[6,1,64], index: 4, kind: input, shape index: {}]
  %s5 = inlined_call_operand.vmem [shape: f32[6,1,64], index: 5, kind: input, shape index: {}]
  %s6 = inlined_call_operand.vmem [shape: f32[6,64,192], index: 6, kind: input, shape index: {}]
  %s7 = inlined_call_operand.vmem [shape: f32[6,1,192], index: 7, kind: input, shape index: {}]
  %s8 = inlined_call_operand.vmem [shape: f32[6,64,64], index: 8, kind: input, shape index: {}]
  %s9 = inlined_call_operand.vmem [shape: f32[6,1,64], index: 9, kind: input, shape index: {}]
  %s10 = inlined_call_operand.vmem [shape: f32[6,1,64], index: 10, kind: input, shape index: {}]
  %s11 = inlined_call_operand.vmem [shape: f32[6,1,64], index: 11, kind: input, shape index: {}]
  %s12 = inlined_call_operand.vmem [shape: f32[6,64,256], index: 12, kind: input, shape index: {}]
  %s13 = inlined_call_operand.vmem [shape: f32[6,1,256], index: 13, kind: input, shape index: {}]
  %s14 = inlined_call_operand.vmem [shape: f32[6,256,64], index: 14, kind: input, shape index: {}]
  %s15 = inlined_call_operand.vmem [shape: f32[6,1,64], index: 15, kind: input, shape index: {}]
  %s16 = inlined_call_operand.vmem [shape: f32[1,64], index: 16, kind: input, shape index: {}]
  %s17 = inlined_call_operand.vmem [shape: f32[1,64], index: 17, kind: input, shape index: {}]
  %s18 = inlined_call_operand.vmem [shape: f32[64,128], index: 18, kind: input, shape index: {}]
  %s19 = inlined_call_operand.vmem [shape: f32[1,128], index: 19, kind: input, shape index: {}]
  %s20 = inlined_call_operand.vmem [shape: f32[16,128], index: 20, kind: output, shape index: {}]
  %s21 = sld [smem:[#allocation0]]
  $region120: #{forward.1} parent=0
    _
  %s23 = ssub.s32 1, %s21
  %s24 = scalar_select 0, %s23, %s21
  loop: start=0, step=1, limit=4
  $region2: #{forward.1} parent=0 // loop_pre_header
    _
  $region3: #{forward.1} parent=0 // loop_header
    %s26 = sphi 0, %s30
    %p27 = scmp.ge.s32.totalorder %s26, 4
    %s36 = sphi 0, %s38
    %s39 = sphi 0, %s36
    %s40 = sphi 0, %s39
    %s56 = sphi 0, %s40
    %s60 = sphi 0, %s60
    %s62 = sphi 0, %s60
    %s63 = sphi 0, %s62
    %s77 = sphi 0, %s63
    %s81 = sphi 0, %s81
    %s83 = sphi 0, %s81
    %s84 = sphi 0, %s83
    %s98 = sphi 0, %s84
    %s102 = sphi 0, %s102
    %s104 = sphi 0, %s102
    %s105 = sphi 0, %s104
    %s119 = sphi 0, %s105
    %s123 = sphi 0, %s123
    %s125 = sphi 0, %s123
    %s126 = sphi 0, %s125
    %s140 = sphi 0, %s126
    %s144 = sphi 0, %s144
    %s146 = sphi 0, %s144
    %s147 = sphi 0, %s146
    %s161 = sphi 0, %s147
    %s165 = sphi 0, %s165
    %s167 = sphi 0, %s165
    %s168 = sphi 0, %s167
    %s182 = sphi 0, %s168
    %s186 = sphi 0, %s186
    %s188 = sphi 0, %s186
    %s189 = sphi 0, %s188
    %s203 = sphi 0, %s189
    %s207 = sphi 0, %s207
    %s209 = sphi 0, %s207
    %s210 = sphi 0, %s209
    %s224 = sphi 0, %s210
    %s228 = sphi 0, %s228
    %s230 = sphi 0, %s228
    %s231 = sphi 0, %s230
    %s245 = sphi 0, %s231
    %s249 = sphi 0, %s249
    %s251 = sphi 0, %s249
    %s252 = sphi 0, %s251
    %s266 = sphi 0, %s252
    %s270 = sphi 0, %s270
    %s272 = sphi 0, %s270
    %s273 = sphi 0, %s272
    %s287 = sphi 0, %s273
    %s291 = sphi 0, %s291
    %s293 = sphi 0, %s291
    %s294 = sphi 0, %s293
    %s308 = sphi 0, %s294
    %s312 = sphi 0, %s312
    %s314 = sphi 0, %s312
    %s315 = sphi 0, %s314
    %s329 = sphi 0, %s315
    %s333 = sphi 0, %s333
    %s335 = sphi 0, %s333
    %s336 = sphi 0, %s335
    %s350 = sphi 0, %s336
    %s354 = sphi 0, %s354
    %s356 = sphi 0, %s354
    %s357 = sphi 0, %s356
    %s371 = sphi 0, %s357
    %s375 = sphi 0, %s375
    %s377 = sphi 0, %s375
    %s378 = sphi 0, %s377
    %s392 = sphi 0, %s378
    %s396 = sphi 0, %s396
    %s398 = sphi 0, %s396
    %s399 = sphi 0, %s398
    %s413 = sphi 0, %s399
    %s417 = sphi 0, %s417
    %s419 = sphi 0, %s417
    %s420 = sphi 0, %s419
    %s434 = sphi 0, %s420
    %s438 = sphi 0, %s438
    %s440 = sphi 0, %s438
    %s441 = sphi 0, %s440
    %s455 = sphi 0, %s441
    %s461 = sphi 0, %s463
    %s464 = sphi 0, %s461
    %s465 = sphi 0, %s464
    %s481 = sphi 0, %s465
  $region4: #{forward.1} parent=0 // loop_header_branch
    %29 = sbr.rel (%p27) target = $region8
  $region5: #{forward.1} parent=0 // loop_body
    %s31 = ssub.s32 %s26, 1
    %s32 = ssub.s32 %s26, 2
    %s33 = sadd.s32 %s26, 1
    %s34 = ssub.s32 %s26, %s33
    %p35 = scmp.eq.s32.totalorder %s34, 0
    %s37 = sadd.s32 %s36, 1
    %s38 = scalar_select %p35, %s36, %s37
    %p41 = pneg %p35
    %p42 = scmp.eq.s32.totalorder %s26, 1
    %p43 = por %p41, %p42
    %p44 = scmp.ne.s32.totalorder %s36, %s39
    %p45 = scmp.eq.s32.totalorder %s26, 0
    %p46 = por %p44, %p45
    %p47 = scmp.ne.s32.totalorder %s36, %s39
    %p48 = scmp.eq.s32.totalorder %s31, 1
    %p49 = por %p47, %p48
    %p50 = scmp.ne.s32.totalorder %s39, %s40
    %p51 = scmp.eq.s32.totalorder %s31, 0
    %p52 = por %p50, %p51
    %p53 = scmp.ne.s32.totalorder %s39, %s40
    %p54 = scmp.eq.s32.totalorder %s32, 1
    %p55 = por %p53, %p54
    %p57 = scmp.ne.s32.totalorder %s40, %s56
    %p58 = scmp.eq.s32.totalorder %s32, 0
    %p59 = por %p57, %p58
    %s61 = sadd.s32 %s60, 1
    %p64 = scmp.eq.s32.totalorder %s26, 1
    %p65 = scmp.ne.s32.totalorder %s60, %s62
    %p66 = scmp.eq.s32.totalorder %s26, 0
    %p67 = por %p65, %p66
    %p68 = scmp.ne.s32.totalorder %s60, %s62
    %p69 = scmp.eq.s32.totalorder %s31, 1
    %p70 = por %p68, %p69
    %p71 = scmp.ne.s32.totalorder %s62, %s63
    %p72 = scmp.eq.s32.totalorder %s31, 0
    %p73 = por %p71, %p72
    %p74 = scmp.ne.s32.totalorder %s62, %s63
    %p75 = scmp.eq.s32.totalorder %s32, 1
    %p76 = por %p74, %p75
    %p78 = scmp.ne.s32.totalorder %s63, %s77
    %p79 = scmp.eq.s32.totalorder %s32, 0
    %p80 = por %p78, %p79
    %s82 = sadd.s32 %s81, 1
    %p85 = scmp.eq.s32.totalorder %s26, 1
    %p86 = scmp.ne.s32.totalorder %s81, %s83
    %p87 = scmp.eq.s32.totalorder %s26, 0
    %p88 = por %p86, %p87
    %p89 = scmp.ne.s32.totalorder %s81, %s83
    %p90 = scmp.eq.s32.totalorder %s31, 1
    %p91 = por %p89, %p90
    %p92 = scmp.ne.s32.totalorder %s83, %s84
    %p93 = scmp.eq.s32.totalorder %s31, 0
    %p94 = por %p92, %p93
    %p95 = scmp.ne.s32.totalorder %s83, %s84
    %p96 = scmp.eq.s32.totalorder %s32, 1
    %p97 = por %p95, %p96
    %p99 = scmp.ne.s32.totalorder %s84, %s98
    %p100 = scmp.eq.s32.totalorder %s32, 0
    %p101 = por %p99, %p100
    %s103 = sadd.s32 %s102, 1
    %p106 = scmp.eq.s32.totalorder %s26, 1
    %p107 = scmp.ne.s32.totalorder %s102, %s104
    %p108 = scmp.eq.s32.totalorder %s26, 0
    %p109 = por %p107, %p108
    %p110 = scmp.ne.s32.totalorder %s102, %s104
    %p111 = scmp.eq.s32.totalorder %s31, 1
    %p112 = por %p110, %p111
    %p113 = scmp.ne.s32.totalorder %s104, %s105
    %p114 = scmp.eq.s32.totalorder %s31, 0
    %p115 = por %p113, %p114
    %p116 = scmp.ne.s32.totalorder %s104, %s105
    %p117 = scmp.eq.s32.totalorder %s32, 1
    %p118 = por %p116, %p117
    %p120 = scmp.ne.s32.totalorder %s105, %s119
    %p121 = scmp.eq.s32.totalorder %s32, 0
    %p122 = por %p120, %p121
    %s124 = sadd.s32 %s123, 1
    %p127 = scmp.eq.s32.totalorder %s26, 1
    %p128 = scmp.ne.s32.totalorder %s123, %s125
    %p129 = scmp.eq.s32.totalorder %s26, 0
    %p130 = por %p128, %p129
    %p131 = scmp.ne.s32.totalorder %s123, %s125
    %p132 = scmp.eq.s32.totalorder %s31, 1
    %p133 = por %p131, %p132
    %p134 = scmp.ne.s32.totalorder %s125, %s126
    %p135 = scmp.eq.s32.totalorder %s31, 0
    %p136 = por %p134, %p135
    %p137 = scmp.ne.s32.totalorder %s125, %s126
    %p138 = scmp.eq.s32.totalorder %s32, 1
    %p139 = por %p137, %p138
    %p141 = scmp.ne.s32.totalorder %s126, %s140
    %p142 = scmp.eq.s32.totalorder %s32, 0
    %p143 = por %p141, %p142
    %s145 = sadd.s32 %s144, 1
    %p148 = scmp.eq.s32.totalorder %s26, 1
    %p149 = scmp.ne.s32.totalorder %s144, %s146
    %p150 = scmp.eq.s32.totalorder %s26, 0
    %p151 = por %p149, %p150
    %p152 = scmp.ne.s32.totalorder %s144, %s146
    %p153 = scmp.eq.s32.totalorder %s31, 1
    %p154 = por %p152, %p153
    %p155 = scmp.ne.s32.totalorder %s146, %s147
    %p156 = scmp.eq.s32.totalorder %s31, 0
    %p157 = por %p155, %p156
    %p158 = scmp.ne.s32.totalorder %s146, %s147
    %p159 = scmp.eq.s32.totalorder %s32, 1
    %p160 = por %p158, %p159
    %p162 = scmp.ne.s32.totalorder %s147, %s161
    %p163 = scmp.eq.s32.totalorder %s32, 0
    %p164 = por %p162, %p163
    %s166 = sadd.s32 %s165, 1
    %p169 = scmp.eq.s32.totalorder %s26, 1
    %p170 = scmp.ne.s32.totalorder %s165, %s167
    %p171 = scmp.eq.s32.totalorder %s26, 0
    %p172 = por %p170, %p171
    %p173 = scmp.ne.s32.totalorder %s165, %s167
    %p174 = scmp.eq.s32.totalorder %s31, 1
    %p175 = por %p173, %p174
    %p176 = scmp.ne.s32.totalorder %s167, %s168
    %p177 = scmp.eq.s32.totalorder %s31, 0
    %p178 = por %p176, %p177
    %p179 = scmp.ne.s32.totalorder %s167, %s168
    %p180 = scmp.eq.s32.totalorder %s32, 1
    %p181 = por %p179, %p180
    %p183 = scmp.ne.s32.totalorder %s168, %s182
    %p184 = scmp.eq.s32.totalorder %s32, 0
    %p185 = por %p183, %p184
    %s187 = sadd.s32 %s186, 1
    %p190 = scmp.eq.s32.totalorder %s26, 1
    %p191 = scmp.ne.s32.totalorder %s186, %s188
    %p192 = scmp.eq.s32.totalorder %s26, 0
    %p193 = por %p191, %p192
    %p194 = scmp.ne.s32.totalorder %s186, %s188
    %p195 = scmp.eq.s32.totalorder %s31, 1
    %p196 = por %p194, %p195
    %p197 = scmp.ne.s32.totalorder %s188, %s189
    %p198 = scmp.eq.s32.totalorder %s31, 0
    %p199 = por %p197, %p198
    %p200 = scmp.ne.s32.totalorder %s188, %s189
    %p201 = scmp.eq.s32.totalorder %s32, 1
    %p202 = por %p200, %p201
    %p204 = scmp.ne.s32.totalorder %s189, %s203
    %p205 = scmp.eq.s32.totalorder %s32, 0
    %p206 = por %p204, %p205
    %s208 = sadd.s32 %s207, 1
    %p211 = scmp.eq.s32.totalorder %s26, 1
    %p212 = scmp.ne.s32.totalorder %s207, %s209
    %p213 = scmp.eq.s32.totalorder %s26, 0
    %p214 = por %p212, %p213
    %p215 = scmp.ne.s32.totalorder %s207, %s209
    %p216 = scmp.eq.s32.totalorder %s31, 1
    %p217 = por %p215, %p216
    %p218 = scmp.ne.s32.totalorder %s209, %s210
    %p219 = scmp.eq.s32.totalorder %s31, 0
    %p220 = por %p218, %p219
    %p221 = scmp.ne.s32.totalorder %s209, %s210
    %p222 = scmp.eq.s32.totalorder %s32, 1
    %p223 = por %p221, %p222
    %p225 = scmp.ne.s32.totalorder %s210, %s224
    %p226 = scmp.eq.s32.totalorder %s32, 0
    %p227 = por %p225, %p226
    %s229 = sadd.s32 %s228, 1
    %p232 = scmp.eq.s32.totalorder %s26, 1
    %p233 = scmp.ne.s32.totalorder %s228, %s230
    %p234 = scmp.eq.s32.totalorder %s26, 0
    %p235 = por %p233, %p234
    %p236 = scmp.ne.s32.totalorder %s228, %s230
    %p237 = scmp.eq.s32.totalorder %s31, 1
    %p238 = por %p236, %p237
    %p239 = scmp.ne.s32.totalorder %s230, %s231
    %p240 = scmp.eq.s32.totalorder %s31, 0
    %p241 = por %p239, %p240
    %p242 = scmp.ne.s32.totalorder %s230, %s231
    %p243 = scmp.eq.s32.totalorder %s32, 1
    %p244 = por %p242, %p243
    %p246 = scmp.ne.s32.totalorder %s231, %s245
    %p247 = scmp.eq.s32.totalorder %s32, 0
    %p248 = por %p246, %p247
    %s250 = sadd.s32 %s249, 1
    %p253 = scmp.eq.s32.totalorder %s26, 1
    %p254 = scmp.ne.s32.totalorder %s249, %s251
    %p255 = scmp.eq.s32.totalorder %s26, 0
    %p256 = por %p254, %p255
    %p257 = scmp.ne.s32.totalorder %s249, %s251
    %p258 = scmp.eq.s32.totalorder %s31, 1
    %p259 = por %p257, %p258
    %p260 = scmp.ne.s32.totalorder %s251, %s252
    %p261 = scmp.eq.s32.totalorder %s31, 0
    %p262 = por %p260, %p261
    %p263 = scmp.ne.s32.totalorder %s251, %s252
    %p264 = scmp.eq.s32.totalorder %s32, 1
    %p265 = por %p263, %p264
    %p267 = scmp.ne.s32.totalorder %s252, %s266
    %p268 = scmp.eq.s32.totalorder %s32, 0
    %p269 = por %p267, %p268
    %s271 = sadd.s32 %s270, 1
    %p274 = scmp.eq.s32.totalorder %s26, 1
    %p275 = scmp.ne.s32.totalorder %s270, %s272
    %p276 = scmp.eq.s32.totalorder %s26, 0
    %p277 = por %p275, %p276
    %p278 = scmp.ne.s32.totalorder %s270, %s272
    %p279 = scmp.eq.s32.totalorder %s31, 1
    %p280 = por %p278, %p279
    %p281 = scmp.ne.s32.totalorder %s272, %s273
    %p282 = scmp.eq.s32.totalorder %s31, 0
    %p283 = por %p281, %p282
    %p284 = scmp.ne.s32.totalorder %s272, %s273
    %p285 = scmp.eq.s32.totalorder %s32, 1
    %p286 = por %p284, %p285
    %p288 = scmp.ne.s32.totalorder %s273, %s287
    %p289 = scmp.eq.s32.totalorder %s32, 0
    %p290 = por %p288, %p289
    %s292 = sadd.s32 %s291, 1
    %p295 = scmp.eq.s32.totalorder %s26, 1
    %p296 = scmp.ne.s32.totalorder %s291, %s293
    %p297 = scmp.eq.s32.totalorder %s26, 0
    %p298 = por %p296, %p297
    %p299 = scmp.ne.s32.totalorder %s291, %s293
    %p300 = scmp.eq.s32.totalorder %s31, 1
    %p301 = por %p299, %p300
    %p302 = scmp.ne.s32.totalorder %s293, %s294
    %p303 = scmp.eq.s32.totalorder %s31, 0
    %p304 = por %p302, %p303
    %p305 = scmp.ne.s32.totalorder %s293, %s294
    %p306 = scmp.eq.s32.totalorder %s32, 1
    %p307 = por %p305, %p306
    %p309 = scmp.ne.s32.totalorder %s294, %s308
    %p310 = scmp.eq.s32.totalorder %s32, 0
    %p311 = por %p309, %p310
    %s313 = sadd.s32 %s312, 1
    %p316 = scmp.eq.s32.totalorder %s26, 1
    %p317 = scmp.ne.s32.totalorder %s312, %s314
    %p318 = scmp.eq.s32.totalorder %s26, 0
    %p319 = por %p317, %p318
    %p320 = scmp.ne.s32.totalorder %s312, %s314
    %p321 = scmp.eq.s32.totalorder %s31, 1
    %p322 = por %p320, %p321
    %p323 = scmp.ne.s32.totalorder %s314, %s315
    %p324 = scmp.eq.s32.totalorder %s31, 0
    %p325 = por %p323, %p324
    %p326 = scmp.ne.s32.totalorder %s314, %s315
    %p327 = scmp.eq.s32.totalorder %s32, 1
    %p328 = por %p326, %p327
    %p330 = scmp.ne.s32.totalorder %s315, %s329
    %p331 = scmp.eq.s32.totalorder %s32, 0
    %p332 = por %p330, %p331
    %s334 = sadd.s32 %s333, 1
    %p337 = scmp.eq.s32.totalorder %s26, 1
    %p338 = scmp.ne.s32.totalorder %s333, %s335
    %p339 = scmp.eq.s32.totalorder %s26, 0
    %p340 = por %p338, %p339
    %p341 = scmp.ne.s32.totalorder %s333, %s335
    %p342 = scmp.eq.s32.totalorder %s31, 1
    %p343 = por %p341, %p342
    %p344 = scmp.ne.s32.totalorder %s335, %s336
    %p345 = scmp.eq.s32.totalorder %s31, 0
    %p346 = por %p344, %p345
    %p347 = scmp.ne.s32.totalorder %s335, %s336
    %p348 = scmp.eq.s32.totalorder %s32, 1
    %p349 = por %p347, %p348
    %p351 = scmp.ne.s32.totalorder %s336, %s350
    %p352 = scmp.eq.s32.totalorder %s32, 0
    %p353 = por %p351, %p352
    %s355 = sadd.s32 %s354, 1
    %p358 = scmp.eq.s32.totalorder %s26, 1
    %p359 = scmp.ne.s32.totalorder %s354, %s356
    %p360 = scmp.eq.s32.totalorder %s26, 0
    %p361 = por %p359, %p360
    %p362 = scmp.ne.s32.totalorder %s354, %s356
    %p363 = scmp.eq.s32.totalorder %s31, 1
    %p364 = por %p362, %p363
    %p365 = scmp.ne.s32.totalorder %s356, %s357
    %p366 = scmp.eq.s32.totalorder %s31, 0
    %p367 = por %p365, %p366
    %p368 = scmp.ne.s32.totalorder %s356, %s357
    %p369 = scmp.eq.s32.totalorder %s32, 1
    %p370 = por %p368, %p369
    %p372 = scmp.ne.s32.totalorder %s357, %s371
    %p373 = scmp.eq.s32.totalorder %s32, 0
    %p374 = por %p372, %p373
    %s376 = sadd.s32 %s375, 1
    %p379 = scmp.eq.s32.totalorder %s26, 1
    %p380 = scmp.ne.s32.totalorder %s375, %s377
    %p381 = scmp.eq.s32.totalorder %s26, 0
    %p382 = por %p380, %p381
    %p383 = scmp.ne.s32.totalorder %s375, %s377
    %p384 = scmp.eq.s32.totalorder %s31, 1
    %p385 = por %p383, %p384
    %p386 = scmp.ne.s32.totalorder %s377, %s378
    %p387 = scmp.eq.s32.totalorder %s31, 0
    %p388 = por %p386, %p387
    %p389 = scmp.ne.s32.totalorder %s377, %s378
    %p390 = scmp.eq.s32.totalorder %s32, 1
    %p391 = por %p389, %p390
    %p393 = scmp.ne.s32.totalorder %s378, %s392
    %p394 = scmp.eq.s32.totalorder %s32, 0
    %p395 = por %p393, %p394
    %s397 = sadd.s32 %s396, 1
    %p400 = scmp.eq.s32.totalorder %s26, 1
    %p401 = scmp.ne.s32.totalorder %s396, %s398
    %p402 = scmp.eq.s32.totalorder %s26, 0
    %p403 = por %p401, %p402
    %p404 = scmp.ne.s32.totalorder %s396, %s398
    %p405 = scmp.eq.s32.totalorder %s31, 1
    %p406 = por %p404, %p405
    %p407 = scmp.ne.s32.totalorder %s398, %s399
    %p408 = scmp.eq.s32.totalorder %s31, 0
    %p409 = por %p407, %p408
    %p410 = scmp.ne.s32.totalorder %s398, %s399
    %p411 = scmp.eq.s32.totalorder %s32, 1
    %p412 = por %p410, %p411
    %p414 = scmp.ne.s32.totalorder %s399, %s413
    %p415 = scmp.eq.s32.totalorder %s32, 0
    %p416 = por %p414, %p415
    %s418 = sadd.s32 %s417, 1
    %p421 = scmp.eq.s32.totalorder %s26, 1
    %p422 = scmp.ne.s32.totalorder %s417, %s419
    %p423 = scmp.eq.s32.totalorder %s26, 0
    %p424 = por %p422, %p423
    %p425 = scmp.ne.s32.totalorder %s417, %s419
    %p426 = scmp.eq.s32.totalorder %s31, 1
    %p427 = por %p425, %p426
    %p428 = scmp.ne.s32.totalorder %s419, %s420
    %p429 = scmp.eq.s32.totalorder %s31, 0
    %p430 = por %p428, %p429
    %p431 = scmp.ne.s32.totalorder %s419, %s420
    %p432 = scmp.eq.s32.totalorder %s32, 1
    %p433 = por %p431, %p432
    %p435 = scmp.ne.s32.totalorder %s420, %s434
    %p436 = scmp.eq.s32.totalorder %s32, 0
    %p437 = por %p435, %p436
    %s439 = sadd.s32 %s438, 1
    %p442 = scmp.eq.s32.totalorder %s26, 1
    %p443 = scmp.ne.s32.totalorder %s438, %s440
    %p444 = scmp.eq.s32.totalorder %s26, 0
    %p445 = por %p443, %p444
    %p446 = scmp.ne.s32.totalorder %s438, %s440
    %p447 = scmp.eq.s32.totalorder %s31, 1
    %p448 = por %p446, %p447
    %p449 = scmp.ne.s32.totalorder %s440, %s441
    %p450 = scmp.eq.s32.totalorder %s31, 0
    %p451 = por %p449, %p450
    %p452 = scmp.ne.s32.totalorder %s440, %s441
    %p453 = scmp.eq.s32.totalorder %s32, 1
    %p454 = por %p452, %p453
    %p456 = scmp.ne.s32.totalorder %s441, %s455
    %p457 = scmp.eq.s32.totalorder %s32, 0
    %p458 = por %p456, %p457
    %s459 = ssub.s32 %s26, %s33
    %p460 = scmp.eq.s32.totalorder %s459, 0
    %s462 = sadd.s32 %s461, 1
    %s463 = scalar_select %p460, %s461, %s462
    %p466 = pneg %p460
    %p467 = scmp.eq.s32.totalorder %s26, 1
    %p468 = por %p466, %p467
    %p469 = scmp.ne.s32.totalorder %s461, %s464
    %p470 = scmp.eq.s32.totalorder %s26, 0
    %p471 = por %p469, %p470
    %p472 = scmp.ne.s32.totalorder %s461, %s464
    %p473 = scmp.eq.s32.totalorder %s31, 1
    %p474 = por %p472, %p473
    %p475 = scmp.ne.s32.totalorder %s464, %s465
    %p476 = scmp.eq.s32.totalorder %s31, 0
    %p477 = por %p475, %p476
    %p478 = scmp.ne.s32.totalorder %s464, %s465
    %p479 = scmp.eq.s32.totalorder %s32, 1
    %p480 = por %p478, %p479
    %p482 = scmp.ne.s32.totalorder %s465, %s481
    %p483 = scmp.eq.s32.totalorder %s32, 0
    %p484 = por %p482, %p483
    %p485 = scmp.le.s32.totalorder 1, %s26
    %p486 = scmp.lt.s32.totalorder %s26, 3
    %p487 = pnand %p485, %p486
    %p488 = pneg %p487
    // Predicated region
    $region9: #{forward.1} parent=5 // pred_check
      _
    $region10: #{forward.1} parent=5 // pred_check_branch
      %490 = sbr.rel (%p487) target = $region12
    $region11: #{forward.1} parent=5 // pred_region
      %s491 = ssub.s32 %s26, 1
      // Predicated region
      $region13: #{forward.1} parent=11 // pred_check
        %p492 = pneg %p73
      $region14: #{forward.1} parent=11 // pred_check_branch
        %494 = sbr.rel (%p492) target = $region16
      $region15: #{forward.1} parent=11 // pred_region
        _
      $region16: #{forward.1} parent=11 // pred_fallthru
        _
      // Predicated region
      $region17: #{forward.1} parent=11 // pred_check
        %p495 = pneg %p94
      $region18: #{forward.1} parent=11 // pred_check_branch
        %497 = sbr.rel (%p495) target = $region20
      $region19: #{forward.1} parent=11 // pred_region
        _
      $region20: #{forward.1} parent=11 // pred_fallthru
        _
      // Predicated region
      $region21: #{forward.1} parent=11 // pred_check
        %p498 = pneg %p115
      $region22: #{forward.1} parent=11 // pred_check_branch
        %500 = sbr.rel (%p498) target = $region24
      $region23: #{forward.1} parent=11 // pred_region
        _
      $region24: #{forward.1} parent=11 // pred_fallthru
        _
      // Predicated region
      $region25: #{forward.1} parent=11 // pred_check
        %p501 = pneg %p136
      $region26: #{forward.1} parent=11 // pred_check_branch
        %503 = sbr.rel (%p501) target = $region28
      $region27: #{forward.1} parent=11 // pred_region
        _
      $region28: #{forward.1} parent=11 // pred_fallthru
        _
      // Predicated region
      $region29: #{forward.1} parent=11 // pred_check
        %p504 = pneg %p157
      $region30: #{forward.1} parent=11 // pred_check_branch
        %506 = sbr.rel (%p504) target = $region32
      $region31: #{forward.1} parent=11 // pred_region
        _
      $region32: #{forward.1} parent=11 // pred_fallthru
        _
      // Predicated region
      $region33: #{forward.1} parent=11 // pred_check
        %p507 = pneg %p178
      $region34: #{forward.1} parent=11 // pred_check_branch
        %509 = sbr.rel (%p507) target = $region36
      $region35: #{forward.1} parent=11 // pred_region
        _
      $region36: #{forward.1} parent=11 // pred_fallthru
        _
      // Predicated region
      $region37: #{forward.1} parent=11 // pred_check
        %p510 = pneg %p199
      $region38: #{forward.1} parent=11 // pred_check_branch
        %512 = sbr.rel (%p510) target = $region40
      $region39: #{forward.1} parent=11 // pred_region
        _
      $region40: #{forward.1} parent=11 // pred_fallthru
        _
      // Predicated region
      $region41: #{forward.1} parent=11 // pred_check
        %p513 = pneg %p220
      $region42: #{forward.1} parent=11 // pred_check_branch
        %515 = sbr.rel (%p513) target = $region44
      $region43: #{forward.1} parent=11 // pred_region
        _
      $region44: #{forward.1} parent=11 // pred_fallthru
        _
      // Predicated region
      $region45: #{forward.1} parent=11 // pred_check
        %p516 = pneg %p241
      $region46: #{forward.1} parent=11 // pred_check_branch
        %518 = sbr.rel (%p516) target = $region48
      $region47: #{forward.1} parent=11 // pred_region
        _
      $region48: #{forward.1} parent=11 // pred_fallthru
        _
      // Predicated region
      $region49: #{forward.1} parent=11 // pred_check
        %p519 = pneg %p262
      $region50: #{forward.1} parent=11 // pred_check_branch
        %521 = sbr.rel (%p519) target = $region52
      $region51: #{forward.1} parent=11 // pred_region
        _
      $region52: #{forward.1} parent=11 // pred_fallthru
        _
      // Predicated region
      $region53: #{forward.1} parent=11 // pred_check
        %p522 = pneg %p283
      $region54: #{forward.1} parent=11 // pred_check_branch
        %524 = sbr.rel (%p522) target = $region56
      $region55: #{forward.1} parent=11 // pred_region
        _
      $region56: #{forward.1} parent=11 // pred_fallthru
        _
      // Predicated region
      $region57: #{forward.1} parent=11 // pred_check
        %p525 = pneg %p304
      $region58: #{forward.1} parent=11 // pred_check_branch
        %527 = sbr.rel (%p525) target = $region60
      $region59: #{forward.1} parent=11 // pred_region
        _
      $region60: #{forward.1} parent=11 // pred_fallthru
        _
      // Predicated region
      $region61: #{forward.1} parent=11 // pred_check
        %p528 = pneg %p325
      $region62: #{forward.1} parent=11 // pred_check_branch
        %530 = sbr.rel (%p528) target = $region64
      $region63: #{forward.1} parent=11 // pred_region
        _
      $region64: #{forward.1} parent=11 // pred_fallthru
        _
      // Predicated region
      $region65: #{forward.1} parent=11 // pred_check
        %p531 = pneg %p346
      $region66: #{forward.1} parent=11 // pred_check_branch
        %533 = sbr.rel (%p531) target = $region68
      $region67: #{forward.1} parent=11 // pred_region
        _
      $region68: #{forward.1} parent=11 // pred_fallthru
        _
      // Predicated region
      $region69: #{forward.1} parent=11 // pred_check
        %p534 = pneg %p367
      $region70: #{forward.1} parent=11 // pred_check_branch
        %536 = sbr.rel (%p534) target = $region72
      $region71: #{forward.1} parent=11 // pred_region
        _
      $region72: #{forward.1} parent=11 // pred_fallthru
        _
      // Predicated region
      $region73: #{forward.1} parent=11 // pred_check
        %p537 = pneg %p388
      $region74: #{forward.1} parent=11 // pred_check_branch
        %539 = sbr.rel (%p537) target = $region76
      $region75: #{forward.1} parent=11 // pred_region
        _
      $region76: #{forward.1} parent=11 // pred_fallthru
        _
      // Predicated region
      $region77: #{forward.1} parent=11 // pred_check
        %p540 = pneg %p409
      $region78: #{forward.1} parent=11 // pred_check_branch
        %542 = sbr.rel (%p540) target = $region80
      $region79: #{forward.1} parent=11 // pred_region
        _
      $region80: #{forward.1} parent=11 // pred_fallthru
        _
      // Predicated region
      $region81: #{forward.1} parent=11 // pred_check
        %p543 = pneg %p430
      $region82: #{forward.1} parent=11 // pred_check_branch
        %545 = sbr.rel (%p543) target = $region84
      $region83: #{forward.1} parent=11 // pred_region
        _
      $region84: #{forward.1} parent=11 // pred_fallthru
        _
      // Predicated region
      $region85: #{forward.1} parent=11 // pred_check
        %p546 = pneg %p451
      $region86: #{forward.1} parent=11 // pred_check_branch
        %548 = sbr.rel (%p546) target = $region88
      $region87: #{forward.1} parent=11 // pred_region
        _
      $region88: #{forward.1} parent=11 // pred_fallthru
        _
    $region12: #{forward.1} parent=5 // pred_fallthru
      _
    %p549 = scmp.lt.s32.totalorder %s26, 2
    // Predicated region
    $region89: #{forward.1} parent=5 // pred_check
      %p550 = pneg %p549
    $region90: #{forward.1} parent=5 // pred_check_branch
      %552 = sbr.rel (%p550) target = $region92
    $region91: #{forward.1} parent=5 // pred_region
      // Predicated region
      $region93: #{forward.1} parent=91 // pred_check
        %p553 = pneg %p46
      $region94: #{forward.1} parent=91 // pred_check_branch
        %555 = sbr.rel (%p553) target = $region96
      $region95: #{forward.1} parent=91 // pred_region
        %p556 = scmp.lt.s32.totalorder %s26, 1
        %s557 = scalar_select %p556, %s26, 1
        %s558 = smul.addr %s557, 8
        %s559 = scalar_lea.vmem %s0, %s558
      $region96: #{forward.1} parent=91 // pred_fallthru
        _
    $region92: #{forward.1} parent=5 // pred_fallthru
      _
    %p560 = scmp.le.s32.totalorder 1, %s26
    %p561 = scmp.lt.s32.totalorder %s26, 3
    %p562 = pnand %p560, %p561
    %p563 = pneg %p562
    // Predicated region
    $region97: #{forward.1} parent=5 // pred_check
      _
    $region98: #{forward.1} parent=5 // pred_check_branch
      %565 = sbr.rel (%p562) target = $region100
    $region99: #{forward.1} parent=5 // pred_region
      %s566 = ssub.s32 %s26, 1
      %p567 = scmp.lt.s32.totalorder %s31, 1
      %s568 = scalar_select %p567, %s31, 1
      %s569 = smul.addr %s568, 8
      %s570 = scalar_lea.vmem %s0, %s569
      %p571 = pneg %p52
      %p572 = pneg %p49
      %p573 = pneg %p73
      %p574 = pneg %p70
      %p575 = pneg %p94
      %p576 = pneg %p91
      %p577 = pneg %p115
      %p578 = pneg %p112
      %p579 = pneg %p136
      %p580 = pneg %p133
      %p581 = pneg %p157
      %p582 = pneg %p154
      %p583 = pneg %p178
      %p584 = pneg %p175
      %p585 = pneg %p199
      %p586 = pneg %p196
      %p587 = pneg %p220
      %p588 = pneg %p217
      %p589 = pneg %p241
      %p590 = pneg %p238
      %p591 = pneg %p262
      %p592 = pneg %p259
      %p593 = pneg %p283
      %p594 = pneg %p280
      %p595 = pneg %p304
      %p596 = pneg %p301
      %p597 = pneg %p325
      %p598 = pneg %p322
      %p599 = pneg %p346
      %p600 = pneg %p343
      %p601 = pneg %p367
      %p602 = pneg %p364
      %p603 = pneg %p388
      %p604 = pneg %p385
      %p605 = pneg %p409
      %p606 = pneg %p406
      %p607 = pneg %p430
      %p608 = pneg %p427
      %p609 = pneg %p451
      %p610 = pneg %p448
      %p611 = pneg %p477
      %p612 = pneg %p474
      %p613 = scmp.lt.s32.totalorder %s31, 1
      %s614 = scalar_select %p613, %s31, 1
      %s615 = smul.addr %s614, 8
      %s616 = scalar_lea.vmem %s20, %s615
      %p617 = scmp.lt.s32.totalorder %s31, 1
      %s618 = scalar_select %p617, %s31, 1
      %s619 = smul.addr %s618, 8
      %s620 = scalar_lea.vmem %s0, %s619
      %p621 = scmp.lt.s32.totalorder %s31, 1
      %s622 = scalar_select %p621, %s31, 1
      %s623 = smul.addr %s622, 8
      %s624 = scalar_lea.vmem %s20, %s623
      %v625 = vld [vmem:[%s620] sm:$0xff]
      %v626 = vld [vmem:[%s1] sm:$0x7]
      %v627 = vld [vmem:[%s2] sm:$0x1]
      %v628 = vld [vmem:[%s3] sm:$0xff]
      %v630 = vlaneseq
      %v631 = vshrl.u32 %v630, 7
      %v632 = vsub.s32 0, %v631
      %v633 = vrot.slane %v627, %v632
      %v635 = vadd.f32 %v633, %v628
      %637 = vset.pattern.permute.xlu0 0
      %638 = vperm.xlu0 %637, %v625
      %v639 = vpop.permute.xlu0 %638
      %v641 = vlaneseq
      %v642 = vshrl.u32 %v641, 7
      %v643 = vsub.s32 0, %v642
      %v644 = vrot.slane %v626, %v643
      %v645 = vmul.f32 %v639, %v644
      %v646 = vadd.f32 %v635, %v645
      %647 = vset.pattern.permute.xlu0 1
      %648 = vperm.xlu0 %647, %v625
      %v649 = vpop.permute.xlu0 %648
      %v651 = vlaneseq
      %v652 = vshrl.u32 %v651, 7
      %v653 = vsub.s32 1, %v652
      %v654 = vrot.slane %v626, %v653
      %v655 = vmul.f32 %v649, %v654
      %v656 = vadd.f32 %v646, %v655
      %657 = vset.pattern.permute.xlu0 2
      %658 = vperm.xlu0 %657, %v625
      %v659 = vpop.permute.xlu0 %658
      %v661 = vlaneseq
      %v662 = vshrl.u32 %v661, 7
      %v663 = vsub.s32 2, %v662
      %v664 = vrot.slane %v626, %v663
      %v665 = vmul.f32 %v659, %v664
      %v666 = vadd.f32 %v656, %v665
      %v667 = vlaneseq
      %v668 = vshrl.u32 %v667, 7
      %v669 = vlaneseq
      %v670 = vand.u32 %v669, 127
      %vm671 = vcmp.ge.s32.totalorder %v668, %v670
      loop: start=0, step=1, limit=6
      $region101: #{forward.1} parent=99 // loop_pre_header
        _
      $region102: #{forward.1} parent=99 // loop_header
        %s673 = sphi 0, %s677
        %p674 = scmp.ge.s32.totalorder %s673, 6
        %v678 = vphi %v666, %v3029
      $region103: #{forward.1} parent=99 // loop_header_branch
        %676 = sbr.rel (%p674) target = $region107
      $region104: #{forward.1} parent=99 // loop_body
        %s679 = scalar_lea.vmem %s4, %s673
        %v680 = vld [vmem:[%s679] sm:$0x1]
        %s681 = scalar_lea.vmem %s5, %s673
        %v682 = vld [vmem:[%s681] sm:$0x1]
        %vm683 = vcmask 523264
        %v684 = vsel %vm683, %v678, 0.0
        %685 = vadd.xlane.f32.xlu0 %v684
        %v686 = vpop.xlane.xlu0 %685
        %v687 = vrcp.pop 64.0
        %v688 = vmul.f32 %v686, %v687
        %v689 = vsub.f32 %v678, %v688
        %v690 = vmul.f32 %v689, %v689
        %v691 = vsel %vm683, %v690, 0.0
        %692 = vadd.xlane.f32.xlu0 %v691
        %v693 = vpop.xlane.xlu0 %692
        %v694 = vmul.f32 %v693, %v687
        %v695 = vadd.f32 %v694, 1e-05
        %v696 = vrsqrt.pop %v695
        %v697 = vmul.f32 %v689, %v696
        %v699 = vlaneseq
        %v700 = vshrl.u32 %v699, 7
        %v701 = vsub.s32 0, %v700
        %v702 = vrot.slane %v680, %v701
        %v704 = vmul.f32 %v697, %v702
        %v706 = vlaneseq
        %v707 = vshrl.u32 %v706, 7
        %v708 = vsub.s32 0, %v707
        %v709 = vrot.slane %v682, %v708
        %v711 = vadd.f32 %v704, %v709
        %s712 = smul.u32 %s673, 16
        %s713 = smul.addr %s712, 8
        %s714 = scalar_lea.vmem %s6, %s713
        %v715 = vld [vmem:[%s714] sm:$0xff]
        %v716 = vld [vmem:[%s714 + $0x8] sm:$0xff]
        %v717 = vld [vmem:[%s714 + $0x10] sm:$0xff]
        %v718 = vld [vmem:[%s714 + $0x18] sm:$0xff]
        %v719 = vld [vmem:[%s714 + $0x20] sm:$0xff]
        %v720 = vld [vmem:[%s714 + $0x28] sm:$0xff]
        %v721 = vld [vmem:[%s714 + $0x30] sm:$0xff]
        %v722 = vld [vmem:[%s714 + $0x38] sm:$0xff]
        %v723 = vld [vmem:[%s714 + $0x40] sm:$0xff]
        %v724 = vld [vmem:[%s714 + $0x48] sm:$0xff]
        %v725 = vld [vmem:[%s714 + $0x50] sm:$0xff]
        %v726 = vld [vmem:[%s714 + $0x58] sm:$0xff]
        %v727 = vld [vmem:[%s714 + $0x60] sm:$0xff]
        %v728 = vld [vmem:[%s714 + $0x68] sm:$0xff]
        %v729 = vld [vmem:[%s714 + $0x70] sm:$0xff]
        %v730 = vld [vmem:[%s714 + $0x78] sm:$0xff]
        %s731 = smul.u32 %s673, 2
        %s732 = scalar_lea.vmem %s7, %s731
        %v733 = vld [vmem:[%s732] sm:$0x3]
        %v735 = vlaneseq
        %v736 = vshrl.u32 %v735, 7
        %v737 = vsub.s32 0, %v736
        %v738 = vrot.slane %v733, %v737
        %v739 = vlaneseq
        %v740 = vshrl.u32 %v739, 7
        %v741 = vsub.s32 1, %v740
        %v742 = vrot.slane %v733, %v741
        %v746 = vsel %vm683, %v711, 0
        %748 = vmatprep.subr.mxu0 %v716
        %749 = vmatpush1.msra.mxu0 %v715
        %750 = vmatprep.subr.mxu0 %v718
        %751 = vmatpush1.msra.mxu0 %v717
        %752 = vmatprep.subr.mxu0 %v720
        %753 = vmatpush1.msra.mxu0 %v719
        %754 = vmatprep.subr.mxu0 %v722
        %755 = vmatpush1.msra.mxu0 %v721
        %756 = vmatprep.subr.mxu0 %v724
        %757 = vmatpush1.msra.mxu0 %v723
        %758 = vmatprep.subr.mxu0 %v726
        %759 = vmatpush1.msra.mxu0 %v725
        %760 = vmatprep.subr.mxu0 %v728
        %761 = vmatpush1.msra.mxu0 %v727
        %762 = vmatprep.subr.mxu0 %v730
        %763 = vmatpush1.msra.mxu0 %v729
        %764 = vmatprep.subr.mxu0 0.0
        %765 = vmatpush1.msra.mxu0 0.0
        %766 = vmatprep.subr.mxu0 0.0
        %767 = vmatpush1.msra.mxu0 0.0
        %768 = vmatprep.subr.mxu0 0.0
        %769 = vmatpush1.msra.mxu0 0.0
        %770 = vmatprep.subr.mxu0 0.0
        %771 = vmatpush1.msra.mxu0 0.0
        %772 = vmatprep.subr.mxu0 0.0
        %773 = vmatpush1.msra.mxu0 0.0
        %774 = vmatprep.subr.mxu0 0.0
        %775 = vmatpush1.msra.mxu0 0.0
        %776 = vmatprep.subr.mxu0 0.0
        %777 = vmatpush1.msra.mxu0 0.0
        %778 = vmatprep.subr.mxu0 0.0
        %779 = vmatpush1.msra.mxu0 0.0
        %780 = vmatprep.subr.mxu0 0.0
        %781 = vmatpush1.msra.mxu0 0.0
        %782 = vmatprep.subr.mxu0 0.0
        %783 = vmatpush1.msra.mxu0 0.0
        %784 = vmatprep.subr.mxu0 0.0
        %785 = vmatpush1.msra.mxu0 0.0
        %786 = vmatprep.subr.mxu0 0.0
        %787 = vmatpush1.msra.mxu0 0.0
        %788 = vmatprep.subr.mxu0 0.0
        %789 = vmatpush1.msra.mxu0 0.0
        %790 = vmatprep.subr.mxu0 0.0
        %791 = vmatpush1.msra.mxu0 0.0
        %792 = vmatprep.subr.mxu0 0.0
        %793 = vmatpush1.msra.mxu0 0.0
        %794 = vmatprep.subr.mxu0 0.0
        %795 = vmatpush1.msra.mxu0 0.0
        %796 = vmatprep.subr.mxu0 0.0
        %797 = vmatpush1.msra.mxu0 0.0
        %798 = vmatprep.subr.mxu0 0.0
        %799 = vmatpush1.msra.mxu0 0.0
        %800 = vmatprep.subr.mxu0 0.0
        %801 = vmatpush1.msra.mxu0 0.0
        %802 = vmatprep.subr.mxu0 0.0
        %803 = vmatpush1.msra.mxu0 0.0
        %804 = vmatprep.subr.mxu0 0.0
        %805 = vmatpush1.msra.mxu0 0.0
        %806 = vmatprep.subr.mxu0 0.0
        %807 = vmatpush1.msra.mxu0 0.0
        %808 = vmatprep.subr.mxu0 0.0
        %809 = vmatpush1.msra.mxu0 0.0
        %810 = vmatprep.subr.mxu0 0.0
        %811 = vmatpush1.msra.mxu0 0.0
        %812 = vmatprep.mubr.f32.mxu0 0.0
        %813 = vmatmul.mubr.f32.gmra.mrb[0].mxu0 %v746
        %v814 = vpop.f32.mrb[0].mxu0
        %v815 = vadd.f32 %v738, %v814
        %v816 = vpop.f32.mrb[0].mxu0
        %v817 = vadd.f32 %v742, %v816
        %818 = vdwg.mxu0
        %s819 = smul.u32 %s673, 64
        %s820 = scalar_lea.vmem %s8, %s819
        %v821 = vld [vmem:[%s820] sm:$0xff]
        %v822 = vld [vmem:[%s820 + $0x8] sm:$0xff]
        %v823 = vld [vmem:[%s820 + $0x10] sm:$0xff]
        %v824 = vld [vmem:[%s820 + $0x18] sm:$0xff]
        %v825 = vld [vmem:[%s820 + $0x20] sm:$0xff]
        %v826 = vld [vmem:[%s820 + $0x28] sm:$0xff]
        %v827 = vld [vmem:[%s820 + $0x30] sm:$0xff]
        %v828 = vld [vmem:[%s820 + $0x38] sm:$0xff]
        %830 = vrot.lane.b32.xlu0 %v815, 64
        %v831 = vpop.permute.xlu0 %830
        %vm832 = vcmask 64512
        %v833 = vsel %vm832, %v815, 0
        %v835 = vsel %vm832, %v831, 0
        %837 = vmatprep.subr.mxu0 0.0
        %838 = vmatpush1.xpose.msra.mxu0 %v835
        %839 = vmatprep.subr.mxu0 0.0
        %840 = vmatpush1.xpose.msra.mxu0 0.0
        %841 = vmatprep.subr.mxu0 0.0
        %842 = vmatpush1.xpose.msra.mxu0 0.0
        %843 = vmatprep.subr.mxu0 0.0
        %844 = vmatpush1.xpose.msra.mxu0 0.0
        %845 = vmatprep.subr.mxu0 0.0
        %846 = vmatpush1.xpose.msra.mxu0 0.0
        %847 = vmatprep.subr.mxu0 0.0
        %848 = vmatpush1.xpose.msra.mxu0 0.0
        %849 = vmatprep.subr.mxu0 0.0
        %850 = vmatpush1.xpose.msra.mxu0 0.0
        %851 = vmatprep.subr.mxu0 0.0
        %852 = vmatpush1.xpose.msra.mxu0 0.0
        %853 = vmatprep.subr.mxu0 0.0
        %854 = vmatpush1.xpose.msra.mxu0 0.0
        %855 = vmatprep.subr.mxu0 0.0
        %856 = vmatpush1.xpose.msra.mxu0 0.0
        %857 = vmatprep.subr.mxu0 0.0
        %858 = vmatpush1.xpose.msra.mxu0 0.0
        %859 = vmatprep.subr.mxu0 0.0
        %860 = vmatpush1.xpose.msra.mxu0 0.0
        %861 = vmatprep.subr.mxu0 0.0
        %862 = vmatpush1.xpose.msra.mxu0 0.0
        %863 = vmatprep.subr.mxu0 0.0
        %864 = vmatpush1.xpose.msra.mxu0 0.0
        %865 = vmatprep.subr.mxu0 0.0
        %866 = vmatpush1.xpose.msra.mxu0 0.0
        %867 = vmatprep.subr.mxu0 0.0
        %868 = vmatpush1.xpose.msra.mxu0 0.0
        %869 = vmatprep.subr.mxu0 0.0
        %870 = vmatpush1.xpose.msra.mxu0 0.0
        %871 = vmatprep.subr.mxu0 0.0
        %872 = vmatpush1.xpose.msra.mxu0 0.0
        %873 = vmatprep.subr.mxu0 0.0
        %874 = vmatpush1.xpose.msra.mxu0 0.0
        %875 = vmatprep.subr.mxu0 0.0
        %876 = vmatpush1.xpose.msra.mxu0 0.0
        %877 = vmatprep.subr.mxu0 0.0
        %878 = vmatpush1.xpose.msra.mxu0 0.0
        %879 = vmatprep.subr.mxu0 0.0
        %880 = vmatpush1.xpose.msra.mxu0 0.0
        %881 = vmatprep.subr.mxu0 0.0
        %882 = vmatpush1.xpose.msra.mxu0 0.0
        %883 = vmatprep.subr.mxu0 0.0
        %884 = vmatpush1.xpose.msra.mxu0 0.0
        %885 = vmatprep.subr.mxu0 0.0
        %886 = vmatpush1.xpose.msra.mxu0 0.0
        %887 = vmatprep.subr.mxu0 0.0
        %888 = vmatpush1.xpose.msra.mxu0 0.0
        %889 = vmatprep.subr.mxu0 0.0
        %890 = vmatpush1.xpose.msra.mxu0 0.0
        %891 = vmatprep.subr.mxu0 0.0
        %892 = vmatpush1.xpose.msra.mxu0 0.0
        %893 = vmatprep.subr.mxu0 0.0
        %894 = vmatpush1.xpose.msra.mxu0 0.0
        %895 = vmatprep.subr.mxu0 0.0
        %896 = vmatpush1.xpose.msra.mxu0 0.0
        %897 = vmatprep.subr.mxu0 0.0
        %898 = vmatpush1.xpose.msra.mxu0 0.0
        %899 = vmatprep.subr.mxu0 0.0
        %900 = vmatpush1.xpose.msra.mxu0 0.0
        %901 = vmatprep.mubr.f32.mxu0 0.0
        %902 = vmatmul.mubr.f32.gmra.mrb[0].mxu0 %v833
        %v903 = vpop.f32.mrb[0].mxu0
        %v904 = vadd.f32 0.0, %v903
        %v905 = vpop.f32.mrb[0].mxu0
        %906 = vdwg.mxu0
        %v907 = vmul.f32 %v904, 0.35355338
        %v908 = vsel %vm671, %v907, -1e+30
        %v909 = vsel %vm832, %v908, -inf
        %910 = vmax.xlane.f32.xlu0 %v909
        %v911 = vpop.xlane.xlu0 %910
        %v912 = vsub.f32 %v908, %v911
        %v913 = vmul.f32 %v912, 1.442695
        %v914 = vpow.pop %v913
        %v915 = vsel %vm832, %v914, 0.0
        %916 = vadd.xlane.f32.xlu0 %v915
        %v917 = vpop.xlane.xlu0 %916
        %v918 = vrcp.pop %v917
        %v919 = vmul.f32 %v914, %v918
        %v921 = vsel %vm832, %v919, 0
        %923 = vmatprep.subr.mxu0 0.0
        %924 = vmatpush1.msra.mxu0 %v817
        %925 = vmatprep.subr.mxu0 0.0
        %926 = vmatpush1.msra.mxu0 0.0
        %927 = vmatprep.subr.mxu0 0.0
        %928 = vmatpush1.msra.mxu0 0.0
        %929 = vmatprep.subr.mxu0 0.0
        %930 = vmatpush1.msra.mxu0 0.0
        %931 = vmatprep.subr.mxu0 0.0
        %932 = vmatpush1.msra.mxu0 0.0
        %933 = vmatprep.subr.mxu0 0.0
        %934 = vmatpush1.msra.mxu0 0.0
        %935 = vmatprep.subr.mxu0 0.0
        %936 = vmatpush1.msra.mxu0 0.0
        %937 = vmatprep.subr.mxu0 0.0
        %938 = vmatpush1.msra.mxu0 0.0
        %939 = vmatprep.subr.mxu0 0.0
        %940 = vmatpush1.msra.mxu0 0.0
        %941 = vmatprep.subr.mxu0 0.0
        %942 = vmatpush1.msra.mxu0 0.0
        %943 = vmatprep.subr.mxu0 0.0
        %944 = vmatpush1.msra.mxu0 0.0
        %945 = vmatprep.subr.mxu0 0.0
        %946 = vmatpush1.msra.mxu0 0.0
        %947 = vmatprep.subr.mxu0 0.0
        %948 = vmatpush1.msra.mxu0 0.0
        %949 = vmatprep.subr.mxu0 0.0
        %950 = vmatpush1.msra.mxu0 0.0
        %951 = vmatprep.subr.mxu0 0.0
        %952 = vmatpush1.msra.mxu0 0.0
        %953 = vmatprep.subr.mxu0 0.0
        %954 = vmatpush1.msra.mxu0 0.0
        %955 = vmatprep.subr.mxu0 0.0
        %956 = vmatpush1.msra.mxu0 0.0
        %957 = vmatprep.subr.mxu0 0.0
        %958 = vmatpush1.msra.mxu0 0.0
        %959 = vmatprep.subr.mxu0 0.0
        %960 = vmatpush1.msra.mxu0 0.0
        %961 = vmatprep.subr.mxu0 0.0
        %962 = vmatpush1.msra.mxu0 0.0
        %963 = vmatprep.subr.mxu0 0.0
        %964 = vmatpush1.msra.mxu0 0.0
        %965 = vmatprep.subr.mxu0 0.0
        %966 = vmatpush1.msra.mxu0 0.0
        %967 = vmatprep.subr.mxu0 0.0
        %968 = vmatpush1.msra.mxu0 0.0
        %969 = vmatprep.subr.mxu0 0.0
        %970 = vmatpush1.msra.mxu0 0.0
        %971 = vmatprep.subr.mxu0 0.0
        %972 = vmatpush1.msra.mxu0 0.0
        %973 = vmatprep.subr.mxu0 0.0
        %974 = vmatpush1.msra.mxu0 0.0
        %975 = vmatprep.subr.mxu0 0.0
        %976 = vmatpush1.msra.mxu0 0.0
        %977 = vmatprep.subr.mxu0 0.0
        %978 = vmatpush1.msra.mxu0 0.0
        %979 = vmatprep.subr.mxu0 0.0
        %980 = vmatpush1.msra.mxu0 0.0
        %981 = vmatprep.subr.mxu0 0.0
        %982 = vmatpush1.msra.mxu0 0.0
        %983 = vmatprep.subr.mxu0 0.0
        %984 = vmatpush1.msra.mxu0 0.0
        %985 = vmatprep.subr.mxu0 0.0
        %986 = vmatpush1.msra.mxu0 0.0
        %987 = vmatprep.mubr.f32.mxu0 0.0
        %988 = vmatmul.mubr.f32.gmra.mrb[0].mxu0 %v921
        %v989 = vpop.f32.mrb[0].mxu0
        %v990 = vadd.f32 0.0, %v989
        %v991 = vpop.f32.mrb[0].mxu0
        %992 = vdwg.mxu0
        %993 = vrot.lane.b32.xlu0 %v815, 120
        %v994 = vpop.permute.xlu0 %993
        %995 = vrot.lane.b32.xlu0 %v815, 56
        %v996 = vpop.permute.xlu0 %995
        %v997 = vsel %vm832, %v994, 0
        %v999 = vsel %vm832, %v996, 0
        %1001 = vmatprep.subr.mxu0 0.0
        %1002 = vmatpush1.xpose.msra.mxu0 %v999
        %1003 = vmatprep.subr.mxu0 0.0
        %1004 = vmatpush1.xpose.msra.mxu0 0.0
        %1005 = vmatprep.subr.mxu0 0.0
        %1006 = vmatpush1.xpose.msra.mxu0 0.0
        %1007 = vmatprep.subr.mxu0 0.0
        %1008 = vmatpush1.xpose.msra.mxu0 0.0
        %1009 = vmatprep.subr.mxu0 0.0
        %1010 = vmatpush1.xpose.msra.mxu0 0.0
        %1011 = vmatprep.subr.mxu0 0.0
        %1012 = vmatpush1.xpose.msra.mxu0 0.0
        %1013 = vmatprep.subr.mxu0 0.0
        %1014 = vmatpush1.xpose.msra.mxu0 0.0
        %1015 = vmatprep.subr.mxu0 0.0
        %1016 = vmatpush1.xpose.msra.mxu0 0.0
        %1017 = vmatprep.subr.mxu0 0.0
        %1018 = vmatpush1.xpose.msra.mxu0 0.0
        %1019 = vmatprep.subr.mxu0 0.0
        %1020 = vmatpush1.xpose.msra.mxu0 0.0
        %1021 = vmatprep.subr.mxu0 0.0
        %1022 = vmatpush1.xpose.msra.mxu0 0.0
        %1023 = vmatprep.subr.mxu0 0.0
        %1024 = vmatpush1.xpose.msra.mxu0 0.0
        %1025 = vmatprep.subr.mxu0 0.0
        %1026 = vmatpush1.xpose.msra.mxu0 0.0
        %1027 = vmatprep.subr.mxu0 0.0
        %1028 = vmatpush1.xpose.msra.mxu0 0.0
        %1029 = vmatprep.subr.mxu0 0.0
        %1030 = vmatpush1.xpose.msra.mxu0 0.0
        %1031 = vmatprep.subr.mxu0 0.0
        %1032 = vmatpush1.xpose.msra.mxu0 0.0
        %1033 = vmatprep.subr.mxu0 0.0
        %1034 = vmatpush1.xpose.msra.mxu0 0.0
        %1035 = vmatprep.subr.mxu0 0.0
        %1036 = vmatpush1.xpose.msra.mxu0 0.0
        %1037 = vmatprep.subr.mxu0 0.0
        %1038 = vmatpush1.xpose.msra.mxu0 0.0
        %1039 = vmatprep.subr.mxu0 0.0
        %1040 = vmatpush1.xpose.msra.mxu0 0.0
        %1041 = vmatprep.subr.mxu0 0.0
        %1042 = vmatpush1.xpose.msra.mxu0 0.0
        %1043 = vmatprep.subr.mxu0 0.0
        %1044 = vmatpush1.xpose.msra.mxu0 0.0
        %1045 = vmatprep.subr.mxu0 0.0
        %1046 = vmatpush1.xpose.msra.mxu0 0.0
        %1047 = vmatprep.subr.mxu0 0.0
        %1048 = vmatpush1.xpose.msra.mxu0 0.0
        %1049 = vmatprep.subr.mxu0 0.0
        %1050 = vmatpush1.xpose.msra.mxu0 0.0
        %1051 = vmatprep.subr.mxu0 0.0
        %1052 = vmatpush1.xpose.msra.mxu0 0.0
        %1053 = vmatprep.subr.mxu0 0.0
        %1054 = vmatpush1.xpose.msra.mxu0 0.0
        %1055 = vmatprep.subr.mxu0 0.0
        %1056 = vmatpush1.xpose.msra.mxu0 0.0
        %1057 = vmatprep.subr.mxu0 0.0
        %1058 = vmatpush1.xpose.msra.mxu0 0.0
        %1059 = vmatprep.subr.mxu0 0.0
        %1060 = vmatpush1.xpose.msra.mxu0 0.0
        %1061 = vmatprep.subr.mxu0 0.0
        %1062 = vmatpush1.xpose.msra.mxu0 0.0
        %1063 = vmatprep.subr.mxu0 0.0
        %1064 = vmatpush1.xpose.msra.mxu0 0.0
        %1065 = vmatprep.mubr.f32.mxu0 0.0
        %1066 = vmatmul.mubr.f32.gmra.mrb[0].mxu0 %v997
        %v1067 = vpop.f32.mrb[0].mxu0
        %v1068 = vadd.f32 0.0, %v1067
        %v1069 = vpop.f32.mrb[0].mxu0
        %1070 = vdwg.mxu0
        %v1071 = vmul.f32 %v1068, 0.35355338
        %v1072 = vsel %vm671, %v1071, -1e+30
        %v1073 = vsel %vm832, %v1072, -inf
        %1074 = vmax.xlane.f32.xlu0 %v1073
        %v1075 = vpop.xlane.xlu0 %1074
        %v1076 = vsub.f32 %v1072, %v1075
        %v1077 = vmul.f32 %v1076, 1.442695
        %v1078 = vpow.pop %v1077
        %v1079 = vsel %vm832, %v1078, 0.0
        %1080 = vadd.xlane.f32.xlu0 %v1079
        %v1081 = vpop.xlane.xlu0 %1080
        %v1082 = vrcp.pop %v1081
        %v1083 = vmul.f32 %v1078, %v1082
        %1085 = vrot.lane.b32.xlu0 %v817, 120
        %v1086 = vpop.permute.xlu0 %1085
        %v1089 = vsel %vm832, %v1083, 0
        %1091 = vmatprep.subr.mxu0 0.0
        %1092 = vmatpush1.msra.mxu0 %v1086
        %1093 = vmatprep.subr.mxu0 0.0
        %1094 = vmatpush1.msra.mxu0 0.0
        %1095 = vmatprep.subr.mxu0 0.0
        %1096 = vmatpush1.msra.mxu0 0.0
        %1097 = vmatprep.subr.mxu0 0.0
        %1098 = vmatpush1.msra.mxu0 0.0
        %1099 = vmatprep.subr.mxu0 0.0
        %1100 = vmatpush1.msra.mxu0 0.0
        %1101 = vmatprep.subr.mxu0 0.0
        %1102 = vmatpush1.msra.mxu0 0.0
        %1103 = vmatprep.subr.mxu0 0.0
        %1104 = vmatpush1.msra.mxu0 0.0
        %1105 = vmatprep.subr.mxu0 0.0
        %1106 = vmatpush1.msra.mxu0 0.0
        %1107 = vmatprep.subr.mxu0 0.0
        %1108 = vmatpush1.msra.mxu0 0.0
        %1109 = vmatprep.subr.mxu0 0.0
        %1110 = vmatpush1.msra.mxu0 0.0
        %1111 = vmatprep.subr.mxu0 0.0
        %1112 = vmatpush1.msra.mxu0 0.0
        %1113 = vmatprep.subr.mxu0 0.0
        %1114 = vmatpush1.msra.mxu0 0.0
        %1115 = vmatprep.subr.mxu0 0.0
        %1116 = vmatpush1.msra.mxu0 0.0
        %1117 = vmatprep.subr.mxu0 0.0
        %1118 = vmatpush1.msra.mxu0 0.0
        %1119 = vmatprep.subr.mxu0 0.0
        %1120 = vmatpush1.msra.mxu0 0.0
        %1121 = vmatprep.subr.mxu0 0.0
        %1122 = vmatpush1.msra.mxu0 0.0
        %1123 = vmatprep.subr.mxu0 0.0
        %1124 = vmatpush1.msra.mxu0 0.0
        %1125 = vmatprep.subr.mxu0 0.0
        %1126 = vmatpush1.msra.mxu0 0.0
        %1127 = vmatprep.subr.mxu0 0.0
        %1128 = vmatpush1.msra.mxu0 0.0
        %1129 = vmatprep.subr.mxu0 0.0
        %1130 = vmatpush1.msra.mxu0 0.0
        %1131 = vmatprep.subr.mxu0 0.0
        %1132 = vmatpush1.msra.mxu0 0.0
        %1133 = vmatprep.subr.mxu0 0.0
        %1134 = vmatpush1.msra.mxu0 0.0
        %1135 = vmatprep.subr.mxu0 0.0
        %1136 = vmatpush1.msra.mxu0 0.0
        %1137 = vmatprep.subr.mxu0 0.0
        %1138 = vmatpush1.msra.mxu0 0.0
        %1139 = vmatprep.subr.mxu0 0.0
        %1140 = vmatpush1.msra.mxu0 0.0
        %1141 = vmatprep.subr.mxu0 0.0
        %1142 = vmatpush1.msra.mxu0 0.0
        %1143 = vmatprep.subr.mxu0 0.0
        %1144 = vmatpush1.msra.mxu0 0.0
        %1145 = vmatprep.subr.mxu0 0.0
        %1146 = vmatpush1.msra.mxu0 0.0
        %1147 = vmatprep.subr.mxu0 0.0
        %1148 = vmatpush1.msra.mxu0 0.0
        %1149 = vmatprep.subr.mxu0 0.0
        %1150 = vmatpush1.msra.mxu0 0.0
        %1151 = vmatprep.subr.mxu0 0.0
        %1152 = vmatpush1.msra.mxu0 0.0
        %1153 = vmatprep.subr.mxu0 0.0
        %1154 = vmatpush1.msra.mxu0 0.0
        %1155 = vmatprep.mubr.f32.mxu0 0.0
        %1156 = vmatmul.mubr.f32.gmra.mrb[0].mxu0 %v1089
        %v1157 = vpop.f32.mrb[0].mxu0
        %v1158 = vadd.f32 0.0, %v1157
        %v1159 = vpop.f32.mrb[0].mxu0
        %1160 = vdwg.mxu0
        %v1162 = vsel %vm832, %v1158, 0
        %1164 = vmatprep.subr.mxu0 0.0
        %1165 = vmatpush1.msra.mxu0 %v822
        %1166 = vmatprep.subr.mxu0 0.0
        %1167 = vmatpush1.msra.mxu0 0.0
        %1168 = vmatprep.subr.mxu0 0.0
        %1169 = vmatpush1.msra.mxu0 0.0
        %1170 = vmatprep.subr.mxu0 0.0
        %1171 = vmatpush1.msra.mxu0 0.0
        %1172 = vmatprep.subr.mxu0 0.0
        %1173 = vmatpush1.msra.mxu0 0.0
        %1174 = vmatprep.subr.mxu0 0.0
        %1175 = vmatpush1.msra.mxu0 0.0
        %1176 = vmatprep.subr.mxu0 0.0
        %1177 = vmatpush1.msra.mxu0 0.0
        %1178 = vmatprep.subr.mxu0 0.0
        %1179 = vmatpush1.msra.mxu0 0.0
        %1180 = vmatprep.subr.mxu0 0.0
        %1181 = vmatpush1.msra.mxu0 0.0
        %1182 = vmatprep.subr.mxu0 0.0
        %1183 = vmatpush1.msra.mxu0 0.0
        %1184 = vmatprep.subr.mxu0 0.0
        %1185 = vmatpush1.msra.mxu0 0.0
        %1186 = vmatprep.subr.mxu0 0.0
        %1187 = vmatpush1.msra.mxu0 0.0
        %1188 = vmatprep.subr.mxu0 0.0
        %1189 = vmatpush1.msra.mxu0 0.0
        %1190 = vmatprep.subr.mxu0 0.0
        %1191 = vmatpush1.msra.mxu0 0.0
        %1192 = vmatprep.subr.mxu0 0.0
        %1193 = vmatpush1.msra.mxu0 0.0
        %1194 = vmatprep.subr.mxu0 0.0
        %1195 = vmatpush1.msra.mxu0 0.0
        %1196 = vmatprep.subr.mxu0 0.0
        %1197 = vmatpush1.msra.mxu0 0.0
        %1198 = vmatprep.subr.mxu0 0.0
        %1199 = vmatpush1.msra.mxu0 0.0
        %1200 = vmatprep.subr.mxu0 0.0
        %1201 = vmatpush1.msra.mxu0 0.0
        %1202 = vmatprep.subr.mxu0 0.0
        %1203 = vmatpush1.msra.mxu0 0.0
        %1204 = vmatprep.subr.mxu0 0.0
        %1205 = vmatpush1.msra.mxu0 0.0
        %1206 = vmatprep.subr.mxu0 0.0
        %1207 = vmatpush1.msra.mxu0 0.0
        %1208 = vmatprep.subr.mxu0 0.0
        %1209 = vmatpush1.msra.mxu0 0.0
        %1210 = vmatprep.subr.mxu0 0.0
        %1211 = vmatpush1.msra.mxu0 0.0
        %1212 = vmatprep.subr.mxu0 0.0
        %1213 = vmatpush1.msra.mxu0 0.0
        %1214 = vmatprep.subr.mxu0 0.0
        %1215 = vmatpush1.msra.mxu0 0.0
        %1216 = vmatprep.subr.mxu0 0.0
        %1217 = vmatpush1.msra.mxu0 0.0
        %1218 = vmatprep.subr.mxu0 0.0
        %1219 = vmatpush1.msra.mxu0 0.0
        %1220 = vmatprep.subr.mxu0 0.0
        %1221 = vmatpush1.msra.mxu0 0.0
        %1222 = vmatprep.subr.mxu0 0.0
        %1223 = vmatpush1.msra.mxu0 0.0
        %1224 = vmatprep.subr.mxu0 0.0
        %1225 = vmatpush1.msra.mxu0 0.0
        %1226 = vmatprep.subr.mxu0 0.0
        %1227 = vmatpush1.msra.mxu0 0.0
        %1228 = vmatprep.mubr.f32.mxu0 0.0
        %1229 = vmatmul.mubr.f32.gmra.mrb[0].mxu0 %v1162
        %v1230 = vpop.f32.mrb[0].mxu0
        %v1231 = vadd.f32 0.0, %v1230
        %v1232 = vpop.f32.mrb[0].mxu0
        %1233 = vdwg.mxu0
        %v1235 = vsel %vm832, %v990, 0
        %1237 = vmatprep.subr.mxu0 0.0
        %1238 = vmatpush1.msra.mxu0 %v821
        %1239 = vmatprep.subr.mxu0 0.0
        %1240 = vmatpush1.msra.mxu0 0.0
        %1241 = vmatprep.subr.mxu0 0.0
        %1242 = vmatpush1.msra.mxu0 0.0
        %1243 = vmatprep.subr.mxu0 0.0
        %1244 = vmatpush1.msra.mxu0 0.0
        %1245 = vmatprep.subr.mxu0 0.0
        %1246 = vmatpush1.msra.mxu0 0.0
        %1247 = vmatprep.subr.mxu0 0.0
        %1248 = vmatpush1.msra.mxu0 0.0
        %1249 = vmatprep.subr.mxu0 0.0
        %1250 = vmatpush1.msra.mxu0 0.0
        %1251 = vmatprep.subr.mxu0 0.0
        %1252 = vmatpush1.msra.mxu0 0.0
        %1253 = vmatprep.subr.mxu0 0.0
        %1254 = vmatpush1.msra.mxu0 0.0
        %1255 = vmatprep.subr.mxu0 0.0
        %1256 = vmatpush1.msra.mxu0 0.0
        %1257 = vmatprep.subr.mxu0 0.0
        %1258 = vmatpush1.msra.mxu0 0.0
        %1259 = vmatprep.subr.mxu0 0.0
        %1260 = vmatpush1.msra.mxu0 0.0
        %1261 = vmatprep.subr.mxu0 0.0
        %1262 = vmatpush1.msra.mxu0 0.0
        %1263 = vmatprep.subr.mxu0 0.0
        %1264 = vmatpush1.msra.mxu0 0.0
        %1265 = vmatprep.subr.mxu0 0.0
        %1266 = vmatpush1.msra.mxu0 0.0
        %1267 = vmatprep.subr.mxu0 0.0
        %1268 = vmatpush1.msra.mxu0 0.0
        %1269 = vmatprep.subr.mxu0 0.0
        %1270 = vmatpush1.msra.mxu0 0.0
        %1271 = vmatprep.subr.mxu0 0.0
        %1272 = vmatpush1.msra.mxu0 0.0
        %1273 = vmatprep.subr.mxu0 0.0
        %1274 = vmatpush1.msra.mxu0 0.0
        %1275 = vmatprep.subr.mxu0 0.0
        %1276 = vmatpush1.msra.mxu0 0.0
        %1277 = vmatprep.subr.mxu0 0.0
        %1278 = vmatpush1.msra.mxu0 0.0
        %1279 = vmatprep.subr.mxu0 0.0
        %1280 = vmatpush1.msra.mxu0 0.0
        %1281 = vmatprep.subr.mxu0 0.0
        %1282 = vmatpush1.msra.mxu0 0.0
        %1283 = vmatprep.subr.mxu0 0.0
        %1284 = vmatpush1.msra.mxu0 0.0
        %1285 = vmatprep.subr.mxu0 0.0
        %1286 = vmatpush1.msra.mxu0 0.0
        %1287 = vmatprep.subr.mxu0 0.0
        %1288 = vmatpush1.msra.mxu0 0.0
        %1289 = vmatprep.subr.mxu0 0.0
        %1290 = vmatpush1.msra.mxu0 0.0
        %1291 = vmatprep.subr.mxu0 0.0
        %1292 = vmatpush1.msra.mxu0 0.0
        %1293 = vmatprep.subr.mxu0 0.0
        %1294 = vmatpush1.msra.mxu0 0.0
        %1295 = vmatprep.subr.mxu0 0.0
        %1296 = vmatpush1.msra.mxu0 0.0
        %1297 = vmatprep.subr.mxu0 0.0
        %1298 = vmatpush1.msra.mxu0 0.0
        %1299 = vmatprep.subr.mxu0 0.0
        %1300 = vmatpush1.msra.mxu0 0.0
        %1301 = vmatprep.mubr.f32.mxu0 0.0
        %1302 = vmatmul.mubr.f32.gmra.mrb[0].mxu0 %v1235
        %v1303 = vpop.f32.mrb[0].mxu0
        %v1304 = vadd.f32 %v1231, %v1303
        %v1305 = vpop.f32.mrb[0].mxu0
        %1306 = vdwg.mxu0
        %1307 = vrot.lane.b32.xlu0 %v815, 112
        %v1308 = vpop.permute.xlu0 %1307
        %1309 = vrot.lane.b32.xlu0 %v815, 48
        %v1310 = vpop.permute.xlu0 %1309
        %v1311 = vsel %vm832, %v1308, 0
        %v1313 = vsel %vm832, %v1310, 0
        %1315 = vmatprep.subr.mxu0 0.0
        %1316 = vmatpush1.xpose.msra.mxu0 %v1313
        %1317 = vmatprep.subr.mxu0 0.0
        %1318 = vmatpush1.xpose.msra.mxu0 0.0
        %1319 = vmatprep.subr.mxu0 0.0
        %1320 = vmatpush1.xpose.msra.mxu0 0.0
        %1321 = vmatprep.subr.mxu0 0.0
        %1322 = vmatpush1.xpose.msra.mxu0 0.0
        %1323 = vmatprep.subr.mxu0 0.0
        %1324 = vmatpush1.xpose.msra.mxu0 0.0
        %1325 = vmatprep.subr.mxu0 0.0
        %1326 = vmatpush1.xpose.msra.mxu0 0.0
        %1327 = vmatprep.subr.mxu0 0.0
        %1328 = vmatpush1.xpose.msra.mxu0 0.0
        %1329 = vmatprep.subr.mxu0 0.0
        %1330 = vmatpush1.xpose.msra.mxu0 0.0
        %1331 = vmatprep.subr.mxu0 0.0
        %1332 = vmatpush1.xpose.msra.mxu0 0.0
        %1333 = vmatprep.subr.mxu0 0.0
        %1334 = vmatpush1.xpose.msra.mxu0 0.0
        %1335 = vmatprep.subr.mxu0 0.0
        %1336 = vmatpush1.xpose.msra.mxu0 0.0
        %1337 = vmatprep.subr.mxu0 0.0
        %1338 = vmatpush1.xpose.msra.mxu0 0.0
        %1339 = vmatprep.subr.mxu0 0.0
        %1340 = vmatpush1.xpose.msra.mxu0 0.0
        %1341 = vmatprep.subr.mxu0 0.0
        %1342 = vmatpush1.xpose.msra.mxu0 0.0
        %1343 = vmatprep.subr.mxu0 0.0
        %1344 = vmatpush1.xpose.msra.mxu0 0.0
        %1345 = vmatprep.subr.mxu0 0.0
        %1346 = vmatpush1.xpose.msra.mxu0 0.0
        %1347 = vmatprep.subr.mxu0 0.0
        %1348 = vmatpush1.xpose.msra.mxu0 0.0
        %1349 = vmatprep.subr.mxu0 0.0
        %1350 = vmatpush1.xpose.msra.mxu0 0.0
        %1351 = vmatprep.subr.mxu0 0.0
        %1352 = vmatpush1.xpose.msra.mxu0 0.0
        %1353 = vmatprep.subr.mxu0 0.0
        %1354 = vmatpush1.xpose.msra.mxu0 0.0
        %1355 = vmatprep.subr.mxu0 0.0
        %1356 = vmatpush1.xpose.msra.mxu0 0.0
        %1357 = vmatprep.subr.mxu0 0.0
        %1358 = vmatpush1.xpose.msra.mxu0 0.0
        %1359 = vmatprep.subr.mxu0 0.0
        %1360 = vmatpush1.xpose.msra.mxu0 0.0
        %1361 = vmatprep.subr.mxu0 0.0
        %1362 = vmatpush1.xpose.msra.mxu0 0.0
        %1363 = vmatprep.subr.mxu0 0.0
        %1364 = vmatpush1.xpose.msra.mxu0 0.0
        %1365 = vmatprep.subr.mxu0 0.0
        %1366 = vmatpush1.xpose.msra.mxu0 0.0
        %1367 = vmatprep.subr.mxu0 0.0
        %1368 = vmatpush1.xpose.msra.mxu0 0.0
        %1369 = vmatprep.subr.mxu0 0.0
        %1370 = vmatpush1.xpose.msra.mxu0 0.0
        %1371 = vmatprep.subr.mxu0 0.0
        %1372 = vmatpush1.xpose.msra.mxu0 0.0
        %1373 = vmatprep.subr.mxu0 0.0
        %1374 = vmatpush1.xpose.msra.mxu0 0.0
        %1375 = vmatprep.subr.mxu0 0.0
        %1376 = vmatpush1.xpose.msra.mxu0 0.0
        %1377 = vmatprep.subr.mxu0 0.0
        %1378 = vmatpush1.xpose.msra.mxu0 0.0
        %1379 = vmatprep.mubr.f32.mxu0 0.0
        %1380 = vmatmul.mubr.f32.gmra.mrb[0].mxu0 %v1311
        %v1381 = vpop.f32.mrb[0].mxu0
        %v1382 = vadd.f32 0.0, %v1381
        %v1383 = vpop.f32.mrb[0].mxu0
        %1384 = vdwg.mxu0
        %v1385 = vmul.f32 %v1382, 0.35355338
        %v1386 = vsel %vm671, %v1385, -1e+30
        %v1387 = vsel %vm832, %v1386, -inf
        %1388 = vmax.xlane.f32.xlu0 %v1387
        %v1389 = vpop.xlane.xlu0 %1388
        %v1390 = vsub.f32 %v1386, %v1389
        %v1391 = vmul.f32 %v1390, 1.442695
        %v1392 = vpow.pop %v1391
        %v1393 = vsel %vm832, %v1392, 0.0
        %1394 = vadd.xlane.f32.xlu0 %v1393
        %v1395 = vpop.xlane.xlu0 %1394
        %v1396 = vrcp.pop %v1395
        %v1397 = vmul.f32 %v1392, %v1396
        %1398 = vrot.lane.b32.xlu0 %v817, 112
        %v1399 = vpop.permute.xlu0 %1398
        %v1402 = vsel %vm832, %v1397, 0
        %1404 = vmatprep.subr.mxu0 0.0
        %1405 = vmatpush1.msra.mxu0 %v1399
        %1406 = vmatprep.subr.mxu0 0.0
        %1407 = vmatpush1.msra.mxu0 0.0
        %1408 = vmatprep.subr.mxu0 0.0
        %1409 = vmatpush1.msra.mxu0 0.0
        %1410 = vmatprep.subr.mxu0 0.0
        %1411 = vmatpush1.msra.mxu0 0.0
        %1412 = vmatprep.subr.mxu0 0.0
        %1413 = vmatpush1.msra.mxu0 0.0
        %1414 = vmatprep.subr.mxu0 0.0
        %1415 = vmatpush1.msra.mxu0 0.0
        %1416 = vmatprep.subr.mxu0 0.0
        %1417 = vmatpush1.msra.mxu0 0.0
        %1418 = vmatprep.subr.mxu0 0.0
        %1419 = vmatpush1.msra.mxu0 0.0
        %1420 = vmatprep.subr.mxu0 0.0
        %1421 = vmatpush1.msra.mxu0 0.0
        %1422 = vmatprep.subr.mxu0 0.0
        %1423 = vmatpush1.msra.mxu0 0.0
        %1424 = vmatprep.subr.mxu0 0.0
        %1425 = vmatpush1.msra.mxu0 0.0
        %1426 = vmatprep.subr.mxu0 0.0
        %1427 = vmatpush1.msra.mxu0 0.0
        %1428 = vmatprep.subr.mxu0 0.0
        %1429 = vmatpush1.msra.mxu0 0.0
        %1430 = vmatprep.subr.mxu0 0.0
        %1431 = vmatpush1.msra.mxu0 0.0
        %1432 = vmatprep.subr.mxu0 0.0
        %1433 = vmatpush1.msra.mxu0 0.0
        %1434 = vmatprep.subr.mxu0 0.0
        %1435 = vmatpush1.msra.mxu0 0.0
        %1436 = vmatprep.subr.mxu0 0.0
        %1437 = vmatpush1.msra.mxu0 0.0
        %1438 = vmatprep.subr.mxu0 0.0
        %1439 = vmatpush1.msra.mxu0 0.0
        %1440 = vmatprep.subr.mxu0 0.0
        %1441 = vmatpush1.msra.mxu0 0.0
        %1442 = vmatprep.subr.mxu0 0.0
        %1443 = vmatpush1.msra.mxu0 0.0
        %1444 = vmatprep.subr.mxu0 0.0
        %1445 = vmatpush1.msra.mxu0 0.0
        %1446 = vmatprep.subr.mxu0 0.0
        %1447 = vmatpush1.msra.mxu0 0.0
        %1448 = vmatprep.subr.mxu0 0.0
        %1449 = vmatpush1.msra.mxu0 0.0
        %1450 = vmatprep.subr.mxu0 0.0
        %1451 = vmatpush1.msra.mxu0 0.0
        %1452 = vmatprep.subr.mxu0 0.0
        %1453 = vmatpush1.msra.mxu0 0.0
        %1454 = vmatprep.subr.mxu0 0.0
        %1455 = vmatpush1.msra.mxu0 0.0
        %1456 = vmatprep.subr.mxu0 0.0
        %1457 = vmatpush1.msra.mxu0 0.0
        %1458 = vmatprep.subr.mxu0 0.0
        %1459 = vmatpush1.msra.mxu0 0.0
        %1460 = vmatprep.subr.mxu0 0.0
        %1461 = vmatpush1.msra.mxu0 0.0
        %1462 = vmatprep.subr.mxu0 0.0
        %1463 = vmatpush1.msra.mxu0 0.0
        %1464 = vmatprep.subr.mxu0 0.0
        %1465 = vmatpush1.msra.mxu0 0.0
        %1466 = vmatprep.subr.mxu0 0.0
        %1467 = vmatpush1.msra.mxu0 0.0
        %1468 = vmatprep.mubr.f32.mxu0 0.0
        %1469 = vmatmul.mubr.f32.gmra.mrb[0].mxu0 %v1402
        %v1470 = vpop.f32.mrb[0].mxu0
        %v1471 = vadd.f32 0.0, %v1470
        %v1472 = vpop.f32.mrb[0].mxu0
        %1473 = vdwg.mxu0
        %v1475 = vsel %vm832, %v1471, 0
        %1477 = vmatprep.subr.mxu0 0.0
        %1478 = vmatpush1.msra.mxu0 %v823
        %1479 = vmatprep.subr.mxu0 0.0
        %1480 = vmatpush1.msra.mxu0 0.0
        %1481 = vmatprep.subr.mxu0 0.0
        %1482 = vmatpush1.msra.mxu0 0.0
        %1483 = vmatprep.subr.mxu0 0.0
        %1484 = vmatpush1.msra.mxu0 0.0
        %1485 = vmatprep.subr.mxu0 0.0
        %1486 = vmatpush1.msra.mxu0 0.0
        %1487 = vmatprep.subr.mxu0 0.0
        %1488 = vmatpush1.msra.mxu0 0.0
        %1489 = vmatprep.subr.mxu0 0.0
        %1490 = vmatpush1.msra.mxu0 0.0
        %1491 = vmatprep.subr.mxu0 0.0
        %1492 = vmatpush1.msra.mxu0 0.0
        %1493 = vmatprep.subr.mxu0 0.0
        %1494 = vmatpush1.msra.mxu0 0.0
        %1495 = vmatprep.subr.mxu0 0.0
        %1496 = vmatpush1.msra.mxu0 0.0
        %1497 = vmatprep.subr.mxu0 0.0
        %1498 = vmatpush1.msra.mxu0 0.0
        %1499 = vmatprep.subr.mxu0 0.0
        %1500 = vmatpush1.msra.mxu0 0.0
        %1501 = vmatprep.subr.mxu0 0.0
        %1502 = vmatpush1.msra.mxu0 0.0
        %1503 = vmatprep.subr.mxu0 0.0
        %1504 = vmatpush1.msra.mxu0 0.0
        %1505 = vmatprep.subr.mxu0 0.0
        %1506 = vmatpush1.msra.mxu0 0.0
        %1507 = vmatprep.subr.mxu0 0.0
        %1508 = vmatpush1.msra.mxu0 0.0
        %1509 = vmatprep.subr.mxu0 0.0
        %1510 = vmatpush1.msra.mxu0 0.0
        %1511 = vmatprep.subr.mxu0 0.0
        %1512 = vmatpush1.msra.mxu0 0.0
        %1513 = vmatprep.subr.mxu0 0.0
        %1514 = vmatpush1.msra.mxu0 0.0
        %1515 = vmatprep.subr.mxu0 0.0
        %1516 = vmatpush1.msra.mxu0 0.0
        %1517 = vmatprep.subr.mxu0 0.0
        %1518 = vmatpush1.msra.mxu0 0.0
        %1519 = vmatprep.subr.mxu0 0.0
        %1520 = vmatpush1.msra.mxu0 0.0
        %1521 = vmatprep.subr.mxu0 0.0
        %1522 = vmatpush1.msra.mxu0 0.0
        %1523 = vmatprep.subr.mxu0 0.0
        %1524 = vmatpush1.msra.mxu0 0.0
        %1525 = vmatprep.subr.mxu0 0.0
        %1526 = vmatpush1.msra.mxu0 0.0
        %1527 = vmatprep.subr.mxu0 0.0
        %1528 = vmatpush1.msra.mxu0 0.0
        %1529 = vmatprep.subr.mxu0 0.0
        %1530 = vmatpush1.msra.mxu0 0.0
        %1531 = vmatprep.subr.mxu0 0.0
        %1532 = vmatpush1.msra.mxu0 0.0
        %1533 = vmatprep.subr.mxu0 0.0
        %1534 = vmatpush1.msra.mxu0 0.0
        %1535 = vmatprep.subr.mxu0 0.0
        %1536 = vmatpush1.msra.mxu0 0.0
        %1537 = vmatprep.subr.mxu0 0.0
        %1538 = vmatpush1.msra.mxu0 0.0
        %1539 = vmatprep.subr.mxu0 0.0
        %1540 = vmatpush1.msra.mxu0 0.0
        %1541 = vmatprep.mubr.f32.mxu0 0.0
        %1542 = vmatmul.mubr.f32.gmra.mrb[0].mxu0 %v1475
        %v1543 = vpop.f32.mrb[0].mxu0
        %v1544 = vadd.f32 0.0, %v1543
        %v1545 = vpop.f32.mrb[0].mxu0
        %1546 = vdwg.mxu0
        %v1547 = vadd.f32 %v1304, %v1544
        %1548 = vrot.lane.b32.xlu0 %v815, 104
        %v1549 = vpop.permute.xlu0 %1548
        %1550 = vrot.lane.b32.xlu0 %v815, 40
        %v1551 = vpop.permute.xlu0 %1550
        %v1552 = vsel %vm832, %v1549, 0
        %v1554 = vsel %vm832, %v1551, 0
        %1556 = vmatprep.subr.mxu0 0.0
        %1557 = vmatpush1.xpose.msra.mxu0 %v1554
        %1558 = vmatprep.subr.mxu0 0.0
        %1559 = vmatpush1.xpose.msra.mxu0 0.0
        %1560 = vmatprep.subr.mxu0 0.0
        %1561 = vmatpush1.xpose.msra.mxu0 0.0
        %1562 = vmatprep.subr.mxu0 0.0
        %1563 = vmatpush1.xpose.msra.mxu0 0.0
        %1564 = vmatprep.subr.mxu0 0.0
        %1565 = vmatpush1.xpose.msra.mxu0 0.0
        %1566 = vmatprep.subr.mxu0 0.0
        %1567 = vmatpush1.xpose.msra.mxu0 0.0
        %1568 = vmatprep.subr.mxu0 0.0
        %1569 = vmatpush1.xpose.msra.mxu0 0.0
        %1570 = vmatprep.subr.mxu0 0.0
        %1571 = vmatpush1.xpose.msra.mxu0 0.0
        %1572 = vmatprep.subr.mxu0 0.0
        %1573 = vmatpush1.xpose.msra.mxu0 0.0
        %1574 = vmatprep.subr.mxu0 0.0
        %1575 = vmatpush1.xpose.msra.mxu0 0.0
        %1576 = vmatprep.subr.mxu0 0.0
        %1577 = vmatpush1.xpose.msra.mxu0 0.0
        %1578 = vmatprep.subr.mxu0 0.0
        %1579 = vmatpush1.xpose.msra.mxu0 0.0
        %1580 = vmatprep.subr.mxu0 0.0
        %1581 = vmatpush1.xpose.msra.mxu0 0.0
        %1582 = vmatprep.subr.mxu0 0.0
        %1583 = vmatpush1.xpose.msra.mxu0 0.0
        %1584 = vmatprep.subr.mxu0 0.0
        %1585 = vmatpush1.xpose.msra.mxu0 0.0
        %1586 = vmatprep.subr.mxu0 0.0
        %1587 = vmatpush1.xpose.msra.mxu0 0.0
        %1588 = vmatprep.subr.mxu0 0.0
        %1589 = vmatpush1.xpose.msra.mxu0 0.0
        %1590 = vmatprep.subr.mxu0 0.0
        %1591 = vmatpush1.xpose.msra.mxu0 0.0
        %1592 = vmatprep.subr.mxu0 0.0
        %1593 = vmatpush1.xpose.msra.mxu0 0.0
        %1594 = vmatprep.subr.mxu0 0.0
        %1595 = vmatpush1.xpose.msra.mxu0 0.0
        %1596 = vmatprep.subr.mxu0 0.0
        %1597 = vmatpush1.xpose.msra.mxu0 0.0
        %1598 = vmatprep.subr.mxu0 0.0
        %1599 = vmatpush1.xpose.msra.mxu0 0.0
        %1600 = vmatprep.subr.mxu0 0.0
        %1601 = vmatpush1.xpose.msra.mxu0 0.0
        %1602 = vmatprep.subr.mxu0 0.0
        %1603 = vmatpush1.xpose.msra.mxu0 0.0
        %1604 = vmatprep.subr.mxu0 0.0
        %1605 = vmatpush1.xpose.msra.mxu0 0.0
        %1606 = vmatprep.subr.mxu0 0.0
        %1607 = vmatpush1.xpose.msra.mxu0 0.0
        %1608 = vmatprep.subr.mxu0 0.0
        %1609 = vmatpush1.xpose.msra.mxu0 0.0
        %1610 = vmatprep.subr.mxu0 0.0
        %1611 = vmatpush1.xpose.msra.mxu0 0.0
        %1612 = vmatprep.subr.mxu0 0.0
        %1613 = vmatpush1.xpose.msra.mxu0 0.0
        %1614 = vmatprep.subr.mxu0 0.0
        %1615 = vmatpush1.xpose.msra.mxu0 0.0
        %1616 = vmatprep.subr.mxu0 0.0
        %1617 = vmatpush1.xpose.msra.mxu0 0.0
        %1618 = vmatprep.subr.mxu0 0.0
        %1619 = vmatpush1.xpose.msra.mxu0 0.0
        %1620 = vmatprep.mubr.f32.mxu0 0.0
        %1621 = vmatmul.mubr.f32.gmra.mrb[0].mxu0 %v1552
        %v1622 = vpop.f32.mrb[0].mxu0
        %v1623 = vadd.f32 0.0, %v1622
        %v1624 = vpop.f32.mrb[0].mxu0
        %1625 = vdwg.mxu0
        %v1626 = vmul.f32 %v1623, 0.35355338
        %v1627 = vsel %vm671, %v1626, -1e+30
        %v1628 = vsel %vm832, %v1627, -inf
        %1629 = vmax.xlane.f32.xlu0 %v1628
        %v1630 = vpop.xlane.xlu0 %1629
        %v1631 = vsub.f32 %v1627, %v1630
        %v1632 = vmul.f32 %v1631, 1.442695
        %v1633 = vpow.pop %v1632
        %v1634 = vsel %vm832, %v1633, 0.0
        %1635 = vadd.xlane.f32.xlu0 %v1634
        %v1636 = vpop.xlane.xlu0 %1635
        %v1637 = vrcp.pop %v1636
        %v1638 = vmul.f32 %v1633, %v1637
        %1639 = vrot.lane.b32.xlu0 %v817, 104
        %v1640 = vpop.permute.xlu0 %1639
        %v1643 = vsel %vm832, %v1638, 0
        %1645 = vmatprep.subr.mxu0 0.0
        %1646 = vmatpush1.msra.mxu0 %v1640
        %1647 = vmatprep.subr.mxu0 0.0
        %1648 = vmatpush1.msra.mxu0 0.0
        %1649 = vmatprep.subr.mxu0 0.0
        %1650 = vmatpush1.msra.mxu0 0.0
        %1651 = vmatprep.subr.mxu0 0.0
        %1652 = vmatpush1.msra.mxu0 0.0
        %1653 = vmatprep.subr.mxu0 0.0
        %1654 = vmatpush1.msra.mxu0 0.0
        %1655 = vmatprep.subr.mxu0 0.0
        %1656 = vmatpush1.msra.mxu0 0.0
        %1657 = vmatprep.subr.mxu0 0.0
        %1658 = vmatpush1.msra.mxu0 0.0
        %1659 = vmatprep.subr.mxu0 0.0
        %1660 = vmatpush1.msra.mxu0 0.0
        %1661 = vmatprep.subr.mxu0 0.0
        %1662 = vmatpush1.msra.mxu0 0.0
        %1663 = vmatprep.subr.mxu0 0.0
        %1664 = vmatpush1.msra.mxu0 0.0
        %1665 = vmatprep.subr.mxu0 0.0
        %1666 = vmatpush1.msra.mxu0 0.0
        %1667 = vmatprep.subr.mxu0 0.0
        %1668 = vmatpush1.msra.mxu0 0.0
        %1669 = vmatprep.subr.mxu0 0.0
        %1670 = vmatpush1.msra.mxu0 0.0
        %1671 = vmatprep.subr.mxu0 0.0
        %1672 = vmatpush1.msra.mxu0 0.0
        %1673 = vmatprep.subr.mxu0 0.0
        %1674 = vmatpush1.msra.mxu0 0.0
        %1675 = vmatprep.subr.mxu0 0.0
        %1676 = vmatpush1.msra.mxu0 0.0
        %1677 = vmatprep.subr.mxu0 0.0
        %1678 = vmatpush1.msra.mxu0 0.0
        %1679 = vmatprep.subr.mxu0 0.0
        %1680 = vmatpush1.msra.mxu0 0.0
        %1681 = vmatprep.subr.mxu0 0.0
        %1682 = vmatpush1.msra.mxu0 0.0
        %1683 = vmatprep.subr.mxu0 0.0
        %1684 = vmatpush1.msra.mxu0 0.0
        %1685 = vmatprep.subr.mxu0 0.0
        %1686 = vmatpush1.msra.mxu0 0.0
        %1687 = vmatprep.subr.mxu0 0.0
        %1688 = vmatpush1.msra.mxu0 0.0
        %1689 = vmatprep.subr.mxu0 0.0
        %1690 = vmatpush1.msra.mxu0 0.0
        %1691 = vmatprep.subr.mxu0 0.0
        %1692 = vmatpush1.msra.mxu0 0.0
        %1693 = vmatprep.subr.mxu0 0.0
        %1694 = vmatpush1.msra.mxu0 0.0
        %1695 = vmatprep.subr.mxu0 0.0
        %1696 = vmatpush1.msra.mxu0 0.0
        %1697 = vmatprep.subr.mxu0 0.0
        %1698 = vmatpush1.msra.mxu0 0.0
        %1699 = vmatprep.subr.mxu0 0.0
        %1700 = vmatpush1.msra.mxu0 0.0
        %1701 = vmatprep.subr.mxu0 0.0
        %1702 = vmatpush1.msra.mxu0 0.0
        %1703 = vmatprep.subr.mxu0 0.0
        %1704 = vmatpush1.msra.mxu0 0.0
        %1705 = vmatprep.subr.mxu0 0.0
        %1706 = vmatpush1.msra.mxu0 0.0
        %1707 = vmatprep.subr.mxu0 0.0
        %1708 = vmatpush1.msra.mxu0 0.0
        %1709 = vmatprep.mubr.f32.mxu0 0.0
        %1710 = vmatmul.mubr.f32.gmra.mrb[0].mxu0 %v1643
        %v1711 = vpop.f32.mrb[0].mxu0
        %v1712 = vadd.f32 0.0, %v1711
        %v1713 = vpop.f32.mrb[0].mxu0
        %1714 = vdwg.mxu0
        %v1716 = vsel %vm832, %v1712, 0
        %1718 = vmatprep.subr.mxu0 0.0
        %1719 = vmatpush1.msra.mxu0 %v824
        %1720 = vmatprep.subr.mxu0 0.0
        %1721 = vmatpush1.msra.mxu0 0.0
        %1722 = vmatprep.subr.mxu0 0.0
        %1723 = vmatpush1.msra.mxu0 0.0
        %1724 = vmatprep.subr.mxu0 0.0
        %1725 = vmatpush1.msra.mxu0 0.0
        %1726 = vmatprep.subr.mxu0 0.0
        %1727 = vmatpush1.msra.mxu0 0.0
        %1728 = vmatprep.subr.mxu0 0.0
        %1729 = vmatpush1.msra.mxu0 0.0
        %1730 = vmatprep.subr.mxu0 0.0
        %1731 = vmatpush1.msra.mxu0 0.0
        %1732 = vmatprep.subr.mxu0 0.0
        %1733 = vmatpush1.msra.mxu0 0.0
        %1734 = vmatprep.subr.mxu0 0.0
        %1735 = vmatpush1.msra.mxu0 0.0
        %1736 = vmatprep.subr.mxu0 0.0
        %1737 = vmatpush1.msra.mxu0 0.0
        %1738 = vmatprep.subr.mxu0 0.0
        %1739 = vmatpush1.msra.mxu0 0.0
        %1740 = vmatprep.subr.mxu0 0.0
        %1741 = vmatpush1.msra.mxu0 0.0
        %1742 = vmatprep.subr.mxu0 0.0
        %1743 = vmatpush1.msra.mxu0 0.0
        %1744 = vmatprep.subr.mxu0 0.0
        %1745 = vmatpush1.msra.mxu0 0.0
        %1746 = vmatprep.subr.mxu0 0.0
        %1747 = vmatpush1.msra.mxu0 0.0
        %1748 = vmatprep.subr.mxu0 0.0
        %1749 = vmatpush1.msra.mxu0 0.0
        %1750 = vmatprep.subr.mxu0 0.0
        %1751 = vmatpush1.msra.mxu0 0.0
        %1752 = vmatprep.subr.mxu0 0.0
        %1753 = vmatpush1.msra.mxu0 0.0
        %1754 = vmatprep.subr.mxu0 0.0
        %1755 = vmatpush1.msra.mxu0 0.0
        %1756 = vmatprep.subr.mxu0 0.0
        %1757 = vmatpush1.msra.mxu0 0.0
        %1758 = vmatprep.subr.mxu0 0.0
        %1759 = vmatpush1.msra.mxu0 0.0
        %1760 = vmatprep.subr.mxu0 0.0
        %1761 = vmatpush1.msra.mxu0 0.0
        %1762 = vmatprep.subr.mxu0 0.0
        %1763 = vmatpush1.msra.mxu0 0.0
        %1764 = vmatprep.subr.mxu0 0.0
        %1765 = vmatpush1.msra.mxu0 0.0
        %1766 = vmatprep.subr.mxu0 0.0
        %1767 = vmatpush1.msra.mxu0 0.0
        %1768 = vmatprep.subr.mxu0 0.0
        %1769 = vmatpush1.msra.mxu0 0.0
        %1770 = vmatprep.subr.mxu0 0.0
        %1771 = vmatpush1.msra.mxu0 0.0
        %1772 = vmatprep.subr.mxu0 0.0
        %1773 = vmatpush1.msra.mxu0 0.0
        %1774 = vmatprep.subr.mxu0 0.0
        %1775 = vmatpush1.msra.mxu0 0.0
        %1776 = vmatprep.subr.mxu0 0.0
        %1777 = vmatpush1.msra.mxu0 0.0
        %1778 = vmatprep.subr.mxu0 0.0
        %1779 = vmatpush1.msra.mxu0 0.0
        %1780 = vmatprep.subr.mxu0 0.0
        %1781 = vmatpush1.msra.mxu0 0.0
        %1782 = vmatprep.mubr.f32.mxu0 0.0
        %1783 = vmatmul.mubr.f32.gmra.mrb[0].mxu0 %v1716
        %v1784 = vpop.f32.mrb[0].mxu0
        %v1785 = vadd.f32 0.0, %v1784
        %v1786 = vpop.f32.mrb[0].mxu0
        %1787 = vdwg.mxu0
        %v1788 = vadd.f32 %v1547, %v1785
        %1789 = vrot.lane.b32.xlu0 %v815, 96
        %v1790 = vpop.permute.xlu0 %1789
        %1791 = vrot.lane.b32.xlu0 %v815, 32
        %v1792 = vpop.permute.xlu0 %1791
        %v1793 = vsel %vm832, %v1790, 0
        %v1795 = vsel %vm832, %v1792, 0
        %1797 = vmatprep.subr.mxu0 0.0
        %1798 = vmatpush1.xpose.msra.mxu0 %v1795
        %1799 = vmatprep.subr.mxu0 0.0
        %1800 = vmatpush1.xpose.msra.mxu0 0.0
        %1801 = vmatprep.subr.mxu0 0.0
        %1802 = vmatpush1.xpose.msra.mxu0 0.0
        %1803 = vmatprep.subr.mxu0 0.0
        %1804 = vmatpush1.xpose.msra.mxu0 0.0
        %1805 = vmatprep.subr.mxu0 0.0
        %1806 = vmatpush1.xpose.msra.mxu0 0.0
        %1807 = vmatprep.subr.mxu0 0.0
        %1808 = vmatpush1.xpose.msra.mxu0 0.0
        %1809 = vmatprep.subr.mxu0 0.0
        %1810 = vmatpush1.xpose.msra.mxu0 0.0
        %1811 = vmatprep.subr.mxu0 0.0
        %1812 = vmatpush1.xpose.msra.mxu0 0.0
        %1813 = vmatprep.subr.mxu0 0.0
        %1814 = vmatpush1.xpose.msra.mxu0 0.0
        %1815 = vmatprep.subr.mxu0 0.0
        %1816 = vmatpush1.xpose.msra.mxu0 0.0
        %1817 = vmatprep.subr.mxu0 0.0
        %1818 = vmatpush1.xpose.msra.mxu0 0.0
        %1819 = vmatprep.subr.mxu0 0.0
        %1820 = vmatpush1.xpose.msra.mxu0 0.0
        %1821 = vmatprep.subr.mxu0 0.0
        %1822 = vmatpush1.xpose.msra.mxu0 0.0
        %1823 = vmatprep.subr.mxu0 0.0
        %1824 = vmatpush1.xpose.msra.mxu0 0.0
        %1825 = vmatprep.subr.mxu0 0.0
        %1826 = vmatpush1.xpose.msra.mxu0 0.0
        %1827 = vmatprep.subr.mxu0 0.0
        %1828 = vmatpush1.xpose.msra.mxu0 0.0
        %1829 = vmatprep.subr.mxu0 0.0
        %1830 = vmatpush1.xpose.msra.mxu0 0.0
        %1831 = vmatprep.subr.mxu0 0.0
        %1832 = vmatpush1.xpose.msra.mxu0 0.0
        %1833 = vmatprep.subr.mxu0 0.0
        %1834 = vmatpush1.xpose.msra.mxu0 0.0
        %1835 = vmatprep.subr.mxu0 0.0
        %1836 = vmatpush1.xpose.msra.mxu0 0.0
        %1837 = vmatprep.subr.mxu0 0.0
        %1838 = vmatpush1.xpose.msra.mxu0 0.0
        %1839 = vmatprep.subr.mxu0 0.0
        %1840 = vmatpush1.xpose.msra.mxu0 0.0
        %1841 = vmatprep.subr.mxu0 0.0
        %1842 = vmatpush1.xpose.msra.mxu0 0.0
        %1843 = vmatprep.subr.mxu0 0.0
        %1844 = vmatpush1.xpose.msra.mxu0 0.0
        %1845 = vmatprep.subr.mxu0 0.0
        %1846 = vmatpush1.xpose.msra.mxu0 0.0
        %1847 = vmatprep.subr.mxu0 0.0
        %1848 = vmatpush1.xpose.msra.mxu0 0.0
        %1849 = vmatprep.subr.mxu0 0.0
        %1850 = vmatpush1.xpose.msra.mxu0 0.0
        %1851 = vmatprep.subr.mxu0 0.0
        %1852 = vmatpush1.xpose.msra.mxu0 0.0
        %1853 = vmatprep.subr.mxu0 0.0
        %1854 = vmatpush1.xpose.msra.mxu0 0.0
        %1855 = vmatprep.subr.mxu0 0.0
        %1856 = vmatpush1.xpose.msra.mxu0 0.0
        %1857 = vmatprep.subr.mxu0 0.0
        %1858 = vmatpush1.xpose.msra.mxu0 0.0
        %1859 = vmatprep.subr.mxu0 0.0
        %1860 = vmatpush1.xpose.msra.mxu0 0.0
        %1861 = vmatprep.mubr.f32.mxu0 0.0
        %1862 = vmatmul.mubr.f32.gmra.mrb[0].mxu0 %v1793
        %v1863 = vpop.f32.mrb[0].mxu0
        %v1864 = vadd.f32 0.0, %v1863
        %v1865 = vpop.f32.mrb[0].mxu0
        %1866 = vdwg.mxu0
        %v1867 = vmul.f32 %v1864, 0.35355338
        %v1868 = vsel %vm671, %v1867, -1e+30
        %v1869 = vsel %vm832, %v1868, -inf
        %1870 = vmax.xlane.f32.xlu0 %v1869
        %v1871 = vpop.xlane.xlu0 %1870
        %v1872 = vsub.f32 %v1868, %v1871
        %v1873 = vmul.f32 %v1872, 1.442695
        %v1874 = vpow.pop %v1873
        %v1875 = vsel %vm832, %v1874, 0.0
        %1876 = vadd.xlane.f32.xlu0 %v1875
        %v1877 = vpop.xlane.xlu0 %1876
        %v1878 = vrcp.pop %v1877
        %v1879 = vmul.f32 %v1874, %v1878
        %1880 = vrot.lane.b32.xlu0 %v817, 96
        %v1881 = vpop.permute.xlu0 %1880
        %v1884 = vsel %vm832, %v1879, 0
        %1886 = vmatprep.subr.mxu0 0.0
        %1887 = vmatpush1.msra.mxu0 %v1881
        %1888 = vmatprep.subr.mxu0 0.0
        %1889 = vmatpush1.msra.mxu0 0.0
        %1890 = vmatprep.subr.mxu0 0.0
        %1891 = vmatpush1.msra.mxu0 0.0
        %1892 = vmatprep.subr.mxu0 0.0
        %1893 = vmatpush1.msra.mxu0 0.0
        %1894 = vmatprep.subr.mxu0 0.0
        %1895 = vmatpush1.msra.mxu0 0.0
        %1896 = vmatprep.subr.mxu0 0.0
        %1897 = vmatpush1.msra.mxu0 0.0
        %1898 = vmatprep.subr.mxu0 0.0
        %1899 = vmatpush1.msra.mxu0 0.0
        %1900 = vmatprep.subr.mxu0 0.0
        %1901 = vmatpush1.msra.mxu0 0.0
        %1902 = vmatprep.subr.mxu0 0.0
        %1903 = vmatpush1.msra.mxu0 0.0
        %1904 = vmatprep.subr.mxu0 0.0
        %1905 = vmatpush1.msra.mxu0 0.0
        %1906 = vmatprep.subr.mxu0 0.0
        %1907 = vmatpush1.msra.mxu0 0.0
        %1908 = vmatprep.subr.mxu0 0.0
        %1909 = vmatpush1.msra.mxu0 0.0
        %1910 = vmatprep.subr.mxu0 0.0
        %1911 = vmatpush1.msra.mxu0 0.0
        %1912 = vmatprep.subr.mxu0 0.0
        %1913 = vmatpush1.msra.mxu0 0.0
        %1914 = vmatprep.subr.mxu0 0.0
        %1915 = vmatpush1.msra.mxu0 0.0
        %1916 = vmatprep.subr.mxu0 0.0
        %1917 = vmatpush1.msra.mxu0 0.0
        %1918 = vmatprep.subr.mxu0 0.0
        %1919 = vmatpush1.msra.mxu0 0.0
        %1920 = vmatprep.subr.mxu0 0.0
        %1921 = vmatpush1.msra.mxu0 0.0
        %1922 = vmatprep.subr.mxu0 0.0
        %1923 = vmatpush1.msra.mxu0 0.0
        %1924 = vmatprep.subr.mxu0 0.0
        %1925 = vmatpush1.msra.mxu0 0.0
        %1926 = vmatprep.subr.mxu0 0.0
        %1927 = vmatpush1.msra.mxu0 0.0
        %1928 = vmatprep.subr.mxu0 0.0
        %1929 = vmatpush1.msra.mxu0 0.0
        %1930 = vmatprep.subr.mxu0 0.0
        %1931 = vmatpush1.msra.mxu0 0.0
        %1932 = vmatprep.subr.mxu0 0.0
        %1933 = vmatpush1.msra.mxu0 0.0
        %1934 = vmatprep.subr.mxu0 0.0
        %1935 = vmatpush1.msra.mxu0 0.0
        %1936 = vmatprep.subr.mxu0 0.0
        %1937 = vmatpush1.msra.mxu0 0.0
        %1938 = vmatprep.subr.mxu0 0.0
        %1939 = vmatpush1.msra.mxu0 0.0
        %1940 = vmatprep.subr.mxu0 0.0
        %1941 = vmatpush1.msra.mxu0 0.0
        %1942 = vmatprep.subr.mxu0 0.0
        %1943 = vmatpush1.msra.mxu0 0.0
        %1944 = vmatprep.subr.mxu0 0.0
        %1945 = vmatpush1.msra.mxu0 0.0
        %1946 = vmatprep.subr.mxu0 0.0
        %1947 = vmatpush1.msra.mxu0 0.0
        %1948 = vmatprep.subr.mxu0 0.0
        %1949 = vmatpush1.msra.mxu0 0.0
        %1950 = vmatprep.mubr.f32.mxu0 0.0
        %1951 = vmatmul.mubr.f32.gmra.mrb[0].mxu0 %v1884
        %v1952 = vpop.f32.mrb[0].mxu0
        %v1953 = vadd.f32 0.0, %v1952
        %v1954 = vpop.f32.mrb[0].mxu0
        %1955 = vdwg.mxu0
        %v1957 = vsel %vm832, %v1953, 0
        %1959 = vmatprep.subr.mxu0 0.0
        %1960 = vmatpush1.msra.mxu0 %v825
        %1961 = vmatprep.subr.mxu0 0.0
        %1962 = vmatpush1.msra.mxu0 0.0
        %1963 = vmatprep.subr.mxu0 0.0
        %1964 = vmatpush1.msra.mxu0 0.0
        %1965 = vmatprep.subr.mxu0 0.0
        %1966 = vmatpush1.msra.mxu0 0.0
        %1967 = vmatprep.subr.mxu0 0.0
        %1968 = vmatpush1.msra.mxu0 0.0
        %1969 = vmatprep.subr.mxu0 0.0
        %1970 = vmatpush1.msra.mxu0 0.0
        %1971 = vmatprep.subr.mxu0 0.0
        %1972 = vmatpush1.msra.mxu0 0.0
        %1973 = vmatprep.subr.mxu0 0.0
        %1974 = vmatpush1.msra.mxu0 0.0
        %1975 = vmatprep.subr.mxu0 0.0
        %1976 = vmatpush1.msra.mxu0 0.0
        %1977 = vmatprep.subr.mxu0 0.0
        %1978 = vmatpush1.msra.mxu0 0.0
        %1979 = vmatprep.subr.mxu0 0.0
        %1980 = vmatpush1.msra.mxu0 0.0
        %1981 = vmatprep.subr.mxu0 0.0
        %1982 = vmatpush1.msra.mxu0 0.0
        %1983 = vmatprep.subr.mxu0 0.0
        %1984 = vmatpush1.msra.mxu0 0.0
        %1985 = vmatprep.subr.mxu0 0.0
        %1986 = vmatpush1.msra.mxu0 0.0
        %1987 = vmatprep.subr.mxu0 0.0
        %1988 = vmatpush1.msra.mxu0 0.0
        %1989 = vmatprep.subr.mxu0 0.0
        %1990 = vmatpush1.msra.mxu0 0.0
        %1991 = vmatprep.subr.mxu0 0.0
        %1992 = vmatpush1.msra.mxu0 0.0
        %1993 = vmatprep.subr.mxu0 0.0
        %1994 = vmatpush1.msra.mxu0 0.0
        %1995 = vmatprep.subr.mxu0 0.0
        %1996 = vmatpush1.msra.mxu0 0.0
        %1997 = vmatprep.subr.mxu0 0.0
        %1998 = vmatpush1.msra.mxu0 0.0
        %1999 = vmatprep.subr.mxu0 0.0
        %2000 = vmatpush1.msra.mxu0 0.0
        %2001 = vmatprep.subr.mxu0 0.0
        %2002 = vmatpush1.msra.mxu0 0.0
        %2003 = vmatprep.subr.mxu0 0.0
        %2004 = vmatpush1.msra.mxu0 0.0
        %2005 = vmatprep.subr.mxu0 0.0
        %2006 = vmatpush1.msra.mxu0 0.0
        %2007 = vmatprep.subr.mxu0 0.0
        %2008 = vmatpush1.msra.mxu0 0.0
        %2009 = vmatprep.subr.mxu0 0.0
        %2010 = vmatpush1.msra.mxu0 0.0
        %2011 = vmatprep.subr.mxu0 0.0
        %2012 = vmatpush1.msra.mxu0 0.0
        %2013 = vmatprep.subr.mxu0 0.0
        %2014 = vmatpush1.msra.mxu0 0.0
        %2015 = vmatprep.subr.mxu0 0.0
        %2016 = vmatpush1.msra.mxu0 0.0
        %2017 = vmatprep.subr.mxu0 0.0
        %2018 = vmatpush1.msra.mxu0 0.0
        %2019 = vmatprep.subr.mxu0 0.0
        %2020 = vmatpush1.msra.mxu0 0.0
        %2021 = vmatprep.subr.mxu0 0.0
        %2022 = vmatpush1.msra.mxu0 0.0
        %2023 = vmatprep.mubr.f32.mxu0 0.0
        %2024 = vmatmul.mubr.f32.gmra.mrb[0].mxu0 %v1957
        %v2025 = vpop.f32.mrb[0].mxu0
        %v2026 = vadd.f32 0.0, %v2025
        %v2027 = vpop.f32.mrb[0].mxu0
        %2028 = vdwg.mxu0
        %v2029 = vadd.f32 %v1788, %v2026
        %2030 = vrot.lane.b32.xlu0 %v815, 88
        %v2031 = vpop.permute.xlu0 %2030
        %2032 = vrot.lane.b32.xlu0 %v815, 24
        %v2033 = vpop.permute.xlu0 %2032
        %v2034 = vsel %vm832, %v2031, 0
        %v2036 = vsel %vm832, %v2033, 0
        %2038 = vmatprep.subr.mxu0 0.0
        %2039 = vmatpush1.xpose.msra.mxu0 %v2036
        %2040 = vmatprep.subr.mxu0 0.0
        %2041 = vmatpush1.xpose.msra.mxu0 0.0
        %2042 = vmatprep.subr.mxu0 0.0
        %2043 = vmatpush1.xpose.msra.mxu0 0.0
        %2044 = vmatprep.subr.mxu0 0.0
        %2045 = vmatpush1.xpose.msra.mxu0 0.0
        %2046 = vmatprep.subr.mxu0 0.0
        %2047 = vmatpush1.xpose.msra.mxu0 0.0
        %2048 = vmatprep.subr.mxu0 0.0
        %2049 = vmatpush1.xpose.msra.mxu0 0.0
        %2050 = vmatprep.subr.mxu0 0.0
        %2051 = vmatpush1.xpose.msra.mxu0 0.0
        %2052 = vmatprep.subr.mxu0 0.0
        %2053 = vmatpush1.xpose.msra.mxu0 0.0
        %2054 = vmatprep.subr.mxu0 0.0
        %2055 = vmatpush1.xpose.msra.mxu0 0.0
        %2056 = vmatprep.subr.mxu0 0.0
        %2057 = vmatpush1.xpose.msra.mxu0 0.0
        %2058 = vmatprep.subr.mxu0 0.0
        %2059 = vmatpush1.xpose.msra.mxu0 0.0
        %2060 = vmatprep.subr.mxu0 0.0
        %2061 = vmatpush1.xpose.msra.mxu0 0.0
        %2062 = vmatprep.subr.mxu0 0.0
        %2063 = vmatpush1.xpose.msra.mxu0 0.0
        %2064 = vmatprep.subr.mxu0 0.0
        %2065 = vmatpush1.xpose.msra.mxu0 0.0
        %2066 = vmatprep.subr.mxu0 0.0
        %2067 = vmatpush1.xpose.msra.mxu0 0.0
        %2068 = vmatprep.subr.mxu0 0.0
        %2069 = vmatpush1.xpose.msra.mxu0 0.0
        %2070 = vmatprep.subr.mxu0 0.0
        %2071 = vmatpush1.xpose.msra.mxu0 0.0
        %2072 = vmatprep.subr.mxu0 0.0
        %2073 = vmatpush1.xpose.msra.mxu0 0.0
        %2074 = vmatprep.subr.mxu0 0.0
        %2075 = vmatpush1.xpose.msra.mxu0 0.0
        %2076 = vmatprep.subr.mxu0 0.0
        %2077 = vmatpush1.xpose.msra.mxu0 0.0
        %2078 = vmatprep.subr.mxu0 0.0
        %2079 = vmatpush1.xpose.msra.mxu0 0.0
        %2080 = vmatprep.subr.mxu0 0.0
        %2081 = vmatpush1.xpose.msra.mxu0 0.0
        %2082 = vmatprep.subr.mxu0 0.0
        %2083 = vmatpush1.xpose.msra.mxu0 0.0
        %2084 = vmatprep.subr.mxu0 0.0
        %2085 = vmatpush1.xpose.msra.mxu0 0.0
        %2086 = vmatprep.subr.mxu0 0.0
        %2087 = vmatpush1.xpose.msra.mxu0 0.0
        %2088 = vmatprep.subr.mxu0 0.0
        %2089 = vmatpush1.xpose.msra.mxu0 0.0
        %2090 = vmatprep.subr.mxu0 0.0
        %2091 = vmatpush1.xpose.msra.mxu0 0.0
        %2092 = vmatprep.subr.mxu0 0.0
        %2093 = vmatpush1.xpose.msra.mxu0 0.0
        %2094 = vmatprep.subr.mxu0 0.0
        %2095 = vmatpush1.xpose.msra.mxu0 0.0
        %2096 = vmatprep.subr.mxu0 0.0
        %2097 = vmatpush1.xpose.msra.mxu0 0.0
        %2098 = vmatprep.subr.mxu0 0.0
        %2099 = vmatpush1.xpose.msra.mxu0 0.0
        %2100 = vmatprep.subr.mxu0 0.0
        %2101 = vmatpush1.xpose.msra.mxu0 0.0
        %2102 = vmatprep.mubr.f32.mxu0 0.0
        %2103 = vmatmul.mubr.f32.gmra.mrb[0].mxu0 %v2034
        %v2104 = vpop.f32.mrb[0].mxu0
        %v2105 = vadd.f32 0.0, %v2104
        %v2106 = vpop.f32.mrb[0].mxu0
        %2107 = vdwg.mxu0
        %v2108 = vmul.f32 %v2105, 0.35355338
        %v2109 = vsel %vm671, %v2108, -1e+30
        %v2110 = vsel %vm832, %v2109, -inf
        %2111 = vmax.xlane.f32.xlu0 %v2110
        %v2112 = vpop.xlane.xlu0 %2111
        %v2113 = vsub.f32 %v2109, %v2112
        %v2114 = vmul.f32 %v2113, 1.442695
        %v2115 = vpow.pop %v2114
        %v2116 = vsel %vm832, %v2115, 0.0
        %2117 = vadd.xlane.f32.xlu0 %v2116
        %v2118 = vpop.xlane.xlu0 %2117
        %v2119 = vrcp.pop %v2118
        %v2120 = vmul.f32 %v2115, %v2119
        %2121 = vrot.lane.b32.xlu0 %v817, 88
        %v2122 = vpop.permute.xlu0 %2121
        %v2125 = vsel %vm832, %v2120, 0
        %2127 = vmatprep.subr.mxu0 0.0
        %2128 = vmatpush1.msra.mxu0 %v2122
        %2129 = vmatprep.subr.mxu0 0.0
        %2130 = vmatpush1.msra.mxu0 0.0
        %2131 = vmatprep.subr.mxu0 0.0
        %2132 = vmatpush1.msra.mxu0 0.0
        %2133 = vmatprep.subr.mxu0 0.0
        %2134 = vmatpush1.msra.mxu0 0.0
        %2135 = vmatprep.subr.mxu0 0.0
        %2136 = vmatpush1.msra.mxu0 0.0
        %2137 = vmatprep.subr.mxu0 0.0
        %2138 = vmatpush1.msra.mxu0 0.0
        %2139 = vmatprep.subr.mxu0 0.0
        %2140 = vmatpush1.msra.mxu0 0.0
        %2141 = vmatprep.subr.mxu0 0.0
        %2142 = vmatpush1.msra.mxu0 0.0
        %2143 = vmatprep.subr.mxu0 0.0
        %2144 = vmatpush1.msra.mxu0 0.0
        %2145 = vmatprep.subr.mxu0 0.0
        %2146 = vmatpush1.msra.mxu0 0.0
        %2147 = vmatprep.subr.mxu0 0.0
        %2148 = vmatpush1.msra.mxu0 0.0
        %2149 = vmatprep.subr.mxu0 0.0
        %2150 = vmatpush1.msra.mxu0 0.0
        %2151 = vmatprep.subr.mxu0 0.0
        %2152 = vmatpush1.msra.mxu0 0.0
        %2153 = vmatprep.subr.mxu0 0.0
        %2154 = vmatpush1.msra.mxu0 0.0
        %2155 = vmatprep.subr.mxu0 0.0
        %2156 = vmatpush1.msra.mxu0 0.0
        %2157 = vmatprep.subr.mxu0 0.0
        %2158 = vmatpush1.msra.mxu0 0.0
        %2159 = vmatprep.subr.mxu0 0.0
        %2160 = vmatpush1.msra.mxu0 0.0
        %2161 = vmatprep.subr.mxu0 0.0
        %2162 = vmatpush1.msra.mxu0 0.0
        %2163 = vmatprep.subr.mxu0 0.0
        %2164 = vmatpush1.msra.mxu0 0.0
        %2165 = vmatprep.subr.mxu0 0.0
        %2166 = vmatpush1.msra.mxu0 0.0
        %2167 = vmatprep.subr.mxu0 0.0
        %2168 = vmatpush1.msra.mxu0 0.0
        %2169 = vmatprep.subr.mxu0 0.0
        %2170 = vmatpush1.msra.mxu0 0.0
        %2171 = vmatprep.subr.mxu0 0.0
        %2172 = vmatpush1.msra.mxu0 0.0
        %2173 = vmatprep.subr.mxu0 0.0
        %2174 = vmatpush1.msra.mxu0 0.0
        %2175 = vmatprep.subr.mxu0 0.0
        %2176 = vmatpush1.msra.mxu0 0.0
        %2177 = vmatprep.subr.mxu0 0.0
        %2178 = vmatpush1.msra.mxu0 0.0
        %2179 = vmatprep.subr.mxu0 0.0
        %2180 = vmatpush1.msra.mxu0 0.0
        %2181 = vmatprep.subr.mxu0 0.0
        %2182 = vmatpush1.msra.mxu0 0.0
        %2183 = vmatprep.subr.mxu0 0.0
        %2184 = vmatpush1.msra.mxu0 0.0
        %2185 = vmatprep.subr.mxu0 0.0
        %2186 = vmatpush1.msra.mxu0 0.0
        %2187 = vmatprep.subr.mxu0 0.0
        %2188 = vmatpush1.msra.mxu0 0.0
        %2189 = vmatprep.subr.mxu0 0.0
        %2190 = vmatpush1.msra.mxu0 0.0
        %2191 = vmatprep.mubr.f32.mxu0 0.0
        %2192 = vmatmul.mubr.f32.gmra.mrb[0].mxu0 %v2125
        %v2193 = vpop.f32.mrb[0].mxu0
        %v2194 = vadd.f32 0.0, %v2193
        %v2195 = vpop.f32.mrb[0].mxu0
        %2196 = vdwg.mxu0
        %v2198 = vsel %vm832, %v2194, 0
        %2200 = vmatprep.subr.mxu0 0.0
        %2201 = vmatpush1.msra.mxu0 %v826
        %2202 = vmatprep.subr.mxu0 0.0
        %2203 = vmatpush1.msra.mxu0 0.0
        %2204 = vmatprep.subr.mxu0 0.0
        %2205 = vmatpush1.msra.mxu0 0.0
        %2206 = vmatprep.subr.mxu0 0.0
        %2207 = vmatpush1.msra.mxu0 0.0
        %2208 = vmatprep.subr.mxu0 0.0
        %2209 = vmatpush1.msra.mxu0 0.0
        %2210 = vmatprep.subr.mxu0 0.0
        %2211 = vmatpush1.msra.mxu0 0.0
        %2212 = vmatprep.subr.mxu0 0.0
        %2213 = vmatpush1.msra.mxu0 0.0
        %2214 = vmatprep.subr.mxu0 0.0
        %2215 = vmatpush1.msra.mxu0 0.0
        %2216 = vmatprep.subr.mxu0 0.0
        %2217 = vmatpush1.msra.mxu0 0.0
        %2218 = vmatprep.subr.mxu0 0.0
        %2219 = vmatpush1.msra.mxu0 0.0
        %2220 = vmatprep.subr.mxu0 0.0
        %2221 = vmatpush1.msra.mxu0 0.0
        %2222 = vmatprep.subr.mxu0 0.0
        %2223 = vmatpush1.msra.mxu0 0.0
        %2224 = vmatprep.subr.mxu0 0.0
        %2225 = vmatpush1.msra.mxu0 0.0
        %2226 = vmatprep.subr.mxu0 0.0
        %2227 = vmatpush1.msra.mxu0 0.0
        %2228 = vmatprep.subr.mxu0 0.0
        %2229 = vmatpush1.msra.mxu0 0.0
        %2230 = vmatprep.subr.mxu0 0.0
        %2231 = vmatpush1.msra.mxu0 0.0
        %2232 = vmatprep.subr.mxu0 0.0
        %2233 = vmatpush1.msra.mxu0 0.0
        %2234 = vmatprep.subr.mxu0 0.0
        %2235 = vmatpush1.msra.mxu0 0.0
        %2236 = vmatprep.subr.mxu0 0.0
        %2237 = vmatpush1.msra.mxu0 0.0
        %2238 = vmatprep.subr.mxu0 0.0
        %2239 = vmatpush1.msra.mxu0 0.0
        %2240 = vmatprep.subr.mxu0 0.0
        %2241 = vmatpush1.msra.mxu0 0.0
        %2242 = vmatprep.subr.mxu0 0.0
        %2243 = vmatpush1.msra.mxu0 0.0
        %2244 = vmatprep.subr.mxu0 0.0
        %2245 = vmatpush1.msra.mxu0 0.0
        %2246 = vmatprep.subr.mxu0 0.0
        %2247 = vmatpush1.msra.mxu0 0.0
        %2248 = vmatprep.subr.mxu0 0.0
        %2249 = vmatpush1.msra.mxu0 0.0
        %2250 = vmatprep.subr.mxu0 0.0
        %2251 = vmatpush1.msra.mxu0 0.0
        %2252 = vmatprep.subr.mxu0 0.0
        %2253 = vmatpush1.msra.mxu0 0.0
        %2254 = vmatprep.subr.mxu0 0.0
        %2255 = vmatpush1.msra.mxu0 0.0
        %2256 = vmatprep.subr.mxu0 0.0
        %2257 = vmatpush1.msra.mxu0 0.0
        %2258 = vmatprep.subr.mxu0 0.0
        %2259 = vmatpush1.msra.mxu0 0.0
        %2260 = vmatprep.subr.mxu0 0.0
        %2261 = vmatpush1.msra.mxu0 0.0
        %2262 = vmatprep.subr.mxu0 0.0
        %2263 = vmatpush1.msra.mxu0 0.0
        %2264 = vmatprep.mubr.f32.mxu0 0.0
        %2265 = vmatmul.mubr.f32.gmra.mrb[0].mxu0 %v2198
        %v2266 = vpop.f32.mrb[0].mxu0
        %v2267 = vadd.f32 0.0, %v2266
        %v2268 = vpop.f32.mrb[0].mxu0
        %2269 = vdwg.mxu0
        %v2270 = vadd.f32 %v2029, %v2267
        %2271 = vrot.lane.b32.xlu0 %v815, 80
        %v2272 = vpop.permute.xlu0 %2271
        %2273 = vrot.lane.b32.xlu0 %v815, 16
        %v2274 = vpop.permute.xlu0 %2273
        %v2275 = vsel %vm832, %v2272, 0
        %v2277 = vsel %vm832, %v2274, 0
        %2279 = vmatprep.subr.mxu0 0.0
        %2280 = vmatpush1.xpose.msra.mxu0 %v2277
        %2281 = vmatprep.subr.mxu0 0.0
        %2282 = vmatpush1.xpose.msra.mxu0 0.0
        %2283 = vmatprep.subr.mxu0 0.0
        %2284 = vmatpush1.xpose.msra.mxu0 0.0
        %2285 = vmatprep.subr.mxu0 0.0
        %2286 = vmatpush1.xpose.msra.mxu0 0.0
        %2287 = vmatprep.subr.mxu0 0.0
        %2288 = vmatpush1.xpose.msra.mxu0 0.0
        %2289 = vmatprep.subr.mxu0 0.0
        %2290 = vmatpush1.xpose.msra.mxu0 0.0
        %2291 = vmatprep.subr.mxu0 0.0
        %2292 = vmatpush1.xpose.msra.mxu0 0.0
        %2293 = vmatprep.subr.mxu0 0.0
        %2294 = vmatpush1.xpose.msra.mxu0 0.0
        %2295 = vmatprep.subr.mxu0 0.0
        %2296 = vmatpush1.xpose.msra.mxu0 0.0
        %2297 = vmatprep.subr.mxu0 0.0
        %2298 = vmatpush1.xpose.msra.mxu0 0.0
        %2299 = vmatprep.subr.mxu0 0.0
        %2300 = vmatpush1.xpose.msra.mxu0 0.0
        %2301 = vmatprep.subr.mxu0 0.0
        %2302 = vmatpush1.xpose.msra.mxu0 0.0
        %2303 = vmatprep.subr.mxu0 0.0
        %2304 = vmatpush1.xpose.msra.mxu0 0.0
        %2305 = vmatprep.subr.mxu0 0.0
        %2306 = vmatpush1.xpose.msra.mxu0 0.0
        %2307 = vmatprep.subr.mxu0 0.0
        %2308 = vmatpush1.xpose.msra.mxu0 0.0
        %2309 = vmatprep.subr.mxu0 0.0
        %2310 = vmatpush1.xpose.msra.mxu0 0.0
        %2311 = vmatprep.subr.mxu0 0.0
        %2312 = vmatpush1.xpose.msra.mxu0 0.0
        %2313 = vmatprep.subr.mxu0 0.0
        %2314 = vmatpush1.xpose.msra.mxu0 0.0
        %2315 = vmatprep.subr.mxu0 0.0
        %2316 = vmatpush1.xpose.msra.mxu0 0.0
        %2317 = vmatprep.subr.mxu0 0.0
        %2318 = vmatpush1.xpose.msra.mxu0 0.0
        %2319 = vmatprep.subr.mxu0 0.0
        %2320 = vmatpush1.xpose.msra.mxu0 0.0
        %2321 = vmatprep.subr.mxu0 0.0
        %2322 = vmatpush1.xpose.msra.mxu0 0.0
        %2323 = vmatprep.subr.mxu0 0.0
        %2324 = vmatpush1.xpose.msra.mxu0 0.0
        %2325 = vmatprep.subr.mxu0 0.0
        %2326 = vmatpush1.xpose.msra.mxu0 0.0
        %2327 = vmatprep.subr.mxu0 0.0
        %2328 = vmatpush1.xpose.msra.mxu0 0.0
        %2329 = vmatprep.subr.mxu0 0.0
        %2330 = vmatpush1.xpose.msra.mxu0 0.0
        %2331 = vmatprep.subr.mxu0 0.0
        %2332 = vmatpush1.xpose.msra.mxu0 0.0
        %2333 = vmatprep.subr.mxu0 0.0
        %2334 = vmatpush1.xpose.msra.mxu0 0.0
        %2335 = vmatprep.subr.mxu0 0.0
        %2336 = vmatpush1.xpose.msra.mxu0 0.0
        %2337 = vmatprep.subr.mxu0 0.0
        %2338 = vmatpush1.xpose.msra.mxu0 0.0
        %2339 = vmatprep.subr.mxu0 0.0
        %2340 = vmatpush1.xpose.msra.mxu0 0.0
        %2341 = vmatprep.subr.mxu0 0.0
        %2342 = vmatpush1.xpose.msra.mxu0 0.0
        %2343 = vmatprep.mubr.f32.mxu0 0.0
        %2344 = vmatmul.mubr.f32.gmra.mrb[0].mxu0 %v2275
        %v2345 = vpop.f32.mrb[0].mxu0
        %v2346 = vadd.f32 0.0, %v2345
        %v2347 = vpop.f32.mrb[0].mxu0
        %2348 = vdwg.mxu0
        %v2349 = vmul.f32 %v2346, 0.35355338
        %v2350 = vsel %vm671, %v2349, -1e+30
        %v2351 = vsel %vm832, %v2350, -inf
        %2352 = vmax.xlane.f32.xlu0 %v2351
        %v2353 = vpop.xlane.xlu0 %2352
        %v2354 = vsub.f32 %v2350, %v2353
        %v2355 = vmul.f32 %v2354, 1.442695
        %v2356 = vpow.pop %v2355
        %v2357 = vsel %vm832, %v2356, 0.0
        %2358 = vadd.xlane.f32.xlu0 %v2357
        %v2359 = vpop.xlane.xlu0 %2358
        %v2360 = vrcp.pop %v2359
        %v2361 = vmul.f32 %v2356, %v2360
        %2362 = vrot.lane.b32.xlu0 %v817, 80
        %v2363 = vpop.permute.xlu0 %2362
        %v2366 = vsel %vm832, %v2361, 0
        %2368 = vmatprep.subr.mxu0 0.0
        %2369 = vmatpush1.msra.mxu0 %v2363
        %2370 = vmatprep.subr.mxu0 0.0
        %2371 = vmatpush1.msra.mxu0 0.0
        %2372 = vmatprep.subr.mxu0 0.0
        %2373 = vmatpush1.msra.mxu0 0.0
        %2374 = vmatprep.subr.mxu0 0.0
        %2375 = vmatpush1.msra.mxu0 0.0
        %2376 = vmatprep.subr.mxu0 0.0
        %2377 = vmatpush1.msra.mxu0 0.0
        %2378 = vmatprep.subr.mxu0 0.0
        %2379 = vmatpush1.msra.mxu0 0.0
        %2380 = vmatprep.subr.mxu0 0.0
        %2381 = vmatpush1.msra.mxu0 0.0
        %2382 = vmatprep.subr.mxu0 0.0
        %2383 = vmatpush1.msra.mxu0 0.0
        %2384 = vmatprep.subr.mxu0 0.0
        %2385 = vmatpush1.msra.mxu0 0.0
        %2386 = vmatprep.subr.mxu0 0.0
        %2387 = vmatpush1.msra.mxu0 0.0
        %2388 = vmatprep.subr.mxu0 0.0
        %2389 = vmatpush1.msra.mxu0 0.0
        %2390 = vmatprep.subr.mxu0 0.0
        %2391 = vmatpush1.msra.mxu0 0.0
        %2392 = vmatprep.subr.mxu0 0.0
        %2393 = vmatpush1.msra.mxu0 0.0
        %2394 = vmatprep.subr.mxu0 0.0
        %2395 = vmatpush1.msra.mxu0 0.0
        %2396 = vmatprep.subr.mxu0 0.0
        %2397 = vmatpush1.msra.mxu0 0.0
        %2398 = vmatprep.subr.mxu0 0.0
        %2399 = vmatpush1.msra.mxu0 0.0
        %2400 = vmatprep.subr.mxu0 0.0
        %2401 = vmatpush1.msra.mxu0 0.0
        %2402 = vmatprep.subr.mxu0 0.0
        %2403 = vmatpush1.msra.mxu0 0.0
        %2404 = vmatprep.subr.mxu0 0.0
        %2405 = vmatpush1.msra.mxu0 0.0
        %2406 = vmatprep.subr.mxu0 0.0
        %2407 = vmatpush1.msra.mxu0 0.0
        %2408 = vmatprep.subr.mxu0 0.0
        %2409 = vmatpush1.msra.mxu0 0.0
        %2410 = vmatprep.subr.mxu0 0.0
        %2411 = vmatpush1.msra.mxu0 0.0
        %2412 = vmatprep.subr.mxu0 0.0
        %2413 = vmatpush1.msra.mxu0 0.0
        %2414 = vmatprep.subr.mxu0 0.0
        %2415 = vmatpush1.msra.mxu0 0.0
        %2416 = vmatprep.subr.mxu0 0.0
        %2417 = vmatpush1.msra.mxu0 0.0
        %2418 = vmatprep.subr.mxu0 0.0
        %2419 = vmatpush1.msra.mxu0 0.0
        %2420 = vmatprep.subr.mxu0 0.0
        %2421 = vmatpush1.msra.mxu0 0.0
        %2422 = vmatprep.subr.mxu0 0.0
        %2423 = vmatpush1.msra.mxu0 0.0
        %2424 = vmatprep.subr.mxu0 0.0
        %2425 = vmatpush1.msra.mxu0 0.0
        %2426 = vmatprep.subr.mxu0 0.0
        %2427 = vmatpush1.msra.mxu0 0.0
        %2428 = vmatprep.subr.mxu0 0.0
        %2429 = vmatpush1.msra.mxu0 0.0
        %2430 = vmatprep.subr.mxu0 0.0
        %2431 = vmatpush1.msra.mxu0 0.0
        %2432 = vmatprep.mubr.f32.mxu0 0.0
        %2433 = vmatmul.mubr.f32.gmra.mrb[0].mxu0 %v2366
        %v2434 = vpop.f32.mrb[0].mxu0
        %v2435 = vadd.f32 0.0, %v2434
        %v2436 = vpop.f32.mrb[0].mxu0
        %2437 = vdwg.mxu0
        %v2439 = vsel %vm832, %v2435, 0
        %2441 = vmatprep.subr.mxu0 0.0
        %2442 = vmatpush1.msra.mxu0 %v827
        %2443 = vmatprep.subr.mxu0 0.0
        %2444 = vmatpush1.msra.mxu0 0.0
        %2445 = vmatprep.subr.mxu0 0.0
        %2446 = vmatpush1.msra.mxu0 0.0
        %2447 = vmatprep.subr.mxu0 0.0
        %2448 = vmatpush1.msra.mxu0 0.0
        %2449 = vmatprep.subr.mxu0 0.0
        %2450 = vmatpush1.msra.mxu0 0.0
        %2451 = vmatprep.subr.mxu0 0.0
        %2452 = vmatpush1.msra.mxu0 0.0
        %2453 = vmatprep.subr.mxu0 0.0
        %2454 = vmatpush1.msra.mxu0 0.0
        %2455 = vmatprep.subr.mxu0 0.0
        %2456 = vmatpush1.msra.mxu0 0.0
        %2457 = vmatprep.subr.mxu0 0.0
        %2458 = vmatpush1.msra.mxu0 0.0
        %2459 = vmatprep.subr.mxu0 0.0
        %2460 = vmatpush1.msra.mxu0 0.0
        %2461 = vmatprep.subr.mxu0 0.0
        %2462 = vmatpush1.msra.mxu0 0.0
        %2463 = vmatprep.subr.mxu0 0.0
        %2464 = vmatpush1.msra.mxu0 0.0
        %2465 = vmatprep.subr.mxu0 0.0
        %2466 = vmatpush1.msra.mxu0 0.0
        %2467 = vmatprep.subr.mxu0 0.0
        %2468 = vmatpush1.msra.mxu0 0.0
        %2469 = vmatprep.subr.mxu0 0.0
        %2470 = vmatpush1.msra.mxu0 0.0
        %2471 = vmatprep.subr.mxu0 0.0
        %2472 = vmatpush1.msra.mxu0 0.0
        %2473 = vmatprep.subr.mxu0 0.0
        %2474 = vmatpush1.msra.mxu0 0.0
        %2475 = vmatprep.subr.mxu0 0.0
        %2476 = vmatpush1.msra.mxu0 0.0
        %2477 = vmatprep.subr.mxu0 0.0
        %2478 = vmatpush1.msra.mxu0 0.0
        %2479 = vmatprep.subr.mxu0 0.0
        %2480 = vmatpush1.msra.mxu0 0.0
        %2481 = vmatprep.subr.mxu0 0.0
        %2482 = vmatpush1.msra.mxu0 0.0
        %2483 = vmatprep.subr.mxu0 0.0
        %2484 = vmatpush1.msra.mxu0 0.0
        %2485 = vmatprep.subr.mxu0 0.0
        %2486 = vmatpush1.msra.mxu0 0.0
        %2487 = vmatprep.subr.mxu0 0.0
        %2488 = vmatpush1.msra.mxu0 0.0
        %2489 = vmatprep.subr.mxu0 0.0
        %2490 = vmatpush1.msra.mxu0 0.0
        %2491 = vmatprep.subr.mxu0 0.0
        %2492 = vmatpush1.msra.mxu0 0.0
        %2493 = vmatprep.subr.mxu0 0.0
        %2494 = vmatpush1.msra.mxu0 0.0
        %2495 = vmatprep.subr.mxu0 0.0
        %2496 = vmatpush1.msra.mxu0 0.0
        %2497 = vmatprep.subr.mxu0 0.0
        %2498 = vmatpush1.msra.mxu0 0.0
        %2499 = vmatprep.subr.mxu0 0.0
        %2500 = vmatpush1.msra.mxu0 0.0
        %2501 = vmatprep.subr.mxu0 0.0
        %2502 = vmatpush1.msra.mxu0 0.0
        %2503 = vmatprep.subr.mxu0 0.0
        %2504 = vmatpush1.msra.mxu0 0.0
        %2505 = vmatprep.mubr.f32.mxu0 0.0
        %2506 = vmatmul.mubr.f32.gmra.mrb[0].mxu0 %v2439
        %v2507 = vpop.f32.mrb[0].mxu0
        %v2508 = vadd.f32 0.0, %v2507
        %v2509 = vpop.f32.mrb[0].mxu0
        %2510 = vdwg.mxu0
        %v2511 = vadd.f32 %v2270, %v2508
        %2512 = vrot.lane.b32.xlu0 %v815, 72
        %v2513 = vpop.permute.xlu0 %2512
        %2514 = vrot.lane.b32.xlu0 %v815, 8
        %v2515 = vpop.permute.xlu0 %2514
        %v2516 = vsel %vm832, %v2513, 0
        %v2518 = vsel %vm832, %v2515, 0
        %2520 = vmatprep.subr.mxu0 0.0
        %2521 = vmatpush1.xpose.msra.mxu0 %v2518
        %2522 = vmatprep.subr.mxu0 0.0
        %2523 = vmatpush1.xpose.msra.mxu0 0.0
        %2524 = vmatprep.subr.mxu0 0.0
        %2525 = vmatpush1.xpose.msra.mxu0 0.0
        %2526 = vmatprep.subr.mxu0 0.0
        %2527 = vmatpush1.xpose.msra.mxu0 0.0
        %2528 = vmatprep.subr.mxu0 0.0
        %2529 = vmatpush1.xpose.msra.mxu0 0.0
        %2530 = vmatprep.subr.mxu0 0.0
        %2531 = vmatpush1.xpose.msra.mxu0 0.0
        %2532 = vmatprep.subr.mxu0 0.0
        %2533 = vmatpush1.xpose.msra.mxu0 0.0
        %2534 = vmatprep.subr.mxu0 0.0
        %2535 = vmatpush1.xpose.msra.mxu0 0.0
        %2536 = vmatprep.subr.mxu0 0.0
        %2537 = vmatpush1.xpose.msra.mxu0 0.0
        %2538 = vmatprep.subr.mxu0 0.0
        %2539 = vmatpush1.xpose.msra.mxu0 0.0
        %2540 = vmatprep.subr.mxu0 0.0
        %2541 = vmatpush1.xpose.msra.mxu0 0.0
        %2542 = vmatprep.subr.mxu0 0.0
        %2543 = vmatpush1.xpose.msra.mxu0 0.0
        %2544 = vmatprep.subr.mxu0 0.0
        %2545 = vmatpush1.xpose.msra.mxu0 0.0
        %2546 = vmatprep.subr.mxu0 0.0
        %2547 = vmatpush1.xpose.msra.mxu0 0.0
        %2548 = vmatprep.subr.mxu0 0.0
        %2549 = vmatpush1.xpose.msra.mxu0 0.0
        %2550 = vmatprep.subr.mxu0 0.0
        %2551 = vmatpush1.xpose.msra.mxu0 0.0
        %2552 = vmatprep.subr.mxu0 0.0
        %2553 = vmatpush1.xpose.msra.mxu0 0.0
        %2554 = vmatprep.subr.mxu0 0.0
        %2555 = vmatpush1.xpose.msra.mxu0 0.0
        %2556 = vmatprep.subr.mxu0 0.0
        %2557 = vmatpush1.xpose.msra.mxu0 0.0
        %2558 = vmatprep.subr.mxu0 0.0
        %2559 = vmatpush1.xpose.msra.mxu0 0.0
        %2560 = vmatprep.subr.mxu0 0.0
        %2561 = vmatpush1.xpose.msra.mxu0 0.0
        %2562 = vmatprep.subr.mxu0 0.0
        %2563 = vmatpush1.xpose.msra.mxu0 0.0
        %2564 = vmatprep.subr.mxu0 0.0
        %2565 = vmatpush1.xpose.msra.mxu0 0.0
        %2566 = vmatprep.subr.mxu0 0.0
        %2567 = vmatpush1.xpose.msra.mxu0 0.0
        %2568 = vmatprep.subr.mxu0 0.0
        %2569 = vmatpush1.xpose.msra.mxu0 0.0
        %2570 = vmatprep.subr.mxu0 0.0
        %2571 = vmatpush1.xpose.msra.mxu0 0.0
        %2572 = vmatprep.subr.mxu0 0.0
        %2573 = vmatpush1.xpose.msra.mxu0 0.0
        %2574 = vmatprep.subr.mxu0 0.0
        %2575 = vmatpush1.xpose.msra.mxu0 0.0
        %2576 = vmatprep.subr.mxu0 0.0
        %2577 = vmatpush1.xpose.msra.mxu0 0.0
        %2578 = vmatprep.subr.mxu0 0.0
        %2579 = vmatpush1.xpose.msra.mxu0 0.0
        %2580 = vmatprep.subr.mxu0 0.0
        %2581 = vmatpush1.xpose.msra.mxu0 0.0
        %2582 = vmatprep.subr.mxu0 0.0
        %2583 = vmatpush1.xpose.msra.mxu0 0.0
        %2584 = vmatprep.mubr.f32.mxu0 0.0
        %2585 = vmatmul.mubr.f32.gmra.mrb[0].mxu0 %v2516
        %v2586 = vpop.f32.mrb[0].mxu0
        %v2587 = vadd.f32 0.0, %v2586
        %v2588 = vpop.f32.mrb[0].mxu0
        %2589 = vdwg.mxu0
        %v2590 = vmul.f32 %v2587, 0.35355338
        %v2591 = vsel %vm671, %v2590, -1e+30
        %v2592 = vsel %vm832, %v2591, -inf
        %2593 = vmax.xlane.f32.xlu0 %v2592
        %v2594 = vpop.xlane.xlu0 %2593
        %v2595 = vsub.f32 %v2591, %v2594
        %v2596 = vmul.f32 %v2595, 1.442695
        %v2597 = vpow.pop %v2596
        %v2598 = vsel %vm832, %v2597, 0.0
        %2599 = vadd.xlane.f32.xlu0 %v2598
        %v2600 = vpop.xlane.xlu0 %2599
        %v2601 = vrcp.pop %v2600
        %v2602 = vmul.f32 %v2597, %v2601
        %2603 = vrot.lane.b32.xlu0 %v817, 72
        %v2604 = vpop.permute.xlu0 %2603
        %v2607 = vsel %vm832, %v2602, 0
        %2609 = vmatprep.subr.mxu0 0.0
        %2610 = vmatpush1.msra.mxu0 %v2604
        %2611 = vmatprep.subr.mxu0 0.0
        %2612 = vmatpush1.msra.mxu0 0.0
        %2613 = vmatprep.subr.mxu0 0.0
        %2614 = vmatpush1.msra.mxu0 0.0
        %2615 = vmatprep.subr.mxu0 0.0
        %2616 = vmatpush1.msra.mxu0 0.0
        %2617 = vmatprep.subr.mxu0 0.0
        %2618 = vmatpush1.msra.mxu0 0.0
        %2619 = vmatprep.subr.mxu0 0.0
        %2620 = vmatpush1.msra.mxu0 0.0
        %2621 = vmatprep.subr.mxu0 0.0
        %2622 = vmatpush1.msra.mxu0 0.0
        %2623 = vmatprep.subr.mxu0 0.0
        %2624 = vmatpush1.msra.mxu0 0.0
        %2625 = vmatprep.subr.mxu0 0.0
        %2626 = vmatpush1.msra.mxu0 0.0
        %2627 = vmatprep.subr.mxu0 0.0
        %2628 = vmatpush1.msra.mxu0 0.0
        %2629 = vmatprep.subr.mxu0 0.0
        %2630 = vmatpush1.msra.mxu0 0.0
        %2631 = vmatprep.subr.mxu0 0.0
        %2632 = vmatpush1.msra.mxu0 0.0
        %2633 = vmatprep.subr.mxu0 0.0
        %2634 = vmatpush1.msra.mxu0 0.0
        %2635 = vmatprep.subr.mxu0 0.0
        %2636 = vmatpush1.msra.mxu0 0.0
        %2637 = vmatprep.subr.mxu0 0.0
        %2638 = vmatpush1.msra.mxu0 0.0
        %2639 = vmatprep.subr.mxu0 0.0
        %2640 = vmatpush1.msra.mxu0 0.0
        %2641 = vmatprep.subr.mxu0 0.0
        %2642 = vmatpush1.msra.mxu0 0.0
        %2643 = vmatprep.subr.mxu0 0.0
        %2644 = vmatpush1.msra.mxu0 0.0
        %2645 = vmatprep.subr.mxu0 0.0
        %2646 = vmatpush1.msra.mxu0 0.0
        %2647 = vmatprep.subr.mxu0 0.0
        %2648 = vmatpush1.msra.mxu0 0.0
        %2649 = vmatprep.subr.mxu0 0.0
        %2650 = vmatpush1.msra.mxu0 0.0
        %2651 = vmatprep.subr.mxu0 0.0
        %2652 = vmatpush1.msra.mxu0 0.0
        %2653 = vmatprep.subr.mxu0 0.0
        %2654 = vmatpush1.msra.mxu0 0.0
        %2655 = vmatprep.subr.mxu0 0.0
        %2656 = vmatpush1.msra.mxu0 0.0
        %2657 = vmatprep.subr.mxu0 0.0
        %2658 = vmatpush1.msra.mxu0 0.0
        %2659 = vmatprep.subr.mxu0 0.0
        %2660 = vmatpush1.msra.mxu0 0.0
        %2661 = vmatprep.subr.mxu0 0.0
        %2662 = vmatpush1.msra.mxu0 0.0
        %2663 = vmatprep.subr.mxu0 0.0
        %2664 = vmatpush1.msra.mxu0 0.0
        %2665 = vmatprep.subr.mxu0 0.0
        %2666 = vmatpush1.msra.mxu0 0.0
        %2667 = vmatprep.subr.mxu0 0.0
        %2668 = vmatpush1.msra.mxu0 0.0
        %2669 = vmatprep.subr.mxu0 0.0
        %2670 = vmatpush1.msra.mxu0 0.0
        %2671 = vmatprep.subr.mxu0 0.0
        %2672 = vmatpush1.msra.mxu0 0.0
        %2673 = vmatprep.mubr.f32.mxu0 0.0
        %2674 = vmatmul.mubr.f32.gmra.mrb[0].mxu0 %v2607
        %v2675 = vpop.f32.mrb[0].mxu0
        %v2676 = vadd.f32 0.0, %v2675
        %v2677 = vpop.f32.mrb[0].mxu0
        %2678 = vdwg.mxu0
        %v2680 = vsel %vm832, %v2676, 0
        %2682 = vmatprep.subr.mxu0 0.0
        %2683 = vmatpush1.msra.mxu0 %v828
        %2684 = vmatprep.subr.mxu0 0.0
        %2685 = vmatpush1.msra.mxu0 0.0
        %2686 = vmatprep.subr.mxu0 0.0
        %2687 = vmatpush1.msra.mxu0 0.0
        %2688 = vmatprep.subr.mxu0 0.0
        %2689 = vmatpush1.msra.mxu0 0.0
        %2690 = vmatprep.subr.mxu0 0.0
        %2691 = vmatpush1.msra.mxu0 0.0
        %2692 = vmatprep.subr.mxu0 0.0
        %2693 = vmatpush1.msra.mxu0 0.0
        %2694 = vmatprep.subr.mxu0 0.0
        %2695 = vmatpush1.msra.mxu0 0.0
        %2696 = vmatprep.subr.mxu0 0.0
        %2697 = vmatpush1.msra.mxu0 0.0
        %2698 = vmatprep.subr.mxu0 0.0
        %2699 = vmatpush1.msra.mxu0 0.0
        %2700 = vmatprep.subr.mxu0 0.0
        %2701 = vmatpush1.msra.mxu0 0.0
        %2702 = vmatprep.subr.mxu0 0.0
        %2703 = vmatpush1.msra.mxu0 0.0
        %2704 = vmatprep.subr.mxu0 0.0
        %2705 = vmatpush1.msra.mxu0 0.0
        %2706 = vmatprep.subr.mxu0 0.0
        %2707 = vmatpush1.msra.mxu0 0.0
        %2708 = vmatprep.subr.mxu0 0.0
        %2709 = vmatpush1.msra.mxu0 0.0
        %2710 = vmatprep.subr.mxu0 0.0
        %2711 = vmatpush1.msra.mxu0 0.0
        %2712 = vmatprep.subr.mxu0 0.0
        %2713 = vmatpush1.msra.mxu0 0.0
        %2714 = vmatprep.subr.mxu0 0.0
        %2715 = vmatpush1.msra.mxu0 0.0
        %2716 = vmatprep.subr.mxu0 0.0
        %2717 = vmatpush1.msra.mxu0 0.0
        %2718 = vmatprep.subr.mxu0 0.0
        %2719 = vmatpush1.msra.mxu0 0.0
        %2720 = vmatprep.subr.mxu0 0.0
        %2721 = vmatpush1.msra.mxu0 0.0
        %2722 = vmatprep.subr.mxu0 0.0
        %2723 = vmatpush1.msra.mxu0 0.0
        %2724 = vmatprep.subr.mxu0 0.0
        %2725 = vmatpush1.msra.mxu0 0.0
        %2726 = vmatprep.subr.mxu0 0.0
        %2727 = vmatpush1.msra.mxu0 0.0
        %2728 = vmatprep.subr.mxu0 0.0
        %2729 = vmatpush1.msra.mxu0 0.0
        %2730 = vmatprep.subr.mxu0 0.0
        %2731 = vmatpush1.msra.mxu0 0.0
        %2732 = vmatprep.subr.mxu0 0.0
        %2733 = vmatpush1.msra.mxu0 0.0
        %2734 = vmatprep.subr.mxu0 0.0
        %2735 = vmatpush1.msra.mxu0 0.0
        %2736 = vmatprep.subr.mxu0 0.0
        %2737 = vmatpush1.msra.mxu0 0.0
        %2738 = vmatprep.subr.mxu0 0.0
        %2739 = vmatpush1.msra.mxu0 0.0
        %2740 = vmatprep.subr.mxu0 0.0
        %2741 = vmatpush1.msra.mxu0 0.0
        %2742 = vmatprep.subr.mxu0 0.0
        %2743 = vmatpush1.msra.mxu0 0.0
        %2744 = vmatprep.subr.mxu0 0.0
        %2745 = vmatpush1.msra.mxu0 0.0
        %2746 = vmatprep.mubr.f32.mxu0 0.0
        %2747 = vmatmul.mubr.f32.gmra.mrb[0].mxu0 %v2680
        %v2748 = vpop.f32.mrb[0].mxu0
        %v2749 = vadd.f32 0.0, %v2748
        %v2750 = vpop.f32.mrb[0].mxu0
        %2751 = vdwg.mxu0
        %v2752 = vadd.f32 %v2511, %v2749
        %v2753 = vadd.f32 %v678, %v2752
        %s2754 = scalar_lea.vmem %s9, %s673
        %v2755 = vld [vmem:[%s2754] sm:$0x1]
        %v2757 = vlaneseq
        %v2758 = vshrl.u32 %v2757, 7
        %v2759 = vsub.s32 0, %v2758
        %v2760 = vrot.slane %v2755, %v2759
        %v2762 = vadd.f32 %v2753, %v2760
        %s2763 = scalar_lea.vmem %s10, %s673
        %v2764 = vld [vmem:[%s2763] sm:$0x1]
        %s2765 = scalar_lea.vmem %s11, %s673
        %v2766 = vld [vmem:[%s2765] sm:$0x1]
        %v2767 = vsel %vm683, %v2762, 0.0
        %2768 = vadd.xlane.f32.xlu0 %v2767
        %v2769 = vpop.xlane.xlu0 %2768
        %v2770 = vmul.f32 %v2769, %v687
        %v2771 = vsub.f32 %v2762, %v2770
        %v2772 = vmul.f32 %v2771, %v2771
        %v2773 = vsel %vm683, %v2772, 0.0
        %2774 = vadd.xlane.f32.xlu0 %v2773
        %v2775 = vpop.xlane.xlu0 %2774
        %v2776 = vmul.f32 %v2775, %v687
        %v2777 = vadd.f32 %v2776, 1e-05
        %v2778 = vrsqrt.pop %v2777
        %v2779 = vmul.f32 %v2771, %v2778
        %v2781 = vlaneseq
        %v2782 = vshrl.u32 %v2781, 7
        %v2783 = vsub.s32 0, %v2782
        %v2784 = vrot.slane %v2764, %v2783
        %v2786 = vmul.f32 %v2779, %v2784
        %v2788 = vlaneseq
        %v2789 = vshrl.u32 %v2788, 7
        %v2790 = vsub.s32 0, %v2789
        %v2791 = vrot.slane %v2766, %v2790
        %v2793 = vadd.f32 %v2786, %v2791
        %s2794 = smul.addr %s712, 8
        %s2795 = scalar_lea.vmem %s12, %s2794
        %v2796 = vld [vmem:[%s2795] sm:$0xff]
        %v2797 = vld [vmem:[%s2795 + $0x8] sm:$0xff]
        %v2798 = vld [vmem:[%s2795 + $0x10] sm:$0xff]
        %v2799 = vld [vmem:[%s2795 + $0x18] sm:$0xff]
        %v2800 = vld [vmem:[%s2795 + $0x20] sm:$0xff]
        %v2801 = vld [vmem:[%s2795 + $0x28] sm:$0xff]
        %v2802 = vld [vmem:[%s2795 + $0x30] sm:$0xff]
        %v2803 = vld [vmem:[%s2795 + $0x38] sm:$0xff]
        %v2804 = vld [vmem:[%s2795 + $0x40] sm:$0xff]
        %v2805 = vld [vmem:[%s2795 + $0x48] sm:$0xff]
        %v2806 = vld [vmem:[%s2795 + $0x50] sm:$0xff]
        %v2807 = vld [vmem:[%s2795 + $0x58] sm:$0xff]
        %v2808 = vld [vmem:[%s2795 + $0x60] sm:$0xff]
        %v2809 = vld [vmem:[%s2795 + $0x68] sm:$0xff]
        %v2810 = vld [vmem:[%s2795 + $0x70] sm:$0xff]
        %v2811 = vld [vmem:[%s2795 + $0x78] sm:$0xff]
        %s2812 = scalar_lea.vmem %s13, %s731
        %v2813 = vld [vmem:[%s2812] sm:$0x3]
        %v2815 = vlaneseq
        %v2816 = vshrl.u32 %v2815, 7
        %v2817 = vsub.s32 0, %v2816
        %v2818 = vrot.slane %v2813, %v2817
        %v2819 = vlaneseq
        %v2820 = vshrl.u32 %v2819, 7
        %v2821 = vsub.s32 1, %v2820
        %v2822 = vrot.slane %v2813, %v2821
        %v2826 = vsel %vm683, %v2793, 0
        %2828 = vmatprep.subr.mxu0 %v2797
        %2829 = vmatpush1.msra.mxu0 %v2796
        %2830 = vmatprep.subr.mxu0 %v2799
        %2831 = vmatpush1.msra.mxu0 %v2798
        %2832 = vmatprep.subr.mxu0 %v2801
        %2833 = vmatpush1.msra.mxu0 %v2800
        %2834 = vmatprep.subr.mxu0 %v2803
        %2835 = vmatpush1.msra.mxu0 %v2802
        %2836 = vmatprep.subr.mxu0 %v2805
        %2837 = vmatpush1.msra.mxu0 %v2804
        %2838 = vmatprep.subr.mxu0 %v2807
        %2839 = vmatpush1.msra.mxu0 %v2806
        %2840 = vmatprep.subr.mxu0 %v2809
        %2841 = vmatpush1.msra.mxu0 %v2808
        %2842 = vmatprep.subr.mxu0 %v2811
        %2843 = vmatpush1.msra.mxu0 %v2810
        %2844 = vmatprep.subr.mxu0 0.0
        %2845 = vmatpush1.msra.mxu0 0.0
        %2846 = vmatprep.subr.mxu0 0.0
        %2847 = vmatpush1.msra.mxu0 0.0
        %2848 = vmatprep.subr.mxu0 0.0
        %2849 = vmatpush1.msra.mxu0 0.0
        %2850 = vmatprep.subr.mxu0 0.0
        %2851 = vmatpush1.msra.mxu0 0.0
        %2852 = vmatprep.subr.mxu0 0.0
        %2853 = vmatpush1.msra.mxu0 0.0
        %2854 = vmatprep.subr.mxu0 0.0
        %2855 = vmatpush1.msra.mxu0 0.0
        %2856 = vmatprep.subr.mxu0 0.0
        %2857 = vmatpush1.msra.mxu0 0.0
        %2858 = vmatprep.subr.mxu0 0.0
        %2859 = vmatpush1.msra.mxu0 0.0
        %2860 = vmatprep.subr.mxu0 0.0
        %2861 = vmatpush1.msra.mxu0 0.0
        %2862 = vmatprep.subr.mxu0 0.0
        %2863 = vmatpush1.msra.mxu0 0.0
        %2864 = vmatprep.subr.mxu0 0.0
        %2865 = vmatpush1.msra.mxu0 0.0
        %2866 = vmatprep.subr.mxu0 0.0
        %2867 = vmatpush1.msra.mxu0 0.0
        %2868 = vmatprep.subr.mxu0 0.0
        %2869 = vmatpush1.msra.mxu0 0.0
        %2870 = vmatprep.subr.mxu0 0.0
        %2871 = vmatpush1.msra.mxu0 0.0
        %2872 = vmatprep.subr.mxu0 0.0
        %2873 = vmatpush1.msra.mxu0 0.0
        %2874 = vmatprep.subr.mxu0 0.0
        %2875 = vmatpush1.msra.mxu0 0.0
        %2876 = vmatprep.subr.mxu0 0.0
        %2877 = vmatpush1.msra.mxu0 0.0
        %2878 = vmatprep.subr.mxu0 0.0
        %2879 = vmatpush1.msra.mxu0 0.0
        %2880 = vmatprep.subr.mxu0 0.0
        %2881 = vmatpush1.msra.mxu0 0.0
        %2882 = vmatprep.subr.mxu0 0.0
        %2883 = vmatpush1.msra.mxu0 0.0
        %2884 = vmatprep.subr.mxu0 0.0
        %2885 = vmatpush1.msra.mxu0 0.0
        %2886 = vmatprep.subr.mxu0 0.0
        %2887 = vmatpush1.msra.mxu0 0.0
        %2888 = vmatprep.subr.mxu0 0.0
        %2889 = vmatpush1.msra.mxu0 0.0
        %2890 = vmatprep.subr.mxu0 0.0
        %2891 = vmatpush1.msra.mxu0 0.0
        %2892 = vmatprep.mubr.f32.mxu0 0.0
        %2893 = vmatmul.mubr.f32.gmra.mrb[0].mxu0 %v2826
        %v2894 = vpop.f32.mrb[0].mxu0
        %v2895 = vadd.f32 %v2818, %v2894
        %v2896 = vpop.f32.mrb[0].mxu0
        %v2897 = vadd.f32 %v2822, %v2896
        %2898 = vdwg.mxu0
        %v2899 = vmul.f32 %v2895, 0.5
        %v2900 = vmul.f32 %v2897, 0.5
        %v2901 = vmul.f32 %v2895, 0.044715
        %v2902 = vmul.f32 %v2897, 0.044715
        %v2903 = vmul.f32 %v2901, %v2895
        %v2904 = vmul.f32 %v2902, %v2897
        %v2905 = vmul.f32 %v2903, %v2895
        %v2906 = vmul.f32 %v2904, %v2897
        %v2907 = vadd.f32 %v2895, %v2905
        %v2908 = vadd.f32 %v2897, %v2906
        %v2909 = vmul.f32 %v2907, 0.7978846
        %v2910 = vmul.f32 %v2908, 0.7978846
        %v2911 = vtanh.pop %v2909
        %v2912 = vtanh.pop %v2910
        %v2913 = vadd.f32 %v2911, 1.0
        %v2914 = vadd.f32 %v2912, 1.0
        %v2915 = vmul.f32 %v2899, %v2913
        %v2916 = vmul.f32 %v2900, %v2914
        %s2917 = smul.u32 %s673, 256
        %s2918 = scalar_lea.vmem %s14, %s2917
        %v2919 = vld [vmem:[%s2918] sm:$0xff]
        %v2920 = vld [vmem:[%s2918 + $0x8] sm:$0xff]
        %v2921 = vld [vmem:[%s2918 + $0x10] sm:$0xff]
        %v2922 = vld [vmem:[%s2918 + $0x18] sm:$0xff]
        %v2923 = vld [vmem:[%s2918 + $0x20] sm:$0xff]
        %v2924 = vld [vmem:[%s2918 + $0x28] sm:$0xff]
        %v2925 = vld [vmem:[%s2918 + $0x30] sm:$0xff]
        %v2926 = vld [vmem:[%s2918 + $0x38] sm:$0xff]
        %v2927 = vld [vmem:[%s2918 + $0x40] sm:$0xff]
        %v2928 = vld [vmem:[%s2918 + $0x48] sm:$0xff]
        %v2929 = vld [vmem:[%s2918 + $0x50] sm:$0xff]
        %v2930 = vld [vmem:[%s2918 + $0x58] sm:$0xff]
        %v2931 = vld [vmem:[%s2918 + $0x60] sm:$0xff]
        %v2932 = vld [vmem:[%s2918 + $0x68] sm:$0xff]
        %v2933 = vld [vmem:[%s2918 + $0x70] sm:$0xff]
        %v2934 = vld [vmem:[%s2918 + $0x78] sm:$0xff]
        %v2935 = vld [vmem:[%s2918 + $0x80] sm:$0xff]
        %v2936 = vld [vmem:[%s2918 + $0x88] sm:$0xff]
        %v2937 = vld [vmem:[%s2918 + $0x90] sm:$0xff]
        %v2938 = vld [vmem:[%s2918 + $0x98] sm:$0xff]
        %v2939 = vld [vmem:[%s2918 + $0xa0] sm:$0xff]
        %v2940 = vld [vmem:[%s2918 + $0xa8] sm:$0xff]
        %v2941 = vld [vmem:[%s2918 + $0xb0] sm:$0xff]
        %v2942 = vld [vmem:[%s2918 + $0xb8] sm:$0xff]
        %v2943 = vld [vmem:[%s2918 + $0xc0] sm:$0xff]
        %v2944 = vld [vmem:[%s2918 + $0xc8] sm:$0xff]
        %v2945 = vld [vmem:[%s2918 + $0xd0] sm:$0xff]
        %v2946 = vld [vmem:[%s2918 + $0xd8] sm:$0xff]
        %v2947 = vld [vmem:[%s2918 + $0xe0] sm:$0xff]
        %v2948 = vld [vmem:[%s2918 + $0xe8] sm:$0xff]
        %v2949 = vld [vmem:[%s2918 + $0xf0] sm:$0xff]
        %v2950 = vld [vmem:[%s2918 + $0xf8] sm:$0xff]
        %s2951 = scalar_lea.vmem %s15, %s673
        %v2952 = vld [vmem:[%s2951] sm:$0x1]
        %v2954 = vlaneseq
        %v2955 = vshrl.u32 %v2954, 7
        %v2956 = vsub.s32 0, %v2955
        %v2957 = vrot.slane %v2952, %v2956
        %2959 = vmatprep.subr.mxu0 0.0
        %2960 = vmatpush1.msra.mxu0 %v2919
        %2961 = vmatprep.subr.mxu0 0.0
        %2962 = vmatpush1.msra.mxu0 %v2920
        %2963 = vmatprep.subr.mxu0 0.0
        %2964 = vmatpush1.msra.mxu0 %v2921
        %2965 = vmatprep.subr.mxu0 0.0
        %2966 = vmatpush1.msra.mxu0 %v2922
        %2967 = vmatprep.subr.mxu0 0.0
        %2968 = vmatpush1.msra.mxu0 %v2923
        %2969 = vmatprep.subr.mxu0 0.0
        %2970 = vmatpush1.msra.mxu0 %v2924
        %2971 = vmatprep.subr.mxu0 0.0
        %2972 = vmatpush1.msra.mxu0 %v2925
        %2973 = vmatprep.subr.mxu0 0.0
        %2974 = vmatpush1.msra.mxu0 %v2926
        %2975 = vmatprep.subr.mxu0 0.0
        %2976 = vmatpush1.msra.mxu0 %v2927
        %2977 = vmatprep.subr.mxu0 0.0
        %2978 = vmatpush1.msra.mxu0 %v2928
        %2979 = vmatprep.subr.mxu0 0.0
        %2980 = vmatpush1.msra.mxu0 %v2929
        %2981 = vmatprep.subr.mxu0 0.0
        %2982 = vmatpush1.msra.mxu0 %v2930
        %2983 = vmatprep.subr.mxu0 0.0
        %2984 = vmatpush1.msra.mxu0 %v2931
        %2985 = vmatprep.subr.mxu0 0.0
        %2986 = vmatpush1.msra.mxu0 %v2932
        %2987 = vmatprep.subr.mxu0 0.0
        %2988 = vmatpush1.msra.mxu0 %v2933
        %2989 = vmatprep.subr.mxu0 0.0
        %2990 = vmatpush1.msra.mxu0 %v2934
        %2991 = vmatprep.subr.mxu0 0.0
        %2992 = vmatpush1.msra.mxu0 %v2935
        %2993 = vmatprep.subr.mxu0 0.0
        %2994 = vmatpush1.msra.mxu0 %v2936
        %2995 = vmatprep.subr.mxu0 0.0
        %2996 = vmatpush1.msra.mxu0 %v2937
        %2997 = vmatprep.subr.mxu0 0.0
        %2998 = vmatpush1.msra.mxu0 %v2938
        %2999 = vmatprep.subr.mxu0 0.0
        %3000 = vmatpush1.msra.mxu0 %v2939
        %3001 = vmatprep.subr.mxu0 0.0
        %3002 = vmatpush1.msra.mxu0 %v2940
        %3003 = vmatprep.subr.mxu0 0.0
        %3004 = vmatpush1.msra.mxu0 %v2941
        %3005 = vmatprep.subr.mxu0 0.0
        %3006 = vmatpush1.msra.mxu0 %v2942
        %3007 = vmatprep.subr.mxu0 0.0
        %3008 = vmatpush1.msra.mxu0 %v2943
        %3009 = vmatprep.subr.mxu0 0.0
        %3010 = vmatpush1.msra.mxu0 %v2944
        %3011 = vmatprep.subr.mxu0 0.0
        %3012 = vmatpush1.msra.mxu0 %v2945
        %3013 = vmatprep.subr.mxu0 0.0
        %3014 = vmatpush1.msra.mxu0 %v2946
        %3015 = vmatprep.subr.mxu0 0.0
        %3016 = vmatpush1.msra.mxu0 %v2947
        %3017 = vmatprep.subr.mxu0 0.0
        %3018 = vmatpush1.msra.mxu0 %v2948
        %3019 = vmatprep.subr.mxu0 0.0
        %3020 = vmatpush1.msra.mxu0 %v2949
        %3021 = vmatprep.subr.mxu0 0.0
        %3022 = vmatpush1.msra.mxu0 %v2950
        %3023 = vmatprep.mubr.f32.mxu0 %v2916
        %3024 = vmatmul.mubr.f32.gmra.mrb[0].mxu0 %v2915
        %v3025 = vpop.f32.mrb[0].mxu0
        %v3026 = vadd.f32 %v2957, %v3025
        %v3027 = vpop.f32.mrb[0].mxu0
        %3028 = vdwg.mxu0
        %v3029 = vadd.f32 %v2762, %v3026
      $region105: #{forward.1} parent=99 // loop_footer
        %s677 = sadd.s32 1, %s673
      $region106: #{forward.1} parent=99 // loop_footer_branch
        %672 = sbr.rel target = $region102
      $region107: #{forward.1} parent=99 // loop_exit
        _
      %v3030 = vld [vmem:[%s16] sm:$0x1]
      %v3031 = vld [vmem:[%s17] sm:$0x1]
      %vm3032 = vcmask 523264
      %v3033 = vsel %vm3032, %v678, 0.0
      %3034 = vadd.xlane.f32.xlu0 %v3033
      %v3035 = vpop.xlane.xlu0 %3034
      %v3036 = vrcp.pop 64.0
      %v3037 = vmul.f32 %v3035, %v3036
      %v3038 = vsub.f32 %v678, %v3037
      %v3039 = vmul.f32 %v3038, %v3038
      %v3040 = vsel %vm3032, %v3039, 0.0
      %3041 = vadd.xlane.f32.xlu0 %v3040
      %v3042 = vpop.xlane.xlu0 %3041
      %v3043 = vmul.f32 %v3042, %v3036
      %v3044 = vadd.f32 %v3043, 1e-05
      %v3045 = vrsqrt.pop %v3044
      %v3046 = vmul.f32 %v3038, %v3045
      %v3048 = vlaneseq
      %v3049 = vshrl.u32 %v3048, 7
      %v3050 = vsub.s32 0, %v3049
      %v3051 = vrot.slane %v3030, %v3050
      %v3053 = vmul.f32 %v3046, %v3051
      %v3055 = vlaneseq
      %v3056 = vshrl.u32 %v3055, 7
      %v3057 = vsub.s32 0, %v3056
      %v3058 = vrot.slane %v3031, %v3057
      %v3060 = vadd.f32 %v3053, %v3058
      %v3061 = vld [vmem:[%s18] sm:$0xff]
      %v3062 = vld [vmem:[%s18 + $0x8] sm:$0xff]
      %v3063 = vld [vmem:[%s18 + $0x10] sm:$0xff]
      %v3064 = vld [vmem:[%s18 + $0x18] sm:$0xff]
      %v3065 = vld [vmem:[%s18 + $0x20] sm:$0xff]
      %v3066 = vld [vmem:[%s18 + $0x28] sm:$0xff]
      %v3067 = vld [vmem:[%s18 + $0x30] sm:$0xff]
      %v3068 = vld [vmem:[%s18 + $0x38] sm:$0xff]
      %v3069 = vld [vmem:[%s19] sm:$0x1]
      %v3071 = vlaneseq
      %v3072 = vshrl.u32 %v3071, 7
      %v3073 = vsub.s32 0, %v3072
      %v3074 = vrot.slane %v3069, %v3073
      %v3077 = vsel %vm3032, %v3060, 0
      %3079 = vmatprep.subr.mxu0 0.0
      %3080 = vmatpush1.msra.mxu0 %v3061
      %3081 = vmatprep.subr.mxu0 0.0
      %3082 = vmatpush1.msra.mxu0 %v3062
      %3083 = vmatprep.subr.mxu0 0.0
      %3084 = vmatpush1.msra.mxu0 %v3063
      %3085 = vmatprep.subr.mxu0 0.0
      %3086 = vmatpush1.msra.mxu0 %v3064
      %3087 = vmatprep.subr.mxu0 0.0
      %3088 = vmatpush1.msra.mxu0 %v3065
      %3089 = vmatprep.subr.mxu0 0.0
      %3090 = vmatpush1.msra.mxu0 %v3066
      %3091 = vmatprep.subr.mxu0 0.0
      %3092 = vmatpush1.msra.mxu0 %v3067
      %3093 = vmatprep.subr.mxu0 0.0
      %3094 = vmatpush1.msra.mxu0 %v3068
      %3095 = vmatprep.subr.mxu0 0.0
      %3096 = vmatpush1.msra.mxu0 0.0
      %3097 = vmatprep.subr.mxu0 0.0
      %3098 = vmatpush1.msra.mxu0 0.0
      %3099 = vmatprep.subr.mxu0 0.0
      %3100 = vmatpush1.msra.mxu0 0.0
      %3101 = vmatprep.subr.mxu0 0.0
      %3102 = vmatpush1.msra.mxu0 0.0
      %3103 = vmatprep.subr.mxu0 0.0
      %3104 = vmatpush1.msra.mxu0 0.0
      %3105 = vmatprep.subr.mxu0 0.0
      %3106 = vmatpush1.msra.mxu0 0.0
      %3107 = vmatprep.subr.mxu0 0.0
      %3108 = vmatpush1.msra.mxu0 0.0
      %3109 = vmatprep.subr.mxu0 0.0
      %3110 = vmatpush1.msra.mxu0 0.0
      %3111 = vmatprep.subr.mxu0 0.0
      %3112 = vmatpush1.msra.mxu0 0.0
      %3113 = vmatprep.subr.mxu0 0.0
      %3114 = vmatpush1.msra.mxu0 0.0
      %3115 = vmatprep.subr.mxu0 0.0
      %3116 = vmatpush1.msra.mxu0 0.0
      %3117 = vmatprep.subr.mxu0 0.0
      %3118 = vmatpush1.msra.mxu0 0.0
      %3119 = vmatprep.subr.mxu0 0.0
      %3120 = vmatpush1.msra.mxu0 0.0
      %3121 = vmatprep.subr.mxu0 0.0
      %3122 = vmatpush1.msra.mxu0 0.0
      %3123 = vmatprep.subr.mxu0 0.0
      %3124 = vmatpush1.msra.mxu0 0.0
      %3125 = vmatprep.subr.mxu0 0.0
      %3126 = vmatpush1.msra.mxu0 0.0
      %3127 = vmatprep.subr.mxu0 0.0
      %3128 = vmatpush1.msra.mxu0 0.0
      %3129 = vmatprep.subr.mxu0 0.0
      %3130 = vmatpush1.msra.mxu0 0.0
      %3131 = vmatprep.subr.mxu0 0.0
      %3132 = vmatpush1.msra.mxu0 0.0
      %3133 = vmatprep.subr.mxu0 0.0
      %3134 = vmatpush1.msra.mxu0 0.0
      %3135 = vmatprep.subr.mxu0 0.0
      %3136 = vmatpush1.msra.mxu0 0.0
      %3137 = vmatprep.subr.mxu0 0.0
      %3138 = vmatpush1.msra.mxu0 0.0
      %3139 = vmatprep.subr.mxu0 0.0
      %3140 = vmatpush1.msra.mxu0 0.0
      %3141 = vmatprep.subr.mxu0 0.0
      %3142 = vmatpush1.msra.mxu0 0.0
      %3143 = vmatprep.mubr.f32.mxu0 0.0
      %3144 = vmatmul.mubr.f32.gmra.mrb[0].mxu0 %v3077
      %v3145 = vpop.f32.mrb[0].mxu0
      %v3146 = vadd.f32 %v3074, %v3145
      %v3147 = vpop.f32.mrb[0].mxu0
      %3148 = vdwg.mxu0
      %v3149 = vxor.u32 %v3146, 2147483648
      %v3150 = vmul.f32 %v3149, 1.442695
      %v3151 = vpow.pop %v3150
      %v3152 = vadd.f32 %v3151, 1.0
      %v3153 = vrcp.pop %v3152
      %v3154 = vmul.f32 1.0, %v3153
      %3155 = vst [vmem:[%s624] sm:$0xff] %v3154
      %p3156 = scmp.lt.s32.totalorder %s31, 1
      %s3157 = scalar_select %p3156, %s31, 1
      %s3158 = smul.addr %s3157, 8
      %s3159 = scalar_lea.vmem %s20, %s3158
      // Predicated region
      $region108: #{forward.1} parent=99 // pred_check
        %p3160 = pneg %p474
      $region109: #{forward.1} parent=99 // pred_check_branch
        %3162 = sbr.rel (%p3160) target = $region111
      $region110: #{forward.1} parent=99 // pred_region
        _
      $region111: #{forward.1} parent=99 // pred_fallthru
        _
    $region100: #{forward.1} parent=5 // pred_fallthru
      _
    %p3163 = scmp.le.s32.totalorder 2, %s26
    // Predicated region
    $region112: #{forward.1} parent=5 // pred_check
      %p3164 = pneg %p3163
    $region113: #{forward.1} parent=5 // pred_check_branch
      %3166 = sbr.rel (%p3164) target = $region115
    $region114: #{forward.1} parent=5 // pred_region
      %s3167 = ssub.s32 %s26, 2
      // Predicated region
      $region116: #{forward.1} parent=114 // pred_check
        %p3168 = pneg %p480
      $region117: #{forward.1} parent=114 // pred_check_branch
        %3170 = sbr.rel (%p3168) target = $region119
      $region118: #{forward.1} parent=114 // pred_region
        %p3171 = scmp.lt.s32.totalorder %s32, 1
        %s3172 = scalar_select %p3171, %s32, 1
        %s3173 = smul.addr %s3172, 8
        %s3174 = scalar_lea.vmem %s20, %s3173
      $region119: #{forward.1} parent=114 // pred_fallthru
        _
    $region115: #{forward.1} parent=5 // pred_fallthru
      _
  $region6: #{forward.1} parent=0 // loop_footer
    %s30 = sadd.s32 1, %s26
  $region7: #{forward.1} parent=0 // loop_footer_branch
    %25 = sbr.rel target = $region3
  $region8: #{forward.1} parent=0 // loop_exit
    _

</llo_original>
